<compile_context>
chip_gen: v6e
topology: v6e:2x2x1
jax: 0.10.0
libtpu: 0.0.40
codegen_flags: <defaults>
</compile_context>

<pallas_src>
import functools

import jax
import jax.numpy as jnp
from jax.experimental import pallas as pl
from jax.experimental.pallas import tpu as pltpu


_VMEM_LIMIT = None


def _vmem_limit_bytes():
    """Generation-aware VMEM limit (~80% of physical, >= 32 MiB fallback)."""
    global _VMEM_LIMIT
    if _VMEM_LIMIT is None:
        limit = 32 * 1024 * 1024
        try:
            phys = getattr(pltpu.get_tpu_info(), "vmem_capacity_bytes", None)
            if phys:
                limit = max(limit, int(phys) * 4 // 5)
        except Exception:
            pass
        _VMEM_LIMIT = limit
    return _VMEM_LIMIT


def _round_up(v, m):
    return (v + m - 1) // m * m


# ------------------------------ fused kernel --------------------------------


def _cnn_block_kernel(mask_ref, xf_ref, wa_ref, ba_ref, w2_ref, b2_ref,
                      w3_ref, b3_ref, y_ref, h2pad_ref, *,
                      k, wq, hid, inv_cnt, s3_off, fused_im2col):
    """Whole CNNBlock forward for one image on the 'wide' flattened grid.

    Wide grid: column q = ho*wq + wo; only wo < Wo are real output pixels
    (mask == 1).  Every conv tap becomes a constant flat shift of q.
    """
    f32 = jnp.float32
    mask = mask_ref[...]                         # (1, mw) f32, 1 = valid pixel
    mw = mask.shape[1]

    # ---- stage 1: k x k conv, main + residual paths share the taps ---------
    if fused_im2col:
        xf = xf_ref[...]                         # (cin_p, lin) bf16 flat image
        ct = wa_ref.shape[1]
        acc = jnp.zeros((ct, mw), f32)
        for i in range(k):
            for j in range(k):
                off = i * wq + j                 # flat shift of tap (i, j)
                acc = acc + jnp.dot(wa_ref[i * k + j], xf[:, off:off + mw],
                                    preferred_element_type=f32)
    else:
        # host-built im2col (stride > 1 fallback): one (ct, K1) x (K1, mw) dot
        acc = jnp.dot(wa_ref[...], xf_ref[...], preferred_element_type=f32)
    acc = acc + ba_ref[...]
    h = acc[:hid]                                # conv path, pre-activation
    r = acc[hid:]                                # residual conv output

    # ---- GroupNorm(1, affine=False) + LeakyReLU(0.01), masked single pass --
    def gn_lrelu(v):
        vm = v * mask
        mean = jnp.sum(vm) * inv_cnt
        var = jnp.maximum(jnp.sum(vm * v) * inv_cnt - mean * mean, 0.0)
        vn = (v - mean) * jax.lax.rsqrt(var + 1e-5)
        return jnp.where(vn >= 0, vn, 0.01 * vn)

    h1 = gn_lrelu(h).astype(jnp.bfloat16)

    # ---- stage 2: 1x1 conv + GroupNorm + LeakyReLU --------------------------
    a2 = jnp.dot(w2_ref[...], h1, preferred_element_type=f32) + b2_ref[...]
    h2 = gn_lrelu(a2)

    # ---- stage 3: 3x3 conv (stride 1, pad 1) + residual add -----------------
    # h2 goes through a zero-initialised padded scratch so the 3x3 taps read
    # true zeros outside the valid Ho x Wo grid (top/bottom rows, left/right
    # columns and the masked garbage columns).
    h2pad_ref[...] = jnp.zeros_like(h2pad_ref)
    h2pad_ref[:, pl.ds(s3_off, mw)] = (h2 * mask).astype(h2pad_ref.dtype)
    h2p = h2pad_ref[...]                         # (hid, lpad) bf16

    cout = y_ref.shape[0]
    acc3 = jnp.zeros((cout, mw), f32)
    for i in range(3):
        for j in range(3):
            off = s3_off + (i - 1) * wq + (j - 1)
            acc3 = acc3 + jnp.dot(w3_ref[i * 3 + j], h2p[:, off:off + mw],
                                  preferred_element_type=f32)
    y_ref[...] = (acc3 + b3_ref[...] + r).astype(y_ref.dtype)


# ------------------------------ host-side glue ------------------------------


def _im2col_wide(x, k, stride, padding, wq, mw):
    """Host im2col for the stride>1 fallback, laid out on the wide grid."""
    N, C, H, W = x.shape
    xp = jnp.pad(x, ((0, 0), (0, 0), (padding, padding), (padding, padding)))
    ho = (H + 2 * padding - k) // stride + 1
    wo = (W + 2 * padding - k) // stride + 1
    patches = []
    for i in range(k):
        for j in range(k):
            patches.append(
                xp[:, :, i:i + stride * (ho - 1) + 1:stride,
                   j:j + stride * (wo - 1) + 1:stride])
    cols = jnp.concatenate(patches, axis=1)                # (N, k*k*C, ho, wo)
    cols = jnp.pad(cols, ((0, 0), (0, 0), (0, 0), (0, wq - wo)))
    cols = cols.reshape(N, k * k * C, ho * wq)
    return jnp.pad(cols, ((0, 0), (0, 0), (0, mw - ho * wq)))


# ------------------------------- CNNBlock -----------------------------------


def init_cnn_block_params(key, in_channels, out_channels, kernel_size):
    """Deterministic PyTorch-Conv2d-style init (uniform +/- 1/sqrt(fan_in))."""
    hid = 2 * max(in_channels, out_channels)

    def init_conv(k, kh, kw, cin, cout):
        kw_, kb_ = jax.random.split(k)
        bound = 1.0 / (kh * kw * cin) ** 0.5
        w = jax.random.uniform(kw_, (kh, kw, cin, cout), jnp.float32, -bound, bound)
        b = jax.random.uniform(kb_, (cout,), jnp.float32, -bound, bound)
        return w, b

    k1, k2, k3, kr = jax.random.split(key, 4)
    w1, b1 = init_conv(k1, kernel_size, kernel_size, in_channels, hid)
    w2, b2 = init_conv(k2, 1, 1, hid, hid)
    w3, b3 = init_conv(k3, 3, 3, hid, out_channels)
    wr, br = init_conv(kr, kernel_size, kernel_size, in_channels, out_channels)
    return dict(w1=w1, b1=b1, w2=w2, b2=b2, w3=w3, b3=b3, wr=wr, br=br)


@functools.partial(jax.jit, static_argnums=(2, 3, 4))
def cnn_block_forward(x_nchw, params, kernel_size, stride, padding):
    """Pallas implementation of CNNBlock.forward.  Input/output: NCHW."""
    x = x_nchw.astype(jnp.float32)
    N, cin, H, W = x.shape
    hid = params["w1"].shape[3]
    cout = params["w3"].shape[3]
    ct = hid + cout
    k, s, p = kernel_size, stride, padding

    ho = (H + 2 * p - k) // s + 1
    wo = (W + 2 * p - k) // s + 1
    fused = (s == 1)

    # "wide" grid: rows of width wq >= wo + 1 (so the 3x3 stage always sees a
    # zeroed column between rows); flat length padded to 128 lanes.
    wq = max(W + 2 * p, wo + 1) if fused else wo + 1
    m_out = ho * wq
    mw = _round_up(m_out, 128)
    s3_off = _round_up(wq + 1, 128)
    lpad = _round_up(s3_off + mw + wq + 2, 128)

    # validity mask of the wide grid (1 = real output pixel)
    q = jnp.arange(mw, dtype=jnp.int32)
    mask = ((q < m_out) & (q % wq < wo)).astype(jnp.float32).reshape(1, mw)

    # ---- stage-1 operands (main conv + residual conv fused along Cout) -----
    wa4 = jnp.concatenate([params["w1"], params["wr"]], axis=3)   # (k,k,cin,ct)
    if fused:
        cin_p = _round_up(cin, 8)           # sublane-align the tap contraction
        lin = _round_up(max(mw + (k - 1) * (wq + 1), (H + 2 * p) * wq), 128)
        xp = jnp.pad(x, ((0, 0), (0, cin_p - cin),
                         (p, p), (p, wq - W - p)))       # (N, cin_p, H+2p, wq)
        xf = xp.reshape(N, cin_p, (H + 2 * p) * wq)
        xf = jnp.pad(xf, ((0, 0), (0, 0), (0, lin - xf.shape[2])))
        xf = xf.astype(jnp.bfloat16)
        wa = jnp.pad(wa4, ((0, 0), (0, 0), (0, cin_p - cin), (0, 0)))
        wa = jnp.transpose(wa, (0, 1, 3, 2)).reshape(k * k, ct, cin_p)
        wa = wa.astype(jnp.bfloat16)
        x_spec = pl.BlockSpec((None, cin_p, lin), lambda n: (n, 0, 0))
        w_spec = pl.BlockSpec((k * k, ct, cin_p), lambda n: (0, 0, 0))
    else:
        # TODO(synk): stride > 1 keeps a host-side stage-1 im2col (k*k input
        # traffic for that stage only); stages 2/3 + residual add stay fused.
        xf = _im2col_wide(x.astype(jnp.bfloat16), k, s, p, wq, mw)
        k1 = xf.shape[1]
        wa = jnp.transpose(wa4, (3, 0, 1, 2)).reshape(ct, k1).astype(jnp.bfloat16)
        x_spec = pl.BlockSpec((None, k1, mw), lambda n: (n, 0, 0))
        w_spec = pl.BlockSpec((ct, k1), lambda n: (0, 0))

    ba = jnp.concatenate([params["b1"], params["br"]]).reshape(ct, 1)
    ba = ba.astype(jnp.float32)
    w2 = jnp.transpose(params["w2"][0, 0]).astype(jnp.bfloat16)     # (hid, hid)
    b2 = params["b2"].reshape(hid, 1).astype(jnp.float32)
    w3 = jnp.transpose(params["w3"], (0, 1, 3, 2)).reshape(9, cout, hid)
    w3 = w3.astype(jnp.bfloat16)
    b3 = params["b3"].reshape(cout, 1).astype(jnp.float32)

    kern = functools.partial(
        _cnn_block_kernel, k=k, wq=wq, hid=hid,
        inv_cnt=1.0 / float(hid * ho * wo), s3_off=s3_off, fused_im2col=fused)

    y_wide = pl.pallas_call(
        kern,
        out_shape=jax.ShapeDtypeStruct((N, cout, mw), jnp.float32),
        grid=(N,),
        in_specs=[
            pl.BlockSpec((1, mw), lambda n: (0, 0)),
            x_spec,
            w_spec,
            pl.BlockSpec((ct, 1), lambda n: (0, 0)),
            pl.BlockSpec((hid, hid), lambda n: (0, 0)),
            pl.BlockSpec((hid, 1), lambda n: (0, 0)),
            pl.BlockSpec((9, cout, hid), lambda n: (0, 0, 0)),
            pl.BlockSpec((cout, 1), lambda n: (0, 0)),
        ],
        out_specs=pl.BlockSpec((None, cout, mw), lambda n: (n, 0, 0)),
        scratch_shapes=[pltpu.VMEM((hid, lpad), jnp.bfloat16)],
        compiler_params=pltpu.CompilerParams(
            dimension_semantics=("parallel",),
            vmem_limit_bytes=_vmem_limit_bytes()),
    )(mask, xf, wa, ba, w2, b2, w3, b3)

    # drop garbage columns / flat tail of the wide grid -> NCHW output
    y = y_wide[:, :, :m_out].reshape(N, cout, ho, wq)[:, :, :, :wo]
    return y


# --------------------------- pure-JAX reference ------------------------------


def _ref_forward(x_nchw, params, kernel_size, stride, padding,
                 quantize_bf16=False):
    """Reference CNNBlock.  quantize_bf16=True mirrors the kernel's bf16 MXU
    operands (f32 accumulation) so the comparison is tight."""
    def quant(v):
        if quantize_bf16:
            return v.astype(jnp.bfloat16).astype(jnp.float32)
        return v

    x = jnp.transpose(x_nchw, (0, 2, 3, 1)).astype(jnp.float32)

    def conv(inp, w, b, s, p):
        y = jax.lax.conv_general_dilated(
            quant(inp), quant(w), (s, s), [(p, p), (p, p)],
            dimension_numbers=("NHWC", "HWIO", "NHWC"),
            precision=jax.lax.Precision.HIGHEST,
            preferred_element_type=jnp.float32)
        return y + b

    def gn_lrelu(v):
        mean = jnp.mean(v, axis=(1, 2, 3), keepdims=True)
        var = jnp.mean((v - mean) ** 2, axis=(1, 2, 3), keepdims=True)
        vn = (v - mean) * jax.lax.rsqrt(var + 1e-5)
        return jnp.where(vn >= 0, vn, 0.01 * vn)

    h = gn_lrelu(conv(x, params["w1"], params["b1"], stride, padding))
    h = gn_lrelu(conv(h, params["w2"], params["b2"], 1, 0))
    h = conv(h, params["w3"], params["b3"], 1, 1)
    r = conv(x, params["wr"], params["br"], stride, padding)
    return jnp.transpose(r + h, (0, 3, 1, 2))


# ----------------------------------- main ------------------------------------


if __name__ == "__main__":
    in_channels, out_channels = 4, 8
    kernel_size, stride, padding = 3, 1, 1
    batch, spatial = 2, 16

    key = jax.random.PRNGKey(0)
    kx, kp = jax.random.split(key)
    x = jax.random.normal(kx, (batch, in_channels, spatial, spatial), jnp.float32)
    params = init_cnn_block_params(kp, in_channels, out_channels, kernel_size)

    y = cnn_block_forward(x, params, kernel_size, stride, padding)
    y = jax.block_until_ready(y)
    assert y.shape == (batch, out_channels, spatial, spatial), y.shape

    # Tight check vs. a reference that applies the same bf16 operand rounding
    # (f32 accumulation) the kernel uses.
    y_ref_bf16 = _ref_forward(x, params, kernel_size, stride, padding,
                              quantize_bf16=True)
    assert jnp.allclose(y, y_ref_bf16, atol=1e-3, rtol=1e-3), float(
        jnp.max(jnp.abs(y - y_ref_bf16)))

    # Coarse sanity bound vs. the pure-f32 reference (difference is purely the
    # bf16 MXU operand quantization).
    y_ref_f32 = _ref_forward(x, params, kernel_size, stride, padding,
                             quantize_bf16=False)
    assert jnp.allclose(y, y_ref_f32, atol=1e-1, rtol=1e-1), float(
        jnp.max(jnp.abs(y - y_ref_f32)))

    print("KERNEL_OK")
</pallas_src>

<mosaic_0001>
module attributes {stable_mosaic.version = 11 : i64} {
  func.func @_cnn_block_kernel(%arg0: i32, %arg1: memref<1x384xf32, #tpu.memory_space<vmem>>, %arg2: memref<1x8x512xbf16, #tpu.memory_space<vmem>>, %arg3: memref<9x24x8xbf16, #tpu.memory_space<vmem>>, %arg4: memref<24x1xf32, #tpu.memory_space<vmem>>, %arg5: memref<16x16xbf16, #tpu.memory_space<vmem>>, %arg6: memref<16x1xf32, #tpu.memory_space<vmem>>, %arg7: memref<9x8x16xbf16, #tpu.memory_space<vmem>>, %arg8: memref<8x1xf32, #tpu.memory_space<vmem>>, %arg9: memref<1x8x384xf32, #tpu.memory_space<vmem>>, %arg10: memref<16x640xbf16, #tpu.memory_space<vmem>>) attributes {dimension_semantics = [#tpu.dimension_semantics<parallel>], iteration_bounds = array<i64: 2>, scalar_prefetch = 0 : i64, scratch_operands = 1 : i64, tpu.core_type = #tpu.core_type<tc>, window_params = [{pipeline_mode = #tpu.pipeline_mode<synchronous>, transform_indices = @transform_0, window_bounds = array<i64: 1, 384>}, {transform_indices = @transform_1, window_bounds = array<i64: 1, 8, 512>}, {pipeline_mode = #tpu.pipeline_mode<synchronous>, transform_indices = @transform_2, window_bounds = array<i64: 9, 24, 8>}, {pipeline_mode = #tpu.pipeline_mode<synchronous>, transform_indices = @transform_3, window_bounds = array<i64: 24, 1>}, {pipeline_mode = #tpu.pipeline_mode<synchronous>, transform_indices = @transform_4, window_bounds = array<i64: 16, 16>}, {pipeline_mode = #tpu.pipeline_mode<synchronous>, transform_indices = @transform_5, window_bounds = array<i64: 16, 1>}, {pipeline_mode = #tpu.pipeline_mode<synchronous>, transform_indices = @transform_6, window_bounds = array<i64: 9, 8, 16>}, {pipeline_mode = #tpu.pipeline_mode<synchronous>, transform_indices = @transform_7, window_bounds = array<i64: 8, 1>}, {transform_indices = @transform_8, window_bounds = array<i64: 1, 8, 384>}]} {
    %c0 = arith.constant 0 : index
    %c0_0 = arith.constant 0 : index
    %0 = vector.load %arg1[%c0, %c0_0] : memref<1x384xf32, #tpu.memory_space<vmem>>, vector<1x384xf32>
    %c0_1 = arith.constant 0 : index
    %c0_2 = arith.constant 0 : index
    %c0_3 = arith.constant 0 : index
    %1 = vector.load %arg2[%c0_1, %c0_2, %c0_3] : memref<1x8x512xbf16, #tpu.memory_space<vmem>>, vector<1x8x512xbf16>
    %2 = vector.shape_cast %1 : vector<1x8x512xbf16> to vector<8x512xbf16>
    %cst = arith.constant 0.000000e+00 : f32
    %3 = vector.broadcast %cst : f32 to vector<24x384xf32>
    %c0_4 = arith.constant 0 : index
    %c0_5 = arith.constant 0 : index
    %c0_6 = arith.constant 0 : index
    %4 = vector.load %arg3[%c0_4, %c0_5, %c0_6] : memref<9x24x8xbf16, #tpu.memory_space<vmem>>, vector<1x24x8xbf16>
    %5 = vector.shape_cast %4 : vector<1x24x8xbf16> to vector<24x8xbf16>
    %6 = vector.extract_strided_slice %2 {offsets = [0, 0], sizes = [8, 384], strides = [1, 1]} : vector<8x512xbf16> to vector<8x384xbf16>
    %cst_7 = arith.constant dense<0.000000e+00> : vector<24x384xf32>
    %7 = tpu.matmul %5, %6, %cst_7 {dimension_numbers = #tpu.dot_dimension_numbers<[1], [0], [0], [1], [0, 0, 1, 1], [], []>} : vector<24x8xbf16>, vector<8x384xbf16>, vector<24x384xf32> -> vector<24x384xf32>
    %8 = arith.addf %3, %7 : vector<24x384xf32>
    %c1 = arith.constant 1 : index
    %c0_8 = arith.constant 0 : index
    %c0_9 = arith.constant 0 : index
    %9 = vector.load %arg3[%c1, %c0_8, %c0_9] : memref<9x24x8xbf16, #tpu.memory_space<vmem>>, vector<1x24x8xbf16>
    %10 = vector.shape_cast %9 : vector<1x24x8xbf16> to vector<24x8xbf16>
    %11 = vector.extract_strided_slice %2 {offsets = [0, 1], sizes = [8, 384], strides = [1, 1]} : vector<8x512xbf16> to vector<8x384xbf16>
    %cst_10 = arith.constant dense<0.000000e+00> : vector<24x384xf32>
    %12 = tpu.matmul %10, %11, %cst_10 {dimension_numbers = #tpu.dot_dimension_numbers<[1], [0], [0], [1], [0, 0, 1, 1], [], []>} : vector<24x8xbf16>, vector<8x384xbf16>, vector<24x384xf32> -> vector<24x384xf32>
    %13 = arith.addf %8, %12 : vector<24x384xf32>
    %c2 = arith.constant 2 : index
    %c0_11 = arith.constant 0 : index
    %c0_12 = arith.constant 0 : index
    %14 = vector.load %arg3[%c2, %c0_11, %c0_12] : memref<9x24x8xbf16, #tpu.memory_space<vmem>>, vector<1x24x8xbf16>
    %15 = vector.shape_cast %14 : vector<1x24x8xbf16> to vector<24x8xbf16>
    %16 = vector.extract_strided_slice %2 {offsets = [0, 2], sizes = [8, 384], strides = [1, 1]} : vector<8x512xbf16> to vector<8x384xbf16>
    %cst_13 = arith.constant dense<0.000000e+00> : vector<24x384xf32>
    %17 = tpu.matmul %15, %16, %cst_13 {dimension_numbers = #tpu.dot_dimension_numbers<[1], [0], [0], [1], [0, 0, 1, 1], [], []>} : vector<24x8xbf16>, vector<8x384xbf16>, vector<24x384xf32> -> vector<24x384xf32>
    %18 = arith.addf %13, %17 : vector<24x384xf32>
    %c3 = arith.constant 3 : index
    %c0_14 = arith.constant 0 : index
    %c0_15 = arith.constant 0 : index
    %19 = vector.load %arg3[%c3, %c0_14, %c0_15] : memref<9x24x8xbf16, #tpu.memory_space<vmem>>, vector<1x24x8xbf16>
    %20 = vector.shape_cast %19 : vector<1x24x8xbf16> to vector<24x8xbf16>
    %21 = vector.extract_strided_slice %2 {offsets = [0, 18], sizes = [8, 384], strides = [1, 1]} : vector<8x512xbf16> to vector<8x384xbf16>
    %cst_16 = arith.constant dense<0.000000e+00> : vector<24x384xf32>
    %22 = tpu.matmul %20, %21, %cst_16 {dimension_numbers = #tpu.dot_dimension_numbers<[1], [0], [0], [1], [0, 0, 1, 1], [], []>} : vector<24x8xbf16>, vector<8x384xbf16>, vector<24x384xf32> -> vector<24x384xf32>
    %23 = arith.addf %18, %22 : vector<24x384xf32>
    %c4 = arith.constant 4 : index
    %c0_17 = arith.constant 0 : index
    %c0_18 = arith.constant 0 : index
    %24 = vector.load %arg3[%c4, %c0_17, %c0_18] : memref<9x24x8xbf16, #tpu.memory_space<vmem>>, vector<1x24x8xbf16>
    %25 = vector.shape_cast %24 : vector<1x24x8xbf16> to vector<24x8xbf16>
    %26 = vector.extract_strided_slice %2 {offsets = [0, 19], sizes = [8, 384], strides = [1, 1]} : vector<8x512xbf16> to vector<8x384xbf16>
    %cst_19 = arith.constant dense<0.000000e+00> : vector<24x384xf32>
    %27 = tpu.matmul %25, %26, %cst_19 {dimension_numbers = #tpu.dot_dimension_numbers<[1], [0], [0], [1], [0, 0, 1, 1], [], []>} : vector<24x8xbf16>, vector<8x384xbf16>, vector<24x384xf32> -> vector<24x384xf32>
    %28 = arith.addf %23, %27 : vector<24x384xf32>
    %c5 = arith.constant 5 : index
    %c0_20 = arith.constant 0 : index
    %c0_21 = arith.constant 0 : index
    %29 = vector.load %arg3[%c5, %c0_20, %c0_21] : memref<9x24x8xbf16, #tpu.memory_space<vmem>>, vector<1x24x8xbf16>
    %30 = vector.shape_cast %29 : vector<1x24x8xbf16> to vector<24x8xbf16>
    %31 = vector.extract_strided_slice %2 {offsets = [0, 20], sizes = [8, 384], strides = [1, 1]} : vector<8x512xbf16> to vector<8x384xbf16>
    %cst_22 = arith.constant dense<0.000000e+00> : vector<24x384xf32>
    %32 = tpu.matmul %30, %31, %cst_22 {dimension_numbers = #tpu.dot_dimension_numbers<[1], [0], [0], [1], [0, 0, 1, 1], [], []>} : vector<24x8xbf16>, vector<8x384xbf16>, vector<24x384xf32> -> vector<24x384xf32>
    %33 = arith.addf %28, %32 : vector<24x384xf32>
    %c6 = arith.constant 6 : index
    %c0_23 = arith.constant 0 : index
    %c0_24 = arith.constant 0 : index
    %34 = vector.load %arg3[%c6, %c0_23, %c0_24] : memref<9x24x8xbf16, #tpu.memory_space<vmem>>, vector<1x24x8xbf16>
    %35 = vector.shape_cast %34 : vector<1x24x8xbf16> to vector<24x8xbf16>
    %36 = vector.extract_strided_slice %2 {offsets = [0, 36], sizes = [8, 384], strides = [1, 1]} : vector<8x512xbf16> to vector<8x384xbf16>
    %cst_25 = arith.constant dense<0.000000e+00> : vector<24x384xf32>
    %37 = tpu.matmul %35, %36, %cst_25 {dimension_numbers = #tpu.dot_dimension_numbers<[1], [0], [0], [1], [0, 0, 1, 1], [], []>} : vector<24x8xbf16>, vector<8x384xbf16>, vector<24x384xf32> -> vector<24x384xf32>
    %38 = arith.addf %33, %37 : vector<24x384xf32>
    %c7 = arith.constant 7 : index
    %c0_26 = arith.constant 0 : index
    %c0_27 = arith.constant 0 : index
    %39 = vector.load %arg3[%c7, %c0_26, %c0_27] : memref<9x24x8xbf16, #tpu.memory_space<vmem>>, vector<1x24x8xbf16>
    %40 = vector.shape_cast %39 : vector<1x24x8xbf16> to vector<24x8xbf16>
    %41 = vector.extract_strided_slice %2 {offsets = [0, 37], sizes = [8, 384], strides = [1, 1]} : vector<8x512xbf16> to vector<8x384xbf16>
    %cst_28 = arith.constant dense<0.000000e+00> : vector<24x384xf32>
    %42 = tpu.matmul %40, %41, %cst_28 {dimension_numbers = #tpu.dot_dimension_numbers<[1], [0], [0], [1], [0, 0, 1, 1], [], []>} : vector<24x8xbf16>, vector<8x384xbf16>, vector<24x384xf32> -> vector<24x384xf32>
    %43 = arith.addf %38, %42 : vector<24x384xf32>
    %c8 = arith.constant 8 : index
    %c0_29 = arith.constant 0 : index
    %c0_30 = arith.constant 0 : index
    %44 = vector.load %arg3[%c8, %c0_29, %c0_30] : memref<9x24x8xbf16, #tpu.memory_space<vmem>>, vector<1x24x8xbf16>
    %45 = vector.shape_cast %44 : vector<1x24x8xbf16> to vector<24x8xbf16>
    %46 = vector.extract_strided_slice %2 {offsets = [0, 38], sizes = [8, 384], strides = [1, 1]} : vector<8x512xbf16> to vector<8x384xbf16>
    %cst_31 = arith.constant dense<0.000000e+00> : vector<24x384xf32>
    %47 = tpu.matmul %45, %46, %cst_31 {dimension_numbers = #tpu.dot_dimension_numbers<[1], [0], [0], [1], [0, 0, 1, 1], [], []>} : vector<24x8xbf16>, vector<8x384xbf16>, vector<24x384xf32> -> vector<24x384xf32>
    %48 = arith.addf %43, %47 : vector<24x384xf32>
    %c0_32 = arith.constant 0 : index
    %c0_33 = arith.constant 0 : index
    %49 = vector.load %arg4[%c0_32, %c0_33] : memref<24x1xf32, #tpu.memory_space<vmem>>, vector<24x1xf32>
    %50 = vector.broadcast %49 : vector<24x1xf32> to vector<24x384xf32>
    %51 = arith.addf %48, %50 : vector<24x384xf32>
    %52 = vector.extract_strided_slice %51 {offsets = [0, 0], sizes = [16, 384], strides = [1, 1]} : vector<24x384xf32> to vector<16x384xf32>
    %53 = vector.extract_strided_slice %51 {offsets = [16, 0], sizes = [8, 384], strides = [1, 1]} : vector<24x384xf32> to vector<8x384xf32>
    %54 = vector.broadcast %0 : vector<1x384xf32> to vector<16x384xf32>
    %55 = arith.mulf %52, %54 : vector<16x384xf32>
    %56 = vector.shape_cast %55 : vector<16x384xf32> to vector<1x16x384xf32>
    %cst_34 = arith.constant dense<0.000000e+00> : vector<1xf32>
    %57 = vector.multi_reduction <add>, %56, %cst_34 [1, 2] : vector<1x16x384xf32> to vector<1xf32>
    %58 = vector.shape_cast %57 : vector<1xf32> to vector<1x1x1xf32>
    %59 = vector.extract %58[0, 0, 0] : f32 from vector<1x1x1xf32>
    %cst_35 = arith.constant 2.44140625E-4 : f32
    %60 = arith.mulf %59, %cst_35 : f32
    %61 = arith.mulf %55, %52 : vector<16x384xf32>
    %62 = vector.shape_cast %61 : vector<16x384xf32> to vector<1x16x384xf32>
    %cst_36 = arith.constant dense<0.000000e+00> : vector<1xf32>
    %63 = vector.multi_reduction <add>, %62, %cst_36 [1, 2] : vector<1x16x384xf32> to vector<1xf32>
    %64 = vector.shape_cast %63 : vector<1xf32> to vector<1x1x1xf32>
    %65 = vector.extract %64[0, 0, 0] : f32 from vector<1x1x1xf32>
    %cst_37 = arith.constant 2.44140625E-4 : f32
    %66 = arith.mulf %65, %cst_37 : f32
    %67 = arith.mulf %60, %60 : f32
    %68 = arith.subf %66, %67 : f32
    %cst_38 = arith.constant 0.000000e+00 : f32
    %69 = arith.maximumf %68, %cst_38 : f32
    %70 = vector.broadcast %60 : f32 to vector<16x384xf32>
    %71 = arith.subf %52, %70 : vector<16x384xf32>
    %cst_39 = arith.constant 9.99999974E-6 : f32
    %72 = arith.addf %69, %cst_39 : f32
    %73 = math.rsqrt %72 : f32
    %74 = vector.broadcast %73 : f32 to vector<16x384xf32>
    %75 = arith.mulf %71, %74 : vector<16x384xf32>
    %cst_40 = arith.constant 0.000000e+00 : f32
    %76 = vector.broadcast %cst_40 : f32 to vector<16x384xf32>
    %77 = arith.cmpf oge, %75, %76 : vector<16x384xf32>
    %cst_41 = arith.constant 0.00999999977 : f32
    %78 = vector.broadcast %cst_41 : f32 to vector<16x384xf32>
    %79 = arith.mulf %78, %75 : vector<16x384xf32>
    %80 = arith.select %77, %75, %79 : vector<16x384xi1>, vector<16x384xf32>
    %81 = arith.truncf %80 : vector<16x384xf32> to vector<16x384xbf16>
    %c0_42 = arith.constant 0 : index
    %c0_43 = arith.constant 0 : index
    %82 = vector.load %arg5[%c0_42, %c0_43] : memref<16x16xbf16, #tpu.memory_space<vmem>>, vector<16x16xbf16>
    %cst_44 = arith.constant dense<0.000000e+00> : vector<16x384xf32>
    %83 = tpu.matmul %82, %81, %cst_44 {dimension_numbers = #tpu.dot_dimension_numbers<[1], [0], [0], [1], [0, 0, 1, 1], [], []>} : vector<16x16xbf16>, vector<16x384xbf16>, vector<16x384xf32> -> vector<16x384xf32>
    %c0_45 = arith.constant 0 : index
    %c0_46 = arith.constant 0 : index
    %84 = vector.load %arg6[%c0_45, %c0_46] : memref<16x1xf32, #tpu.memory_space<vmem>>, vector<16x1xf32>
    %85 = vector.broadcast %84 : vector<16x1xf32> to vector<16x384xf32>
    %86 = arith.addf %83, %85 : vector<16x384xf32>
    %87 = vector.broadcast %0 : vector<1x384xf32> to vector<16x384xf32>
    %88 = arith.mulf %86, %87 : vector<16x384xf32>
    %89 = vector.shape_cast %88 : vector<16x384xf32> to vector<1x16x384xf32>
    %cst_47 = arith.constant dense<0.000000e+00> : vector<1xf32>
    %90 = vector.multi_reduction <add>, %89, %cst_47 [1, 2] : vector<1x16x384xf32> to vector<1xf32>
    %91 = vector.shape_cast %90 : vector<1xf32> to vector<1x1x1xf32>
    %92 = vector.extract %91[0, 0, 0] : f32 from vector<1x1x1xf32>
    %cst_48 = arith.constant 2.44140625E-4 : f32
    %93 = arith.mulf %92, %cst_48 : f32
    %94 = arith.mulf %88, %86 : vector<16x384xf32>
    %95 = vector.shape_cast %94 : vector<16x384xf32> to vector<1x16x384xf32>
    %cst_49 = arith.constant dense<0.000000e+00> : vector<1xf32>
    %96 = vector.multi_reduction <add>, %95, %cst_49 [1, 2] : vector<1x16x384xf32> to vector<1xf32>
    %97 = vector.shape_cast %96 : vector<1xf32> to vector<1x1x1xf32>
    %98 = vector.extract %97[0, 0, 0] : f32 from vector<1x1x1xf32>
    %cst_50 = arith.constant 2.44140625E-4 : f32
    %99 = arith.mulf %98, %cst_50 : f32
    %100 = arith.mulf %93, %93 : f32
    %101 = arith.subf %99, %100 : f32
    %cst_51 = arith.constant 0.000000e+00 : f32
    %102 = arith.maximumf %101, %cst_51 : f32
    %103 = vector.broadcast %93 : f32 to vector<16x384xf32>
    %104 = arith.subf %86, %103 : vector<16x384xf32>
    %cst_52 = arith.constant 9.99999974E-6 : f32
    %105 = arith.addf %102, %cst_52 : f32
    %106 = math.rsqrt %105 : f32
    %107 = vector.broadcast %106 : f32 to vector<16x384xf32>
    %108 = arith.mulf %104, %107 : vector<16x384xf32>
    %cst_53 = arith.constant 0.000000e+00 : f32
    %109 = vector.broadcast %cst_53 : f32 to vector<16x384xf32>
    %110 = arith.cmpf oge, %108, %109 : vector<16x384xf32>
    %cst_54 = arith.constant 0.00999999977 : f32
    %111 = vector.broadcast %cst_54 : f32 to vector<16x384xf32>
    %112 = arith.mulf %111, %108 : vector<16x384xf32>
    %113 = arith.select %110, %108, %112 : vector<16x384xi1>, vector<16x384xf32>
    %cst_55 = arith.constant 0.000000e+00 : bf16
    %114 = vector.broadcast %cst_55 : bf16 to vector<16x640xbf16>
    %c0_56 = arith.constant 0 : index
    %c0_57 = arith.constant 0 : index
    %115 = vector.load %arg10[%c0_56, %c0_57] : memref<16x640xbf16, #tpu.memory_space<vmem>>, vector<16x640xbf16>
    tpu.vector_store %arg10[%c0_56, %c0_57], %114 {strides = array<i32>} : memref<16x640xbf16, #tpu.memory_space<vmem>>, vector<16x640xbf16>,
    %116 = vector.broadcast %0 : vector<1x384xf32> to vector<16x384xf32>
    %117 = arith.mulf %113, %116 : vector<16x384xf32>
    %118 = arith.truncf %117 : vector<16x384xf32> to vector<16x384xbf16>
    %c0_58 = arith.constant 0 : index
    %c128 = arith.constant 128 : index
    %119 = vector.load %arg10[%c0_58, %c128] : memref<16x640xbf16, #tpu.memory_space<vmem>>, vector<16x384xbf16>
    tpu.vector_store %arg10[%c0_58, %c128], %118 {strides = array<i32>} : memref<16x640xbf16, #tpu.memory_space<vmem>>, vector<16x384xbf16>,
    %c0_59 = arith.constant 0 : index
    %c0_60 = arith.constant 0 : index
    %120 = vector.load %arg10[%c0_59, %c0_60] : memref<16x640xbf16, #tpu.memory_space<vmem>>, vector<16x640xbf16>
    %cst_61 = arith.constant 0.000000e+00 : f32
    %121 = vector.broadcast %cst_61 : f32 to vector<8x384xf32>
    %c0_62 = arith.constant 0 : index
    %c0_63 = arith.constant 0 : index
    %c0_64 = arith.constant 0 : index
    %122 = vector.load %arg7[%c0_62, %c0_63, %c0_64] : memref<9x8x16xbf16, #tpu.memory_space<vmem>>, vector<1x8x16xbf16>
    %123 = vector.shape_cast %122 : vector<1x8x16xbf16> to vector<8x16xbf16>
    %124 = vector.extract_strided_slice %120 {offsets = [0, 109], sizes = [16, 384], strides = [1, 1]} : vector<16x640xbf16> to vector<16x384xbf16>
    %cst_65 = arith.constant dense<0.000000e+00> : vector<8x384xf32>
    %125 = tpu.matmul %123, %124, %cst_65 {dimension_numbers = #tpu.dot_dimension_numbers<[1], [0], [0], [1], [0, 0, 1, 1], [], []>} : vector<8x16xbf16>, vector<16x384xbf16>, vector<8x384xf32> -> vector<8x384xf32>
    %126 = arith.addf %121, %125 : vector<8x384xf32>
    %c1_66 = arith.constant 1 : index
    %c0_67 = arith.constant 0 : index
    %c0_68 = arith.constant 0 : index
    %127 = vector.load %arg7[%c1_66, %c0_67, %c0_68] : memref<9x8x16xbf16, #tpu.memory_space<vmem>>, vector<1x8x16xbf16>
    %128 = vector.shape_cast %127 : vector<1x8x16xbf16> to vector<8x16xbf16>
    %129 = vector.extract_strided_slice %120 {offsets = [0, 110], sizes = [16, 384], strides = [1, 1]} : vector<16x640xbf16> to vector<16x384xbf16>
    %cst_69 = arith.constant dense<0.000000e+00> : vector<8x384xf32>
    %130 = tpu.matmul %128, %129, %cst_69 {dimension_numbers = #tpu.dot_dimension_numbers<[1], [0], [0], [1], [0, 0, 1, 1], [], []>} : vector<8x16xbf16>, vector<16x384xbf16>, vector<8x384xf32> -> vector<8x384xf32>
    %131 = arith.addf %126, %130 : vector<8x384xf32>
    %c2_70 = arith.constant 2 : index
    %c0_71 = arith.constant 0 : index
    %c0_72 = arith.constant 0 : index
    %132 = vector.load %arg7[%c2_70, %c0_71, %c0_72] : memref<9x8x16xbf16, #tpu.memory_space<vmem>>, vector<1x8x16xbf16>
    %133 = vector.shape_cast %132 : vector<1x8x16xbf16> to vector<8x16xbf16>
    %134 = vector.extract_strided_slice %120 {offsets = [0, 111], sizes = [16, 384], strides = [1, 1]} : vector<16x640xbf16> to vector<16x384xbf16>
    %cst_73 = arith.constant dense<0.000000e+00> : vector<8x384xf32>
    %135 = tpu.matmul %133, %134, %cst_73 {dimension_numbers = #tpu.dot_dimension_numbers<[1], [0], [0], [1], [0, 0, 1, 1], [], []>} : vector<8x16xbf16>, vector<16x384xbf16>, vector<8x384xf32> -> vector<8x384xf32>
    %136 = arith.addf %131, %135 : vector<8x384xf32>
    %c3_74 = arith.constant 3 : index
    %c0_75 = arith.constant 0 : index
    %c0_76 = arith.constant 0 : index
    %137 = vector.load %arg7[%c3_74, %c0_75, %c0_76] : memref<9x8x16xbf16, #tpu.memory_space<vmem>>, vector<1x8x16xbf16>
    %138 = vector.shape_cast %137 : vector<1x8x16xbf16> to vector<8x16xbf16>
    %139 = vector.extract_strided_slice %120 {offsets = [0, 127], sizes = [16, 384], strides = [1, 1]} : vector<16x640xbf16> to vector<16x384xbf16>
    %cst_77 = arith.constant dense<0.000000e+00> : vector<8x384xf32>
    %140 = tpu.matmul %138, %139, %cst_77 {dimension_numbers = #tpu.dot_dimension_numbers<[1], [0], [0], [1], [0, 0, 1, 1], [], []>} : vector<8x16xbf16>, vector<16x384xbf16>, vector<8x384xf32> -> vector<8x384xf32>
    %141 = arith.addf %136, %140 : vector<8x384xf32>
    %c4_78 = arith.constant 4 : index
    %c0_79 = arith.constant 0 : index
    %c0_80 = arith.constant 0 : index
    %142 = vector.load %arg7[%c4_78, %c0_79, %c0_80] : memref<9x8x16xbf16, #tpu.memory_space<vmem>>, vector<1x8x16xbf16>
    %143 = vector.shape_cast %142 : vector<1x8x16xbf16> to vector<8x16xbf16>
    %144 = vector.extract_strided_slice %120 {offsets = [0, 128], sizes = [16, 384], strides = [1, 1]} : vector<16x640xbf16> to vector<16x384xbf16>
    %cst_81 = arith.constant dense<0.000000e+00> : vector<8x384xf32>
    %145 = tpu.matmul %143, %144, %cst_81 {dimension_numbers = #tpu.dot_dimension_numbers<[1], [0], [0], [1], [0, 0, 1, 1], [], []>} : vector<8x16xbf16>, vector<16x384xbf16>, vector<8x384xf32> -> vector<8x384xf32>
    %146 = arith.addf %141, %145 : vector<8x384xf32>
    %c5_82 = arith.constant 5 : index
    %c0_83 = arith.constant 0 : index
    %c0_84 = arith.constant 0 : index
    %147 = vector.load %arg7[%c5_82, %c0_83, %c0_84] : memref<9x8x16xbf16, #tpu.memory_space<vmem>>, vector<1x8x16xbf16>
    %148 = vector.shape_cast %147 : vector<1x8x16xbf16> to vector<8x16xbf16>
    %149 = vector.extract_strided_slice %120 {offsets = [0, 129], sizes = [16, 384], strides = [1, 1]} : vector<16x640xbf16> to vector<16x384xbf16>
    %cst_85 = arith.constant dense<0.000000e+00> : vector<8x384xf32>
    %150 = tpu.matmul %148, %149, %cst_85 {dimension_numbers = #tpu.dot_dimension_numbers<[1], [0], [0], [1], [0, 0, 1, 1], [], []>} : vector<8x16xbf16>, vector<16x384xbf16>, vector<8x384xf32> -> vector<8x384xf32>
    %151 = arith.addf %146, %150 : vector<8x384xf32>
    %c6_86 = arith.constant 6 : index
    %c0_87 = arith.constant 0 : index
    %c0_88 = arith.constant 0 : index
    %152 = vector.load %arg7[%c6_86, %c0_87, %c0_88] : memref<9x8x16xbf16, #tpu.memory_space<vmem>>, vector<1x8x16xbf16>
    %153 = vector.shape_cast %152 : vector<1x8x16xbf16> to vector<8x16xbf16>
    %154 = vector.extract_strided_slice %120 {offsets = [0, 145], sizes = [16, 384], strides = [1, 1]} : vector<16x640xbf16> to vector<16x384xbf16>
    %cst_89 = arith.constant dense<0.000000e+00> : vector<8x384xf32>
    %155 = tpu.matmul %153, %154, %cst_89 {dimension_numbers = #tpu.dot_dimension_numbers<[1], [0], [0], [1], [0, 0, 1, 1], [], []>} : vector<8x16xbf16>, vector<16x384xbf16>, vector<8x384xf32> -> vector<8x384xf32>
    %156 = arith.addf %151, %155 : vector<8x384xf32>
    %c7_90 = arith.constant 7 : index
    %c0_91 = arith.constant 0 : index
    %c0_92 = arith.constant 0 : index
    %157 = vector.load %arg7[%c7_90, %c0_91, %c0_92] : memref<9x8x16xbf16, #tpu.memory_space<vmem>>, vector<1x8x16xbf16>
    %158 = vector.shape_cast %157 : vector<1x8x16xbf16> to vector<8x16xbf16>
    %159 = vector.extract_strided_slice %120 {offsets = [0, 146], sizes = [16, 384], strides = [1, 1]} : vector<16x640xbf16> to vector<16x384xbf16>
    %cst_93 = arith.constant dense<0.000000e+00> : vector<8x384xf32>
    %160 = tpu.matmul %158, %159, %cst_93 {dimension_numbers = #tpu.dot_dimension_numbers<[1], [0], [0], [1], [0, 0, 1, 1], [], []>} : vector<8x16xbf16>, vector<16x384xbf16>, vector<8x384xf32> -> vector<8x384xf32>
    %161 = arith.addf %156, %160 : vector<8x384xf32>
    %c8_94 = arith.constant 8 : index
    %c0_95 = arith.constant 0 : index
    %c0_96 = arith.constant 0 : index
    %162 = vector.load %arg7[%c8_94, %c0_95, %c0_96] : memref<9x8x16xbf16, #tpu.memory_space<vmem>>, vector<1x8x16xbf16>
    %163 = vector.shape_cast %162 : vector<1x8x16xbf16> to vector<8x16xbf16>
    %164 = vector.extract_strided_slice %120 {offsets = [0, 147], sizes = [16, 384], strides = [1, 1]} : vector<16x640xbf16> to vector<16x384xbf16>
    %cst_97 = arith.constant dense<0.000000e+00> : vector<8x384xf32>
    %165 = tpu.matmul %163, %164, %cst_97 {dimension_numbers = #tpu.dot_dimension_numbers<[1], [0], [0], [1], [0, 0, 1, 1], [], []>} : vector<8x16xbf16>, vector<16x384xbf16>, vector<8x384xf32> -> vector<8x384xf32>
    %166 = arith.addf %161, %165 : vector<8x384xf32>
    %c0_98 = arith.constant 0 : index
    %c0_99 = arith.constant 0 : index
    %167 = vector.load %arg8[%c0_98, %c0_99] : memref<8x1xf32, #tpu.memory_space<vmem>>, vector<8x1xf32>
    %168 = vector.broadcast %167 : vector<8x1xf32> to vector<8x384xf32>
    %169 = arith.addf %166, %168 : vector<8x384xf32>
    %170 = arith.addf %169, %53 : vector<8x384xf32>
    %c0_100 = arith.constant 0 : index
    %c0_101 = arith.constant 0 : index
    %c0_102 = arith.constant 0 : index
    %171 = vector.load %arg9[%c0_100, %c0_101, %c0_102] : memref<1x8x384xf32, #tpu.memory_space<vmem>>, vector<1x8x384xf32>
    %172 = vector.shape_cast %171 : vector<1x8x384xf32> to vector<8x384xf32>
    %173 = vector.shape_cast %170 : vector<8x384xf32> to vector<1x8x384xf32>
    tpu.vector_store %arg9[%c0_100, %c0_101, %c0_102], %173 {strides = array<i32>} : memref<1x8x384xf32, #tpu.memory_space<vmem>>, vector<1x8x384xf32>,
    return
  }
  func.func @transform_0(%arg0: i32) -> (i32, i32) {
    %c0_i32 = arith.constant 0 : i32
    %c0_i32_0 = arith.constant 0 : i32
    %c0_i32_1 = arith.constant 0 : i32
    return %c0_i32, %c0_i32_0 : i32, i32
  }
  func.func @transform_1(%arg0: i32) -> (i32, i32, i32) {
    %c0_i32 = arith.constant 0 : i32
    %c0_i32_0 = arith.constant 0 : i32
    %c0_i32_1 = arith.constant 0 : i32
    return %arg0, %c0_i32, %c0_i32_0 : i32, i32, i32
  }
  func.func @transform_2(%arg0: i32) -> (i32, i32, i32) {
    %c0_i32 = arith.constant 0 : i32
    %c0_i32_0 = arith.constant 0 : i32
    %c0_i32_1 = arith.constant 0 : i32
    %c0_i32_2 = arith.constant 0 : i32
    return %c0_i32, %c0_i32_0, %c0_i32_1 : i32, i32, i32
  }
  func.func @transform_3(%arg0: i32) -> (i32, i32) {
    %c0_i32 = arith.constant 0 : i32
    %c0_i32_0 = arith.constant 0 : i32
    %c0_i32_1 = arith.constant 0 : i32
    return %c0_i32, %c0_i32_0 : i32, i32
  }
  func.func @transform_4(%arg0: i32) -> (i32, i32) {
    %c0_i32 = arith.constant 0 : i32
    %c0_i32_0 = arith.constant 0 : i32
    %c0_i32_1 = arith.constant 0 : i32
    return %c0_i32, %c0_i32_0 : i32, i32
  }
  func.func @transform_5(%arg0: i32) -> (i32, i32) {
    %c0_i32 = arith.constant 0 : i32
    %c0_i32_0 = arith.constant 0 : i32
    %c0_i32_1 = arith.constant 0 : i32
    return %c0_i32, %c0_i32_0 : i32, i32
  }
  func.func @transform_6(%arg0: i32) -> (i32, i32, i32) {
    %c0_i32 = arith.constant 0 : i32
    %c0_i32_0 = arith.constant 0 : i32
    %c0_i32_1 = arith.constant 0 : i32
    %c0_i32_2 = arith.constant 0 : i32
    return %c0_i32, %c0_i32_0, %c0_i32_1 : i32, i32, i32
  }
  func.func @transform_7(%arg0: i32) -> (i32, i32) {
    %c0_i32 = arith.constant 0 : i32
    %c0_i32_0 = arith.constant 0 : i32
    %c0_i32_1 = arith.constant 0 : i32
    return %c0_i32, %c0_i32_0 : i32, i32
  }
  func.func @transform_8(%arg0: i32) -> (i32, i32, i32) {
    %c0_i32 = arith.constant 0 : i32
    %c0_i32_0 = arith.constant 0 : i32
    %c0_i32_1 = arith.constant 0 : i32
    return %arg0, %c0_i32, %c0_i32_0 : i32, i32, i32
  }
}

</mosaic_0001>

<llo_original>
// kernel: cnn_block_forward.1
$region0: #{cnn_block_forward.1}
  #allocation0 [shape = 'u32[]', space=smem, size = 0x4, offset = 0x4, fixed_abs, tag = 'smem constant byte address 0x4 - core index']
  #allocation1 [shape = 'u32[144,128]{1,0:T(1,128)}', space=vmem, size = 0x12000, scoped, tag = 'internal scratch']
  #allocation2 [shape = 'bf16[16,640]{1,0:T(8,128)(2,1)}', space=vmem, size = 0x5000, scoped, tag = 'scratch operand']
  %s0 = inlined_call_operand.vmem [shape: f32[1,384], index: 0, kind: input, shape index: {}]
  %s1 = inlined_call_operand.vmem [shape: bf16[2,8,512], index: 1, kind: input, shape index: {}]
  %s2 = inlined_call_operand.vmem [shape: bf16[9,24,8], index: 2, kind: input, shape index: {}]
  %s3 = inlined_call_operand.vmem [shape: f32[24,1], index: 3, kind: input, shape index: {}]
  %s4 = inlined_call_operand.vmem [shape: bf16[16,16], index: 4, kind: input, shape index: {}]
  %s5 = inlined_call_operand.vmem [shape: f32[16,1], index: 5, kind: input, shape index: {}]
  %s6 = inlined_call_operand.vmem [shape: bf16[9,8,16], index: 6, kind: input, shape index: {}]
  %s7 = inlined_call_operand.vmem [shape: f32[8,1], index: 7, kind: input, shape index: {}]
  %s8 = inlined_call_operand.vmem [shape: f32[2,8,384], index: 8, kind: output, shape index: {}]
  %s9 = sld [smem:[#allocation0]]
  $region65: #{cnn_block_forward.1} parent=0
    _
  %s11 = ssub.s32 1, %s9
  %s12 = scalar_select 0, %s11, %s9
  loop: start=0, step=1, limit=4
  $region2: #{cnn_block_forward.1} parent=0 // loop_pre_header
    _
  $region3: #{cnn_block_forward.1} parent=0 // loop_header
    %s14 = sphi 0, %s18
    %p15 = scmp.ge.s32.totalorder %s14, 4
    %s22 = sphi 0, %s22
    %s24 = sphi 0, %s22
    %s25 = sphi 0, %s24
    %s39 = sphi 0, %s25
    %s45 = sphi 0, %s47
    %s48 = sphi 0, %s45
    %s49 = sphi 0, %s48
    %s65 = sphi 0, %s49
    %s69 = sphi 0, %s69
    %s71 = sphi 0, %s69
    %s72 = sphi 0, %s71
    %s86 = sphi 0, %s72
    %s90 = sphi 0, %s90
    %s92 = sphi 0, %s90
    %s93 = sphi 0, %s92
    %s107 = sphi 0, %s93
    %s111 = sphi 0, %s111
    %s113 = sphi 0, %s111
    %s114 = sphi 0, %s113
    %s128 = sphi 0, %s114
    %s132 = sphi 0, %s132
    %s134 = sphi 0, %s132
    %s135 = sphi 0, %s134
    %s149 = sphi 0, %s135
    %s153 = sphi 0, %s153
    %s155 = sphi 0, %s153
    %s156 = sphi 0, %s155
    %s170 = sphi 0, %s156
    %s174 = sphi 0, %s174
    %s176 = sphi 0, %s174
    %s177 = sphi 0, %s176
    %s191 = sphi 0, %s177
    %s197 = sphi 0, %s199
    %s200 = sphi 0, %s197
    %s201 = sphi 0, %s200
    %s217 = sphi 0, %s201
  $region4: #{cnn_block_forward.1} parent=0 // loop_header_branch
    %17 = sbr.rel (%p15) target = $region8
  $region5: #{cnn_block_forward.1} parent=0 // loop_body
    %s19 = ssub.s32 %s14, 1
    %s20 = ssub.s32 %s14, 2
    %s21 = sadd.s32 %s14, 1
    %s23 = sadd.s32 %s22, 1
    %p26 = scmp.eq.s32.totalorder %s14, 1
    %p27 = scmp.ne.s32.totalorder %s22, %s24
    %p28 = scmp.eq.s32.totalorder %s14, 0
    %p29 = por %p27, %p28
    %p30 = scmp.ne.s32.totalorder %s22, %s24
    %p31 = scmp.eq.s32.totalorder %s19, 1
    %p32 = por %p30, %p31
    %p33 = scmp.ne.s32.totalorder %s24, %s25
    %p34 = scmp.eq.s32.totalorder %s19, 0
    %p35 = por %p33, %p34
    %p36 = scmp.ne.s32.totalorder %s24, %s25
    %p37 = scmp.eq.s32.totalorder %s20, 1
    %p38 = por %p36, %p37
    %p40 = scmp.ne.s32.totalorder %s25, %s39
    %p41 = scmp.eq.s32.totalorder %s20, 0
    %p42 = por %p40, %p41
    %s43 = ssub.s32 %s14, %s21
    %p44 = scmp.eq.s32.totalorder %s43, 0
    %s46 = sadd.s32 %s45, 1
    %s47 = scalar_select %p44, %s45, %s46
    %p50 = pneg %p44
    %p51 = scmp.eq.s32.totalorder %s14, 1
    %p52 = por %p50, %p51
    %p53 = scmp.ne.s32.totalorder %s45, %s48
    %p54 = scmp.eq.s32.totalorder %s14, 0
    %p55 = por %p53, %p54
    %p56 = scmp.ne.s32.totalorder %s45, %s48
    %p57 = scmp.eq.s32.totalorder %s19, 1
    %p58 = por %p56, %p57
    %p59 = scmp.ne.s32.totalorder %s48, %s49
    %p60 = scmp.eq.s32.totalorder %s19, 0
    %p61 = por %p59, %p60
    %p62 = scmp.ne.s32.totalorder %s48, %s49
    %p63 = scmp.eq.s32.totalorder %s20, 1
    %p64 = por %p62, %p63
    %p66 = scmp.ne.s32.totalorder %s49, %s65
    %p67 = scmp.eq.s32.totalorder %s20, 0
    %p68 = por %p66, %p67
    %s70 = sadd.s32 %s69, 1
    %p73 = scmp.eq.s32.totalorder %s14, 1
    %p74 = scmp.ne.s32.totalorder %s69, %s71
    %p75 = scmp.eq.s32.totalorder %s14, 0
    %p76 = por %p74, %p75
    %p77 = scmp.ne.s32.totalorder %s69, %s71
    %p78 = scmp.eq.s32.totalorder %s19, 1
    %p79 = por %p77, %p78
    %p80 = scmp.ne.s32.totalorder %s71, %s72
    %p81 = scmp.eq.s32.totalorder %s19, 0
    %p82 = por %p80, %p81
    %p83 = scmp.ne.s32.totalorder %s71, %s72
    %p84 = scmp.eq.s32.totalorder %s20, 1
    %p85 = por %p83, %p84
    %p87 = scmp.ne.s32.totalorder %s72, %s86
    %p88 = scmp.eq.s32.totalorder %s20, 0
    %p89 = por %p87, %p88
    %s91 = sadd.s32 %s90, 1
    %p94 = scmp.eq.s32.totalorder %s14, 1
    %p95 = scmp.ne.s32.totalorder %s90, %s92
    %p96 = scmp.eq.s32.totalorder %s14, 0
    %p97 = por %p95, %p96
    %p98 = scmp.ne.s32.totalorder %s90, %s92
    %p99 = scmp.eq.s32.totalorder %s19, 1
    %p100 = por %p98, %p99
    %p101 = scmp.ne.s32.totalorder %s92, %s93
    %p102 = scmp.eq.s32.totalorder %s19, 0
    %p103 = por %p101, %p102
    %p104 = scmp.ne.s32.totalorder %s92, %s93
    %p105 = scmp.eq.s32.totalorder %s20, 1
    %p106 = por %p104, %p105
    %p108 = scmp.ne.s32.totalorder %s93, %s107
    %p109 = scmp.eq.s32.totalorder %s20, 0
    %p110 = por %p108, %p109
    %s112 = sadd.s32 %s111, 1
    %p115 = scmp.eq.s32.totalorder %s14, 1
    %p116 = scmp.ne.s32.totalorder %s111, %s113
    %p117 = scmp.eq.s32.totalorder %s14, 0
    %p118 = por %p116, %p117
    %p119 = scmp.ne.s32.totalorder %s111, %s113
    %p120 = scmp.eq.s32.totalorder %s19, 1
    %p121 = por %p119, %p120
    %p122 = scmp.ne.s32.totalorder %s113, %s114
    %p123 = scmp.eq.s32.totalorder %s19, 0
    %p124 = por %p122, %p123
    %p125 = scmp.ne.s32.totalorder %s113, %s114
    %p126 = scmp.eq.s32.totalorder %s20, 1
    %p127 = por %p125, %p126
    %p129 = scmp.ne.s32.totalorder %s114, %s128
    %p130 = scmp.eq.s32.totalorder %s20, 0
    %p131 = por %p129, %p130
    %s133 = sadd.s32 %s132, 1
    %p136 = scmp.eq.s32.totalorder %s14, 1
    %p137 = scmp.ne.s32.totalorder %s132, %s134
    %p138 = scmp.eq.s32.totalorder %s14, 0
    %p139 = por %p137, %p138
    %p140 = scmp.ne.s32.totalorder %s132, %s134
    %p141 = scmp.eq.s32.totalorder %s19, 1
    %p142 = por %p140, %p141
    %p143 = scmp.ne.s32.totalorder %s134, %s135
    %p144 = scmp.eq.s32.totalorder %s19, 0
    %p145 = por %p143, %p144
    %p146 = scmp.ne.s32.totalorder %s134, %s135
    %p147 = scmp.eq.s32.totalorder %s20, 1
    %p148 = por %p146, %p147
    %p150 = scmp.ne.s32.totalorder %s135, %s149
    %p151 = scmp.eq.s32.totalorder %s20, 0
    %p152 = por %p150, %p151
    %s154 = sadd.s32 %s153, 1
    %p157 = scmp.eq.s32.totalorder %s14, 1
    %p158 = scmp.ne.s32.totalorder %s153, %s155
    %p159 = scmp.eq.s32.totalorder %s14, 0
    %p160 = por %p158, %p159
    %p161 = scmp.ne.s32.totalorder %s153, %s155
    %p162 = scmp.eq.s32.totalorder %s19, 1
    %p163 = por %p161, %p162
    %p164 = scmp.ne.s32.totalorder %s155, %s156
    %p165 = scmp.eq.s32.totalorder %s19, 0
    %p166 = por %p164, %p165
    %p167 = scmp.ne.s32.totalorder %s155, %s156
    %p168 = scmp.eq.s32.totalorder %s20, 1
    %p169 = por %p167, %p168
    %p171 = scmp.ne.s32.totalorder %s156, %s170
    %p172 = scmp.eq.s32.totalorder %s20, 0
    %p173 = por %p171, %p172
    %s175 = sadd.s32 %s174, 1
    %p178 = scmp.eq.s32.totalorder %s14, 1
    %p179 = scmp.ne.s32.totalorder %s174, %s176
    %p180 = scmp.eq.s32.totalorder %s14, 0
    %p181 = por %p179, %p180
    %p182 = scmp.ne.s32.totalorder %s174, %s176
    %p183 = scmp.eq.s32.totalorder %s19, 1
    %p184 = por %p182, %p183
    %p185 = scmp.ne.s32.totalorder %s176, %s177
    %p186 = scmp.eq.s32.totalorder %s19, 0
    %p187 = por %p185, %p186
    %p188 = scmp.ne.s32.totalorder %s176, %s177
    %p189 = scmp.eq.s32.totalorder %s20, 1
    %p190 = por %p188, %p189
    %p192 = scmp.ne.s32.totalorder %s177, %s191
    %p193 = scmp.eq.s32.totalorder %s20, 0
    %p194 = por %p192, %p193
    %s195 = ssub.s32 %s14, %s21
    %p196 = scmp.eq.s32.totalorder %s195, 0
    %s198 = sadd.s32 %s197, 1
    %s199 = scalar_select %p196, %s197, %s198
    %p202 = pneg %p196
    %p203 = scmp.eq.s32.totalorder %s14, 1
    %p204 = por %p202, %p203
    %p205 = scmp.ne.s32.totalorder %s197, %s200
    %p206 = scmp.eq.s32.totalorder %s14, 0
    %p207 = por %p205, %p206
    %p208 = scmp.ne.s32.totalorder %s197, %s200
    %p209 = scmp.eq.s32.totalorder %s19, 1
    %p210 = por %p208, %p209
    %p211 = scmp.ne.s32.totalorder %s200, %s201
    %p212 = scmp.eq.s32.totalorder %s19, 0
    %p213 = por %p211, %p212
    %p214 = scmp.ne.s32.totalorder %s200, %s201
    %p215 = scmp.eq.s32.totalorder %s20, 1
    %p216 = por %p214, %p215
    %p218 = scmp.ne.s32.totalorder %s201, %s217
    %p219 = scmp.eq.s32.totalorder %s20, 0
    %p220 = por %p218, %p219
    %p221 = scmp.le.s32.totalorder 1, %s14
    %p222 = scmp.lt.s32.totalorder %s14, 3
    %p223 = pnand %p221, %p222
    %p224 = pneg %p223
    // Predicated region
    $region9: #{cnn_block_forward.1} parent=5 // pred_check
      _
    $region10: #{cnn_block_forward.1} parent=5 // pred_check_branch
      %226 = sbr.rel (%p223) target = $region12
    $region11: #{cnn_block_forward.1} parent=5 // pred_region
      %s227 = ssub.s32 %s14, 1
      // Predicated region
      $region13: #{cnn_block_forward.1} parent=11 // pred_check
        %p228 = pneg %p35
      $region14: #{cnn_block_forward.1} parent=11 // pred_check_branch
        %230 = sbr.rel (%p228) target = $region16
      $region15: #{cnn_block_forward.1} parent=11 // pred_region
        _
      $region16: #{cnn_block_forward.1} parent=11 // pred_fallthru
        _
      // Predicated region
      $region17: #{cnn_block_forward.1} parent=11 // pred_check
        %p231 = pneg %p82
      $region18: #{cnn_block_forward.1} parent=11 // pred_check_branch
        %233 = sbr.rel (%p231) target = $region20
      $region19: #{cnn_block_forward.1} parent=11 // pred_region
        _
      $region20: #{cnn_block_forward.1} parent=11 // pred_fallthru
        _
      // Predicated region
      $region21: #{cnn_block_forward.1} parent=11 // pred_check
        %p234 = pneg %p103
      $region22: #{cnn_block_forward.1} parent=11 // pred_check_branch
        %236 = sbr.rel (%p234) target = $region24
      $region23: #{cnn_block_forward.1} parent=11 // pred_region
        _
      $region24: #{cnn_block_forward.1} parent=11 // pred_fallthru
        _
      // Predicated region
      $region25: #{cnn_block_forward.1} parent=11 // pred_check
        %p237 = pneg %p124
      $region26: #{cnn_block_forward.1} parent=11 // pred_check_branch
        %239 = sbr.rel (%p237) target = $region28
      $region27: #{cnn_block_forward.1} parent=11 // pred_region
        _
      $region28: #{cnn_block_forward.1} parent=11 // pred_fallthru
        _
      // Predicated region
      $region29: #{cnn_block_forward.1} parent=11 // pred_check
        %p240 = pneg %p145
      $region30: #{cnn_block_forward.1} parent=11 // pred_check_branch
        %242 = sbr.rel (%p240) target = $region32
      $region31: #{cnn_block_forward.1} parent=11 // pred_region
        _
      $region32: #{cnn_block_forward.1} parent=11 // pred_fallthru
        _
      // Predicated region
      $region33: #{cnn_block_forward.1} parent=11 // pred_check
        %p243 = pneg %p166
      $region34: #{cnn_block_forward.1} parent=11 // pred_check_branch
        %245 = sbr.rel (%p243) target = $region36
      $region35: #{cnn_block_forward.1} parent=11 // pred_region
        _
      $region36: #{cnn_block_forward.1} parent=11 // pred_fallthru
        _
      // Predicated region
      $region37: #{cnn_block_forward.1} parent=11 // pred_check
        %p246 = pneg %p187
      $region38: #{cnn_block_forward.1} parent=11 // pred_check_branch
        %248 = sbr.rel (%p246) target = $region40
      $region39: #{cnn_block_forward.1} parent=11 // pred_region
        _
      $region40: #{cnn_block_forward.1} parent=11 // pred_fallthru
        _
    $region12: #{cnn_block_forward.1} parent=5 // pred_fallthru
      _
    %p249 = scmp.lt.s32.totalorder %s14, 2
    // Predicated region
    $region41: #{cnn_block_forward.1} parent=5 // pred_check
      %p250 = pneg %p249
    $region42: #{cnn_block_forward.1} parent=5 // pred_check_branch
      %252 = sbr.rel (%p250) target = $region44
    $region43: #{cnn_block_forward.1} parent=5 // pred_region
      // Predicated region
      $region45: #{cnn_block_forward.1} parent=43 // pred_check
        %p253 = pneg %p55
      $region46: #{cnn_block_forward.1} parent=43 // pred_check_branch
        %255 = sbr.rel (%p253) target = $region48
      $region47: #{cnn_block_forward.1} parent=43 // pred_region
        %p256 = scmp.lt.s32.totalorder %s14, 1
        %s257 = scalar_select %p256, %s14, 1
        %s258 = smul.addr %s257, 4
        %s259 = smul.addr %s258, 4
        %s260 = scalar_lea.vmem %s1, %s259
      $region48: #{cnn_block_forward.1} parent=43 // pred_fallthru
        _
    $region44: #{cnn_block_forward.1} parent=5 // pred_fallthru
      _
    %p261 = scmp.le.s32.totalorder 1, %s14
    %p262 = scmp.lt.s32.totalorder %s14, 3
    %p263 = pnand %p261, %p262
    %p264 = pneg %p263
    // Predicated region
    $region49: #{cnn_block_forward.1} parent=5 // pred_check
      _
    $region50: #{cnn_block_forward.1} parent=5 // pred_check_branch
      %266 = sbr.rel (%p263) target = $region52
    $region51: #{cnn_block_forward.1} parent=5 // pred_region
      %s267 = ssub.s32 %s14, 1
      %p268 = pneg %p35
      %p269 = pneg %p32
      %p270 = scmp.lt.s32.totalorder %s19, 1
      %s271 = scalar_select %p270, %s19, 1
      %s272 = smul.addr %s271, 4
      %s273 = smul.addr %s272, 4
      %s274 = scalar_lea.vmem %s1, %s273
      %p275 = pneg %p61
      %p276 = pneg %p58
      %p277 = pneg %p82
      %p278 = pneg %p79
      %p279 = pneg %p103
      %p280 = pneg %p100
      %p281 = pneg %p124
      %p282 = pneg %p121
      %p283 = pneg %p145
      %p284 = pneg %p142
      %p285 = pneg %p166
      %p286 = pneg %p163
      %p287 = pneg %p187
      %p288 = pneg %p184
      %p289 = pneg %p213
      %p290 = pneg %p210
      %p291 = scmp.lt.s32.totalorder %s19, 1
      %s292 = scalar_select %p291, %s19, 1
      %s293 = smul.addr %s292, 3
      %s294 = smul.addr %s293, 8
      %s295 = scalar_lea.vmem %s8, %s294
      %p296 = scmp.lt.s32.totalorder %s19, 1
      %s297 = scalar_select %p296, %s19, 1
      %s298 = smul.addr %s297, 4
      %s299 = smul.addr %s298, 4
      %s300 = scalar_lea.vmem %s1, %s299
      %p301 = scmp.lt.s32.totalorder %s19, 1
      %s302 = scalar_select %p301, %s19, 1
      %s303 = smul.addr %s302, 3
      %s304 = smul.addr %s303, 8
      %s305 = scalar_lea.vmem %s8, %s304
      %v307 = vld [vmem:[%s0] sm:$0x7]
      %v308 = vld [vmem:[%s300] sm:$0xff]
      %v309 = vld [vmem:[%s300 + $0x8] sm:$0xff]
      %v310 = vld [vmem:[%s2] sm:$0xf]
      %v311 = vld [vmem:[%s2 + $0x4] sm:$0xf]
      %v312 = vld [vmem:[%s2 + $0x8] sm:$0xf]
      %s313 = scalar_lea.vmem %s2, 12
      %v314 = vld [vmem:[%s313] sm:$0xf]
      %v315 = vld [vmem:[%s313 + $0x4] sm:$0xf]
      %v316 = vld [vmem:[%s313 + $0x8] sm:$0xf]
      %v320 = vunpack.c.l.b16 %v314
      %v321 = vunpack.c.l.b16 %v315
      %v322 = vunpack.c.l.b16 %v316
      %v323 = vpack.c.b16 %v321, %v320
      %v324 = vpack.c.b16 %v322, %v322
      %v327 = vunpack.c.l.b16 %v308
      %v328 = vunpack.c.h.b16 %v308
      %v329 = vunpack.c.l.b16 %v309
      %v330 = vunpack.c.h.b16 %v309
      %v331 = vpack.c.b16 %v327, %v327
      %v332 = vpack.c.b16 %v328, %v328
      %v333 = vpack.c.b16 %v329, %v329
      %v334 = vpack.c.b16 %v330, %v330
      %335 = vrot.lane.b32.xlu0 %v331, 127
      %v336 = vpop.permute.xlu0 %335
      %337 = vrot.lane.b32.xlu0 %v332, 127
      %v338 = vpop.permute.xlu0 %337
      %339 = vrot.lane.b32.xlu0 %v333, 127
      %v340 = vpop.permute.xlu0 %339
      %341 = vrot.lane.b32.xlu0 %v334, 127
      %v342 = vpop.permute.xlu0 %341
      %vm343 = vcmask 1039360
      %v344 = vsel %vm343, %v336, %v338
      %v345 = vsel %vm343, %v338, %v340
      %v346 = vsel %vm343, %v340, %v342
      %vm347 = vcmask 64512
      %v349 = vsel %vm347, %v323, 0
      %v352 = vsel %vm347, %v324, 0
      %vm354 = vcmask 1043456
      %v356 = vsel %vm354, %v344, 0
      %v359 = vsel %vm354, %v345, 0
      %v362 = vsel %vm354, %v346, 0
      %364 = vmatprep.subr.bf16.mxu0 0
      %365 = vmatpush1.bf16.msra.mxu0 0
      %366 = vmatprep.subr.bf16.mxu0 0
      %367 = vmatpush1.bf16.msra.mxu0 0
      %368 = vmatprep.subr.bf16.mxu0 0
      %369 = vmatpush1.bf16.msra.mxu0 0
      %370 = vmatprep.subr.bf16.mxu0 0
      %371 = vmatpush1.bf16.msra.mxu0 0
      %372 = vmatprep.subr.bf16.mxu0 0
      %373 = vmatpush1.bf16.msra.mxu0 0
      %374 = vmatprep.subr.bf16.mxu0 0
      %375 = vmatpush1.bf16.msra.mxu0 0
      %376 = vmatprep.subr.bf16.mxu0 0
      %377 = vmatpush1.bf16.msra.mxu0 0
      %378 = vmatprep.subr.bf16.mxu0 %v359
      %379 = vmatpush1.bf16.msra.mxu0 %v356
      %380 = vmatprep.subr.bf16.mxu0 0
      %381 = vmatpush2.bf16.msra.mxu0 0
      %382 = vmatprep.subr.bf16.mxu0 0
      %383 = vmatpush2.bf16.msra.mxu0 0
      %384 = vmatprep.subr.bf16.mxu0 0
      %385 = vmatpush2.bf16.msra.mxu0 0
      %386 = vmatprep.subr.bf16.mxu0 0
      %387 = vmatpush2.bf16.msra.mxu0 0
      %388 = vmatprep.subr.bf16.mxu0 0
      %389 = vmatpush2.bf16.msra.mxu0 0
      %390 = vmatprep.subr.bf16.mxu0 0
      %391 = vmatpush2.bf16.msra.mxu0 0
      %392 = vmatprep.subr.bf16.mxu0 0
      %393 = vmatpush2.bf16.msra.mxu0 0
      %394 = vmatprep.subr.bf16.mxu0 0
      %395 = vmatpush2.bf16.msra.mxu0 0
      %396 = vmatprep.mubr.bf16.mxu0 0
      %397 = vmatmul.mubr.bf16.gmra.mxu0 %v349
      %v398 = vpop.f32.mrf.mxu0
      %v399 = vadd.f32 0.0, %v398
      %v400 = vpop.f32.mrf.mxu0
      %v401 = vadd.f32 0.0, %v400
      %v402 = vpop.f32.mrf.mxu0
      %v403 = vadd.f32 0.0, %v402
      %v404 = vpop.f32.mrf.mxu0
      %v405 = vadd.f32 0.0, %v404
      %406 = vmatprep.mubr.bf16.mxu0 0
      %407 = vmatmul.mubr.bf16.gmra.mxu0 %v352
      %v408 = vpop.f32.mrf.mxu0
      %v409 = vadd.f32 0.0, %v408
      %v410 = vpop.f32.mrf.mxu0
      %v411 = vadd.f32 0.0, %v410
      %v412 = vpop.f32.mrf.mxu0
      %v413 = vpop.f32.mrf.mxu0
      %414 = vdwg.mxu0
      %415 = vmatprep.subr.bf16.mxu0 0
      %416 = vmatpush1.bf16.msra.mxu0 0
      %417 = vmatprep.subr.bf16.mxu0 0
      %418 = vmatpush1.bf16.msra.mxu0 0
      %419 = vmatprep.subr.bf16.mxu0 0
      %420 = vmatpush1.bf16.msra.mxu0 0
      %421 = vmatprep.subr.bf16.mxu0 0
      %422 = vmatpush1.bf16.msra.mxu0 0
      %423 = vmatprep.subr.bf16.mxu0 0
      %424 = vmatpush1.bf16.msra.mxu0 0
      %425 = vmatprep.subr.bf16.mxu0 0
      %426 = vmatpush1.bf16.msra.mxu0 0
      %427 = vmatprep.subr.bf16.mxu0 0
      %428 = vmatpush1.bf16.msra.mxu0 0
      %429 = vmatprep.subr.bf16.mxu0 0
      %430 = vmatpush1.bf16.msra.mxu0 %v362
      %431 = vmatprep.subr.bf16.mxu0 0
      %432 = vmatpush2.bf16.msra.mxu0 0
      %433 = vmatprep.subr.bf16.mxu0 0
      %434 = vmatpush2.bf16.msra.mxu0 0
      %435 = vmatprep.subr.bf16.mxu0 0
      %436 = vmatpush2.bf16.msra.mxu0 0
      %437 = vmatprep.subr.bf16.mxu0 0
      %438 = vmatpush2.bf16.msra.mxu0 0
      %439 = vmatprep.subr.bf16.mxu0 0
      %440 = vmatpush2.bf16.msra.mxu0 0
      %441 = vmatprep.subr.bf16.mxu0 0
      %442 = vmatpush2.bf16.msra.mxu0 0
      %443 = vmatprep.subr.bf16.mxu0 0
      %444 = vmatpush2.bf16.msra.mxu0 0
      %445 = vmatprep.subr.bf16.mxu0 0
      %446 = vmatpush2.bf16.msra.mxu0 0
      %447 = vmatprep.mubr.bf16.mxu0 0
      %448 = vmatmul.mubr.bf16.gmra.mxu0 %v349
      %v449 = vpop.f32.mrf.mxu0
      %v450 = vadd.f32 0.0, %v449
      %v451 = vpop.f32.mrf.mxu0
      %v452 = vpop.f32.mrf.mxu0
      %v453 = vadd.f32 0.0, %v452
      %v454 = vpop.f32.mrf.mxu0
      %455 = vmatprep.mubr.bf16.mxu0 0
      %456 = vmatmul.mubr.bf16.gmra.mxu0 %v352
      %v457 = vpop.f32.mrf.mxu0
      %v458 = vadd.f32 0.0, %v457
      %v459 = vpop.f32.mrf.mxu0
      %v460 = vpop.f32.mrf.mxu0
      %v461 = vpop.f32.mrf.mxu0
      %462 = vdwg.mxu0
      %v466 = vunpack.c.l.b16 %v310
      %v467 = vunpack.c.l.b16 %v311
      %v468 = vunpack.c.l.b16 %v312
      %v469 = vpack.c.b16 %v467, %v466
      %v470 = vpack.c.b16 %v468, %v468
      %v472 = vsel %vm347, %v469, 0
      %v475 = vsel %vm347, %v470, 0
      %v478 = vsel %vm354, %v331, 0
      %v481 = vsel %vm354, %v332, 0
      %v484 = vsel %vm354, %v333, 0
      %486 = vmatprep.subr.bf16.mxu0 0
      %487 = vmatpush1.bf16.msra.mxu0 0
      %488 = vmatprep.subr.bf16.mxu0 0
      %489 = vmatpush1.bf16.msra.mxu0 0
      %490 = vmatprep.subr.bf16.mxu0 0
      %491 = vmatpush1.bf16.msra.mxu0 0
      %492 = vmatprep.subr.bf16.mxu0 0
      %493 = vmatpush1.bf16.msra.mxu0 0
      %494 = vmatprep.subr.bf16.mxu0 0
      %495 = vmatpush1.bf16.msra.mxu0 0
      %496 = vmatprep.subr.bf16.mxu0 0
      %497 = vmatpush1.bf16.msra.mxu0 0
      %498 = vmatprep.subr.bf16.mxu0 0
      %499 = vmatpush1.bf16.msra.mxu0 0
      %500 = vmatprep.subr.bf16.mxu0 %v481
      %501 = vmatpush1.bf16.msra.mxu0 %v478
      %502 = vmatprep.subr.bf16.mxu0 0
      %503 = vmatpush2.bf16.msra.mxu0 0
      %504 = vmatprep.subr.bf16.mxu0 0
      %505 = vmatpush2.bf16.msra.mxu0 0
      %506 = vmatprep.subr.bf16.mxu0 0
      %507 = vmatpush2.bf16.msra.mxu0 0
      %508 = vmatprep.subr.bf16.mxu0 0
      %509 = vmatpush2.bf16.msra.mxu0 0
      %510 = vmatprep.subr.bf16.mxu0 0
      %511 = vmatpush2.bf16.msra.mxu0 0
      %512 = vmatprep.subr.bf16.mxu0 0
      %513 = vmatpush2.bf16.msra.mxu0 0
      %514 = vmatprep.subr.bf16.mxu0 0
      %515 = vmatpush2.bf16.msra.mxu0 0
      %516 = vmatprep.subr.bf16.mxu0 0
      %517 = vmatpush2.bf16.msra.mxu0 0
      %518 = vmatprep.mubr.bf16.mxu0 0
      %519 = vmatmul.mubr.bf16.gmra.mxu0 %v472
      %v520 = vpop.f32.mrf.mxu0
      %v521 = vadd.f32 %v399, %v520
      %v522 = vpop.f32.mrf.mxu0
      %v523 = vadd.f32 %v401, %v522
      %v524 = vpop.f32.mrf.mxu0
      %v525 = vadd.f32 %v403, %v524
      %v526 = vpop.f32.mrf.mxu0
      %v527 = vadd.f32 %v405, %v526
      %528 = vmatprep.mubr.bf16.mxu0 0
      %529 = vmatmul.mubr.bf16.gmra.mxu0 %v475
      %v530 = vpop.f32.mrf.mxu0
      %v531 = vadd.f32 %v409, %v530
      %v532 = vpop.f32.mrf.mxu0
      %v533 = vadd.f32 %v411, %v532
      %v534 = vpop.f32.mrf.mxu0
      %v535 = vpop.f32.mrf.mxu0
      %536 = vdwg.mxu0
      %537 = vmatprep.subr.bf16.mxu0 0
      %538 = vmatpush1.bf16.msra.mxu0 0
      %539 = vmatprep.subr.bf16.mxu0 0
      %540 = vmatpush1.bf16.msra.mxu0 0
      %541 = vmatprep.subr.bf16.mxu0 0
      %542 = vmatpush1.bf16.msra.mxu0 0
      %543 = vmatprep.subr.bf16.mxu0 0
      %544 = vmatpush1.bf16.msra.mxu0 0
      %545 = vmatprep.subr.bf16.mxu0 0
      %546 = vmatpush1.bf16.msra.mxu0 0
      %547 = vmatprep.subr.bf16.mxu0 0
      %548 = vmatpush1.bf16.msra.mxu0 0
      %549 = vmatprep.subr.bf16.mxu0 0
      %550 = vmatpush1.bf16.msra.mxu0 0
      %551 = vmatprep.subr.bf16.mxu0 0
      %552 = vmatpush1.bf16.msra.mxu0 %v484
      %553 = vmatprep.subr.bf16.mxu0 0
      %554 = vmatpush2.bf16.msra.mxu0 0
      %555 = vmatprep.subr.bf16.mxu0 0
      %556 = vmatpush2.bf16.msra.mxu0 0
      %557 = vmatprep.subr.bf16.mxu0 0
      %558 = vmatpush2.bf16.msra.mxu0 0
      %559 = vmatprep.subr.bf16.mxu0 0
      %560 = vmatpush2.bf16.msra.mxu0 0
      %561 = vmatprep.subr.bf16.mxu0 0
      %562 = vmatpush2.bf16.msra.mxu0 0
      %563 = vmatprep.subr.bf16.mxu0 0
      %564 = vmatpush2.bf16.msra.mxu0 0
      %565 = vmatprep.subr.bf16.mxu0 0
      %566 = vmatpush2.bf16.msra.mxu0 0
      %567 = vmatprep.subr.bf16.mxu0 0
      %568 = vmatpush2.bf16.msra.mxu0 0
      %569 = vmatprep.mubr.bf16.mxu0 0
      %570 = vmatmul.mubr.bf16.gmra.mxu0 %v472
      %v571 = vpop.f32.mrf.mxu0
      %v572 = vadd.f32 %v450, %v571
      %v573 = vpop.f32.mrf.mxu0
      %v574 = vpop.f32.mrf.mxu0
      %v575 = vadd.f32 %v453, %v574
      %v576 = vpop.f32.mrf.mxu0
      %577 = vmatprep.mubr.bf16.mxu0 0
      %578 = vmatmul.mubr.bf16.gmra.mxu0 %v475
      %v579 = vpop.f32.mrf.mxu0
      %v580 = vadd.f32 %v458, %v579
      %v581 = vpop.f32.mrf.mxu0
      %v582 = vpop.f32.mrf.mxu0
      %v583 = vpop.f32.mrf.mxu0
      %584 = vdwg.mxu0
      %s585 = scalar_lea.vmem %s2, 24
      %v586 = vld [vmem:[%s585] sm:$0xf]
      %v587 = vld [vmem:[%s585 + $0x4] sm:$0xf]
      %v588 = vld [vmem:[%s585 + $0x8] sm:$0xf]
      %v592 = vunpack.c.l.b16 %v586
      %v593 = vunpack.c.l.b16 %v587
      %v594 = vunpack.c.l.b16 %v588
      %v595 = vpack.c.b16 %v593, %v592
      %v596 = vpack.c.b16 %v594, %v594
      %597 = vrot.lane.b32.xlu0 %v331, 126
      %v598 = vpop.permute.xlu0 %597
      %599 = vrot.lane.b32.xlu0 %v332, 126
      %v600 = vpop.permute.xlu0 %599
      %601 = vrot.lane.b32.xlu0 %v333, 126
      %v602 = vpop.permute.xlu0 %601
      %603 = vrot.lane.b32.xlu0 %v334, 126
      %v604 = vpop.permute.xlu0 %603
      %vm605 = vcmask 1031168
      %v606 = vsel %vm605, %v598, %v600
      %v607 = vsel %vm605, %v600, %v602
      %v608 = vsel %vm605, %v602, %v604
      %v610 = vsel %vm347, %v595, 0
      %v613 = vsel %vm347, %v596, 0
      %v616 = vsel %vm354, %v606, 0
      %v619 = vsel %vm354, %v607, 0
      %v622 = vsel %vm354, %v608, 0
      %624 = vmatprep.subr.bf16.mxu0 0
      %625 = vmatpush1.bf16.msra.mxu0 0
      %626 = vmatprep.subr.bf16.mxu0 0
      %627 = vmatpush1.bf16.msra.mxu0 0
      %628 = vmatprep.subr.bf16.mxu0 0
      %629 = vmatpush1.bf16.msra.mxu0 0
      %630 = vmatprep.subr.bf16.mxu0 0
      %631 = vmatpush1.bf16.msra.mxu0 0
      %632 = vmatprep.subr.bf16.mxu0 0
      %633 = vmatpush1.bf16.msra.mxu0 0
      %634 = vmatprep.subr.bf16.mxu0 0
      %635 = vmatpush1.bf16.msra.mxu0 0
      %636 = vmatprep.subr.bf16.mxu0 0
      %637 = vmatpush1.bf16.msra.mxu0 0
      %638 = vmatprep.subr.bf16.mxu0 %v619
      %639 = vmatpush1.bf16.msra.mxu0 %v616
      %640 = vmatprep.subr.bf16.mxu0 0
      %641 = vmatpush2.bf16.msra.mxu0 0
      %642 = vmatprep.subr.bf16.mxu0 0
      %643 = vmatpush2.bf16.msra.mxu0 0
      %644 = vmatprep.subr.bf16.mxu0 0
      %645 = vmatpush2.bf16.msra.mxu0 0
      %646 = vmatprep.subr.bf16.mxu0 0
      %647 = vmatpush2.bf16.msra.mxu0 0
      %648 = vmatprep.subr.bf16.mxu0 0
      %649 = vmatpush2.bf16.msra.mxu0 0
      %650 = vmatprep.subr.bf16.mxu0 0
      %651 = vmatpush2.bf16.msra.mxu0 0
      %652 = vmatprep.subr.bf16.mxu0 0
      %653 = vmatpush2.bf16.msra.mxu0 0
      %654 = vmatprep.subr.bf16.mxu0 0
      %655 = vmatpush2.bf16.msra.mxu0 0
      %656 = vmatprep.mubr.bf16.mxu0 0
      %657 = vmatmul.mubr.bf16.gmra.mxu0 %v610
      %v658 = vpop.f32.mrf.mxu0
      %v659 = vadd.f32 0.0, %v658
      %v660 = vpop.f32.mrf.mxu0
      %v661 = vadd.f32 0.0, %v660
      %v662 = vpop.f32.mrf.mxu0
      %v663 = vadd.f32 0.0, %v662
      %v664 = vpop.f32.mrf.mxu0
      %v665 = vadd.f32 0.0, %v664
      %666 = vmatprep.mubr.bf16.mxu0 0
      %667 = vmatmul.mubr.bf16.gmra.mxu0 %v613
      %v668 = vpop.f32.mrf.mxu0
      %v669 = vadd.f32 0.0, %v668
      %v670 = vpop.f32.mrf.mxu0
      %v671 = vadd.f32 0.0, %v670
      %v672 = vpop.f32.mrf.mxu0
      %v673 = vpop.f32.mrf.mxu0
      %674 = vdwg.mxu0
      %675 = vmatprep.subr.bf16.mxu0 0
      %676 = vmatpush1.bf16.msra.mxu0 0
      %677 = vmatprep.subr.bf16.mxu0 0
      %678 = vmatpush1.bf16.msra.mxu0 0
      %679 = vmatprep.subr.bf16.mxu0 0
      %680 = vmatpush1.bf16.msra.mxu0 0
      %681 = vmatprep.subr.bf16.mxu0 0
      %682 = vmatpush1.bf16.msra.mxu0 0
      %683 = vmatprep.subr.bf16.mxu0 0
      %684 = vmatpush1.bf16.msra.mxu0 0
      %685 = vmatprep.subr.bf16.mxu0 0
      %686 = vmatpush1.bf16.msra.mxu0 0
      %687 = vmatprep.subr.bf16.mxu0 0
      %688 = vmatpush1.bf16.msra.mxu0 0
      %689 = vmatprep.subr.bf16.mxu0 0
      %690 = vmatpush1.bf16.msra.mxu0 %v622
      %691 = vmatprep.subr.bf16.mxu0 0
      %692 = vmatpush2.bf16.msra.mxu0 0
      %693 = vmatprep.subr.bf16.mxu0 0
      %694 = vmatpush2.bf16.msra.mxu0 0
      %695 = vmatprep.subr.bf16.mxu0 0
      %696 = vmatpush2.bf16.msra.mxu0 0
      %697 = vmatprep.subr.bf16.mxu0 0
      %698 = vmatpush2.bf16.msra.mxu0 0
      %699 = vmatprep.subr.bf16.mxu0 0
      %700 = vmatpush2.bf16.msra.mxu0 0
      %701 = vmatprep.subr.bf16.mxu0 0
      %702 = vmatpush2.bf16.msra.mxu0 0
      %703 = vmatprep.subr.bf16.mxu0 0
      %704 = vmatpush2.bf16.msra.mxu0 0
      %705 = vmatprep.subr.bf16.mxu0 0
      %706 = vmatpush2.bf16.msra.mxu0 0
      %707 = vmatprep.mubr.bf16.mxu0 0
      %708 = vmatmul.mubr.bf16.gmra.mxu0 %v610
      %v709 = vpop.f32.mrf.mxu0
      %v710 = vadd.f32 0.0, %v709
      %v711 = vpop.f32.mrf.mxu0
      %v712 = vpop.f32.mrf.mxu0
      %v713 = vadd.f32 0.0, %v712
      %v714 = vpop.f32.mrf.mxu0
      %715 = vmatprep.mubr.bf16.mxu0 0
      %716 = vmatmul.mubr.bf16.gmra.mxu0 %v613
      %v717 = vpop.f32.mrf.mxu0
      %v718 = vadd.f32 0.0, %v717
      %v719 = vpop.f32.mrf.mxu0
      %v720 = vpop.f32.mrf.mxu0
      %v721 = vpop.f32.mrf.mxu0
      %722 = vdwg.mxu0
      %v723 = vadd.f32 %v521, %v659
      %v724 = vadd.f32 %v523, %v661
      %v725 = vadd.f32 %v572, %v710
      %v726 = vadd.f32 %v525, %v663
      %v727 = vadd.f32 %v527, %v665
      %v728 = vadd.f32 %v575, %v713
      %v729 = vadd.f32 %v531, %v669
      %v730 = vadd.f32 %v533, %v671
      %v731 = vadd.f32 %v580, %v718
      %s732 = scalar_lea.vmem %s2, 36
      %v733 = vld [vmem:[%s732] sm:$0xf]
      %v734 = vld [vmem:[%s732 + $0x4] sm:$0xf]
      %v735 = vld [vmem:[%s732 + $0x8] sm:$0xf]
      %v739 = vunpack.c.l.b16 %v733
      %v740 = vunpack.c.l.b16 %v734
      %v741 = vunpack.c.l.b16 %v735
      %v742 = vpack.c.b16 %v740, %v739
      %v743 = vpack.c.b16 %v741, %v741
      %744 = vrot.lane.b32.xlu0 %v331, 110
      %v745 = vpop.permute.xlu0 %744
      %746 = vrot.lane.b32.xlu0 %v332, 110
      %v747 = vpop.permute.xlu0 %746
      %748 = vrot.lane.b32.xlu0 %v333, 110
      %v749 = vpop.permute.xlu0 %748
      %750 = vrot.lane.b32.xlu0 %v334, 110
      %v751 = vpop.permute.xlu0 %750
      %vm752 = vcmask 900096
      %v753 = vsel %vm752, %v745, %v747
      %v754 = vsel %vm752, %v747, %v749
      %v755 = vsel %vm752, %v749, %v751
      %v757 = vsel %vm347, %v742, 0
      %v760 = vsel %vm347, %v743, 0
      %v763 = vsel %vm354, %v753, 0
      %v766 = vsel %vm354, %v754, 0
      %v769 = vsel %vm354, %v755, 0
      %771 = vmatprep.subr.bf16.mxu0 0
      %772 = vmatpush1.bf16.msra.mxu0 0
      %773 = vmatprep.subr.bf16.mxu0 0
      %774 = vmatpush1.bf16.msra.mxu0 0
      %775 = vmatprep.subr.bf16.mxu0 0
      %776 = vmatpush1.bf16.msra.mxu0 0
      %777 = vmatprep.subr.bf16.mxu0 0
      %778 = vmatpush1.bf16.msra.mxu0 0
      %779 = vmatprep.subr.bf16.mxu0 0
      %780 = vmatpush1.bf16.msra.mxu0 0
      %781 = vmatprep.subr.bf16.mxu0 0
      %782 = vmatpush1.bf16.msra.mxu0 0
      %783 = vmatprep.subr.bf16.mxu0 0
      %784 = vmatpush1.bf16.msra.mxu0 0
      %785 = vmatprep.subr.bf16.mxu0 %v766
      %786 = vmatpush1.bf16.msra.mxu0 %v763
      %787 = vmatprep.subr.bf16.mxu0 0
      %788 = vmatpush2.bf16.msra.mxu0 0
      %789 = vmatprep.subr.bf16.mxu0 0
      %790 = vmatpush2.bf16.msra.mxu0 0
      %791 = vmatprep.subr.bf16.mxu0 0
      %792 = vmatpush2.bf16.msra.mxu0 0
      %793 = vmatprep.subr.bf16.mxu0 0
      %794 = vmatpush2.bf16.msra.mxu0 0
      %795 = vmatprep.subr.bf16.mxu0 0
      %796 = vmatpush2.bf16.msra.mxu0 0
      %797 = vmatprep.subr.bf16.mxu0 0
      %798 = vmatpush2.bf16.msra.mxu0 0
      %799 = vmatprep.subr.bf16.mxu0 0
      %800 = vmatpush2.bf16.msra.mxu0 0
      %801 = vmatprep.subr.bf16.mxu0 0
      %802 = vmatpush2.bf16.msra.mxu0 0
      %803 = vmatprep.mubr.bf16.mxu0 0
      %804 = vmatmul.mubr.bf16.gmra.mxu0 %v757
      %v805 = vpop.f32.mrf.mxu0
      %v806 = vadd.f32 0.0, %v805
      %v807 = vpop.f32.mrf.mxu0
      %v808 = vadd.f32 0.0, %v807
      %v809 = vpop.f32.mrf.mxu0
      %v810 = vadd.f32 0.0, %v809
      %v811 = vpop.f32.mrf.mxu0
      %v812 = vadd.f32 0.0, %v811
      %813 = vmatprep.mubr.bf16.mxu0 0
      %814 = vmatmul.mubr.bf16.gmra.mxu0 %v760
      %v815 = vpop.f32.mrf.mxu0
      %v816 = vadd.f32 0.0, %v815
      %v817 = vpop.f32.mrf.mxu0
      %v818 = vadd.f32 0.0, %v817
      %v819 = vpop.f32.mrf.mxu0
      %v820 = vpop.f32.mrf.mxu0
      %821 = vdwg.mxu0
      %822 = vmatprep.subr.bf16.mxu0 0
      %823 = vmatpush1.bf16.msra.mxu0 0
      %824 = vmatprep.subr.bf16.mxu0 0
      %825 = vmatpush1.bf16.msra.mxu0 0
      %826 = vmatprep.subr.bf16.mxu0 0
      %827 = vmatpush1.bf16.msra.mxu0 0
      %828 = vmatprep.subr.bf16.mxu0 0
      %829 = vmatpush1.bf16.msra.mxu0 0
      %830 = vmatprep.subr.bf16.mxu0 0
      %831 = vmatpush1.bf16.msra.mxu0 0
      %832 = vmatprep.subr.bf16.mxu0 0
      %833 = vmatpush1.bf16.msra.mxu0 0
      %834 = vmatprep.subr.bf16.mxu0 0
      %835 = vmatpush1.bf16.msra.mxu0 0
      %836 = vmatprep.subr.bf16.mxu0 0
      %837 = vmatpush1.bf16.msra.mxu0 %v769
      %838 = vmatprep.subr.bf16.mxu0 0
      %839 = vmatpush2.bf16.msra.mxu0 0
      %840 = vmatprep.subr.bf16.mxu0 0
      %841 = vmatpush2.bf16.msra.mxu0 0
      %842 = vmatprep.subr.bf16.mxu0 0
      %843 = vmatpush2.bf16.msra.mxu0 0
      %844 = vmatprep.subr.bf16.mxu0 0
      %845 = vmatpush2.bf16.msra.mxu0 0
      %846 = vmatprep.subr.bf16.mxu0 0
      %847 = vmatpush2.bf16.msra.mxu0 0
      %848 = vmatprep.subr.bf16.mxu0 0
      %849 = vmatpush2.bf16.msra.mxu0 0
      %850 = vmatprep.subr.bf16.mxu0 0
      %851 = vmatpush2.bf16.msra.mxu0 0
      %852 = vmatprep.subr.bf16.mxu0 0
      %853 = vmatpush2.bf16.msra.mxu0 0
      %854 = vmatprep.mubr.bf16.mxu0 0
      %855 = vmatmul.mubr.bf16.gmra.mxu0 %v757
      %v856 = vpop.f32.mrf.mxu0
      %v857 = vadd.f32 0.0, %v856
      %v858 = vpop.f32.mrf.mxu0
      %v859 = vpop.f32.mrf.mxu0
      %v860 = vadd.f32 0.0, %v859
      %v861 = vpop.f32.mrf.mxu0
      %862 = vmatprep.mubr.bf16.mxu0 0
      %863 = vmatmul.mubr.bf16.gmra.mxu0 %v760
      %v864 = vpop.f32.mrf.mxu0
      %v865 = vadd.f32 0.0, %v864
      %v866 = vpop.f32.mrf.mxu0
      %v867 = vpop.f32.mrf.mxu0
      %v868 = vpop.f32.mrf.mxu0
      %869 = vdwg.mxu0
      %v870 = vadd.f32 %v723, %v806
      %v871 = vadd.f32 %v724, %v808
      %v872 = vadd.f32 %v725, %v857
      %v873 = vadd.f32 %v726, %v810
      %v874 = vadd.f32 %v727, %v812
      %v875 = vadd.f32 %v728, %v860
      %v876 = vadd.f32 %v729, %v816
      %v877 = vadd.f32 %v730, %v818
      %v878 = vadd.f32 %v731, %v865
      %s879 = scalar_lea.vmem %s2, 48
      %v880 = vld [vmem:[%s879] sm:$0xf]
      %v881 = vld [vmem:[%s879 + $0x4] sm:$0xf]
      %v882 = vld [vmem:[%s879 + $0x8] sm:$0xf]
      %v886 = vunpack.c.l.b16 %v880
      %v887 = vunpack.c.l.b16 %v881
      %v888 = vunpack.c.l.b16 %v882
      %v889 = vpack.c.b16 %v887, %v886
      %v890 = vpack.c.b16 %v888, %v888
      %891 = vrot.lane.b32.xlu0 %v331, 109
      %v892 = vpop.permute.xlu0 %891
      %893 = vrot.lane.b32.xlu0 %v332, 109
      %v894 = vpop.permute.xlu0 %893
      %895 = vrot.lane.b32.xlu0 %v333, 109
      %v896 = vpop.permute.xlu0 %895
      %897 = vrot.lane.b32.xlu0 %v334, 109
      %v898 = vpop.permute.xlu0 %897
      %vm899 = vcmask 891904
      %v900 = vsel %vm899, %v892, %v894
      %v901 = vsel %vm899, %v894, %v896
      %v902 = vsel %vm899, %v896, %v898
      %v904 = vsel %vm347, %v889, 0
      %v907 = vsel %vm347, %v890, 0
      %v910 = vsel %vm354, %v900, 0
      %v913 = vsel %vm354, %v901, 0
      %v916 = vsel %vm354, %v902, 0
      %918 = vmatprep.subr.bf16.mxu0 0
      %919 = vmatpush1.bf16.msra.mxu0 0
      %920 = vmatprep.subr.bf16.mxu0 0
      %921 = vmatpush1.bf16.msra.mxu0 0
      %922 = vmatprep.subr.bf16.mxu0 0
      %923 = vmatpush1.bf16.msra.mxu0 0
      %924 = vmatprep.subr.bf16.mxu0 0
      %925 = vmatpush1.bf16.msra.mxu0 0
      %926 = vmatprep.subr.bf16.mxu0 0
      %927 = vmatpush1.bf16.msra.mxu0 0
      %928 = vmatprep.subr.bf16.mxu0 0
      %929 = vmatpush1.bf16.msra.mxu0 0
      %930 = vmatprep.subr.bf16.mxu0 0
      %931 = vmatpush1.bf16.msra.mxu0 0
      %932 = vmatprep.subr.bf16.mxu0 %v913
      %933 = vmatpush1.bf16.msra.mxu0 %v910
      %934 = vmatprep.subr.bf16.mxu0 0
      %935 = vmatpush2.bf16.msra.mxu0 0
      %936 = vmatprep.subr.bf16.mxu0 0
      %937 = vmatpush2.bf16.msra.mxu0 0
      %938 = vmatprep.subr.bf16.mxu0 0
      %939 = vmatpush2.bf16.msra.mxu0 0
      %940 = vmatprep.subr.bf16.mxu0 0
      %941 = vmatpush2.bf16.msra.mxu0 0
      %942 = vmatprep.subr.bf16.mxu0 0
      %943 = vmatpush2.bf16.msra.mxu0 0
      %944 = vmatprep.subr.bf16.mxu0 0
      %945 = vmatpush2.bf16.msra.mxu0 0
      %946 = vmatprep.subr.bf16.mxu0 0
      %947 = vmatpush2.bf16.msra.mxu0 0
      %948 = vmatprep.subr.bf16.mxu0 0
      %949 = vmatpush2.bf16.msra.mxu0 0
      %950 = vmatprep.mubr.bf16.mxu0 0
      %951 = vmatmul.mubr.bf16.gmra.mxu0 %v904
      %v952 = vpop.f32.mrf.mxu0
      %v953 = vadd.f32 0.0, %v952
      %v954 = vpop.f32.mrf.mxu0
      %v955 = vadd.f32 0.0, %v954
      %v956 = vpop.f32.mrf.mxu0
      %v957 = vadd.f32 0.0, %v956
      %v958 = vpop.f32.mrf.mxu0
      %v959 = vadd.f32 0.0, %v958
      %960 = vmatprep.mubr.bf16.mxu0 0
      %961 = vmatmul.mubr.bf16.gmra.mxu0 %v907
      %v962 = vpop.f32.mrf.mxu0
      %v963 = vadd.f32 0.0, %v962
      %v964 = vpop.f32.mrf.mxu0
      %v965 = vadd.f32 0.0, %v964
      %v966 = vpop.f32.mrf.mxu0
      %v967 = vpop.f32.mrf.mxu0
      %968 = vdwg.mxu0
      %969 = vmatprep.subr.bf16.mxu0 0
      %970 = vmatpush1.bf16.msra.mxu0 0
      %971 = vmatprep.subr.bf16.mxu0 0
      %972 = vmatpush1.bf16.msra.mxu0 0
      %973 = vmatprep.subr.bf16.mxu0 0
      %974 = vmatpush1.bf16.msra.mxu0 0
      %975 = vmatprep.subr.bf16.mxu0 0
      %976 = vmatpush1.bf16.msra.mxu0 0
      %977 = vmatprep.subr.bf16.mxu0 0
      %978 = vmatpush1.bf16.msra.mxu0 0
      %979 = vmatprep.subr.bf16.mxu0 0
      %980 = vmatpush1.bf16.msra.mxu0 0
      %981 = vmatprep.subr.bf16.mxu0 0
      %982 = vmatpush1.bf16.msra.mxu0 0
      %983 = vmatprep.subr.bf16.mxu0 0
      %984 = vmatpush1.bf16.msra.mxu0 %v916
      %985 = vmatprep.subr.bf16.mxu0 0
      %986 = vmatpush2.bf16.msra.mxu0 0
      %987 = vmatprep.subr.bf16.mxu0 0
      %988 = vmatpush2.bf16.msra.mxu0 0
      %989 = vmatprep.subr.bf16.mxu0 0
      %990 = vmatpush2.bf16.msra.mxu0 0
      %991 = vmatprep.subr.bf16.mxu0 0
      %992 = vmatpush2.bf16.msra.mxu0 0
      %993 = vmatprep.subr.bf16.mxu0 0
      %994 = vmatpush2.bf16.msra.mxu0 0
      %995 = vmatprep.subr.bf16.mxu0 0
      %996 = vmatpush2.bf16.msra.mxu0 0
      %997 = vmatprep.subr.bf16.mxu0 0
      %998 = vmatpush2.bf16.msra.mxu0 0
      %999 = vmatprep.subr.bf16.mxu0 0
      %1000 = vmatpush2.bf16.msra.mxu0 0
      %1001 = vmatprep.mubr.bf16.mxu0 0
      %1002 = vmatmul.mubr.bf16.gmra.mxu0 %v904
      %v1003 = vpop.f32.mrf.mxu0
      %v1004 = vadd.f32 0.0, %v1003
      %v1005 = vpop.f32.mrf.mxu0
      %v1006 = vpop.f32.mrf.mxu0
      %v1007 = vadd.f32 0.0, %v1006
      %v1008 = vpop.f32.mrf.mxu0
      %1009 = vmatprep.mubr.bf16.mxu0 0
      %1010 = vmatmul.mubr.bf16.gmra.mxu0 %v907
      %v1011 = vpop.f32.mrf.mxu0
      %v1012 = vadd.f32 0.0, %v1011
      %v1013 = vpop.f32.mrf.mxu0
      %v1014 = vpop.f32.mrf.mxu0
      %v1015 = vpop.f32.mrf.mxu0
      %1016 = vdwg.mxu0
      %v1017 = vadd.f32 %v870, %v953
      %v1018 = vadd.f32 %v871, %v955
      %v1019 = vadd.f32 %v872, %v1004
      %v1020 = vadd.f32 %v873, %v957
      %v1021 = vadd.f32 %v874, %v959
      %v1022 = vadd.f32 %v875, %v1007
      %v1023 = vadd.f32 %v876, %v963
      %v1024 = vadd.f32 %v877, %v965
      %v1025 = vadd.f32 %v878, %v1012
      %s1026 = scalar_lea.vmem %s2, 60
      %v1027 = vld [vmem:[%s1026] sm:$0xf]
      %v1028 = vld [vmem:[%s1026 + $0x4] sm:$0xf]
      %v1029 = vld [vmem:[%s1026 + $0x8] sm:$0xf]
      %v1033 = vunpack.c.l.b16 %v1027
      %v1034 = vunpack.c.l.b16 %v1028
      %v1035 = vunpack.c.l.b16 %v1029
      %v1036 = vpack.c.b16 %v1034, %v1033
      %v1037 = vpack.c.b16 %v1035, %v1035
      %1038 = vrot.lane.b32.xlu0 %v331, 108
      %v1039 = vpop.permute.xlu0 %1038
      %1040 = vrot.lane.b32.xlu0 %v332, 108
      %v1041 = vpop.permute.xlu0 %1040
      %1042 = vrot.lane.b32.xlu0 %v333, 108
      %v1043 = vpop.permute.xlu0 %1042
      %1044 = vrot.lane.b32.xlu0 %v334, 108
      %v1045 = vpop.permute.xlu0 %1044
      %vm1046 = vcmask 883712
      %v1047 = vsel %vm1046, %v1039, %v1041
      %v1048 = vsel %vm1046, %v1041, %v1043
      %v1049 = vsel %vm1046, %v1043, %v1045
      %v1051 = vsel %vm347, %v1036, 0
      %v1054 = vsel %vm347, %v1037, 0
      %v1057 = vsel %vm354, %v1047, 0
      %v1060 = vsel %vm354, %v1048, 0
      %v1063 = vsel %vm354, %v1049, 0
      %1065 = vmatprep.subr.bf16.mxu0 0
      %1066 = vmatpush1.bf16.msra.mxu0 0
      %1067 = vmatprep.subr.bf16.mxu0 0
      %1068 = vmatpush1.bf16.msra.mxu0 0
      %1069 = vmatprep.subr.bf16.mxu0 0
      %1070 = vmatpush1.bf16.msra.mxu0 0
      %1071 = vmatprep.subr.bf16.mxu0 0
      %1072 = vmatpush1.bf16.msra.mxu0 0
      %1073 = vmatprep.subr.bf16.mxu0 0
      %1074 = vmatpush1.bf16.msra.mxu0 0
      %1075 = vmatprep.subr.bf16.mxu0 0
      %1076 = vmatpush1.bf16.msra.mxu0 0
      %1077 = vmatprep.subr.bf16.mxu0 0
      %1078 = vmatpush1.bf16.msra.mxu0 0
      %1079 = vmatprep.subr.bf16.mxu0 %v1060
      %1080 = vmatpush1.bf16.msra.mxu0 %v1057
      %1081 = vmatprep.subr.bf16.mxu0 0
      %1082 = vmatpush2.bf16.msra.mxu0 0
      %1083 = vmatprep.subr.bf16.mxu0 0
      %1084 = vmatpush2.bf16.msra.mxu0 0
      %1085 = vmatprep.subr.bf16.mxu0 0
      %1086 = vmatpush2.bf16.msra.mxu0 0
      %1087 = vmatprep.subr.bf16.mxu0 0
      %1088 = vmatpush2.bf16.msra.mxu0 0
      %1089 = vmatprep.subr.bf16.mxu0 0
      %1090 = vmatpush2.bf16.msra.mxu0 0
      %1091 = vmatprep.subr.bf16.mxu0 0
      %1092 = vmatpush2.bf16.msra.mxu0 0
      %1093 = vmatprep.subr.bf16.mxu0 0
      %1094 = vmatpush2.bf16.msra.mxu0 0
      %1095 = vmatprep.subr.bf16.mxu0 0
      %1096 = vmatpush2.bf16.msra.mxu0 0
      %1097 = vmatprep.mubr.bf16.mxu0 0
      %1098 = vmatmul.mubr.bf16.gmra.mxu0 %v1051
      %v1099 = vpop.f32.mrf.mxu0
      %v1100 = vadd.f32 0.0, %v1099
      %v1101 = vpop.f32.mrf.mxu0
      %v1102 = vadd.f32 0.0, %v1101
      %v1103 = vpop.f32.mrf.mxu0
      %v1104 = vadd.f32 0.0, %v1103
      %v1105 = vpop.f32.mrf.mxu0
      %v1106 = vadd.f32 0.0, %v1105
      %1107 = vmatprep.mubr.bf16.mxu0 0
      %1108 = vmatmul.mubr.bf16.gmra.mxu0 %v1054
      %v1109 = vpop.f32.mrf.mxu0
      %v1110 = vadd.f32 0.0, %v1109
      %v1111 = vpop.f32.mrf.mxu0
      %v1112 = vadd.f32 0.0, %v1111
      %v1113 = vpop.f32.mrf.mxu0
      %v1114 = vpop.f32.mrf.mxu0
      %1115 = vdwg.mxu0
      %1116 = vmatprep.subr.bf16.mxu0 0
      %1117 = vmatpush1.bf16.msra.mxu0 0
      %1118 = vmatprep.subr.bf16.mxu0 0
      %1119 = vmatpush1.bf16.msra.mxu0 0
      %1120 = vmatprep.subr.bf16.mxu0 0
      %1121 = vmatpush1.bf16.msra.mxu0 0
      %1122 = vmatprep.subr.bf16.mxu0 0
      %1123 = vmatpush1.bf16.msra.mxu0 0
      %1124 = vmatprep.subr.bf16.mxu0 0
      %1125 = vmatpush1.bf16.msra.mxu0 0
      %1126 = vmatprep.subr.bf16.mxu0 0
      %1127 = vmatpush1.bf16.msra.mxu0 0
      %1128 = vmatprep.subr.bf16.mxu0 0
      %1129 = vmatpush1.bf16.msra.mxu0 0
      %1130 = vmatprep.subr.bf16.mxu0 0
      %1131 = vmatpush1.bf16.msra.mxu0 %v1063
      %1132 = vmatprep.subr.bf16.mxu0 0
      %1133 = vmatpush2.bf16.msra.mxu0 0
      %1134 = vmatprep.subr.bf16.mxu0 0
      %1135 = vmatpush2.bf16.msra.mxu0 0
      %1136 = vmatprep.subr.bf16.mxu0 0
      %1137 = vmatpush2.bf16.msra.mxu0 0
      %1138 = vmatprep.subr.bf16.mxu0 0
      %1139 = vmatpush2.bf16.msra.mxu0 0
      %1140 = vmatprep.subr.bf16.mxu0 0
      %1141 = vmatpush2.bf16.msra.mxu0 0
      %1142 = vmatprep.subr.bf16.mxu0 0
      %1143 = vmatpush2.bf16.msra.mxu0 0
      %1144 = vmatprep.subr.bf16.mxu0 0
      %1145 = vmatpush2.bf16.msra.mxu0 0
      %1146 = vmatprep.subr.bf16.mxu0 0
      %1147 = vmatpush2.bf16.msra.mxu0 0
      %1148 = vmatprep.mubr.bf16.mxu0 0
      %1149 = vmatmul.mubr.bf16.gmra.mxu0 %v1051
      %v1150 = vpop.f32.mrf.mxu0
      %v1151 = vadd.f32 0.0, %v1150
      %v1152 = vpop.f32.mrf.mxu0
      %v1153 = vpop.f32.mrf.mxu0
      %v1154 = vadd.f32 0.0, %v1153
      %v1155 = vpop.f32.mrf.mxu0
      %1156 = vmatprep.mubr.bf16.mxu0 0
      %1157 = vmatmul.mubr.bf16.gmra.mxu0 %v1054
      %v1158 = vpop.f32.mrf.mxu0
      %v1159 = vadd.f32 0.0, %v1158
      %v1160 = vpop.f32.mrf.mxu0
      %v1161 = vpop.f32.mrf.mxu0
      %v1162 = vpop.f32.mrf.mxu0
      %1163 = vdwg.mxu0
      %v1164 = vadd.f32 %v1017, %v1100
      %v1165 = vadd.f32 %v1018, %v1102
      %v1166 = vadd.f32 %v1019, %v1151
      %v1167 = vadd.f32 %v1020, %v1104
      %v1168 = vadd.f32 %v1021, %v1106
      %v1169 = vadd.f32 %v1022, %v1154
      %v1170 = vadd.f32 %v1023, %v1110
      %v1171 = vadd.f32 %v1024, %v1112
      %v1172 = vadd.f32 %v1025, %v1159
      %s1173 = scalar_lea.vmem %s2, 72
      %v1174 = vld [vmem:[%s1173] sm:$0xf]
      %v1175 = vld [vmem:[%s1173 + $0x4] sm:$0xf]
      %v1176 = vld [vmem:[%s1173 + $0x8] sm:$0xf]
      %v1180 = vunpack.c.l.b16 %v1174
      %v1181 = vunpack.c.l.b16 %v1175
      %v1182 = vunpack.c.l.b16 %v1176
      %v1183 = vpack.c.b16 %v1181, %v1180
      %v1184 = vpack.c.b16 %v1182, %v1182
      %1185 = vrot.lane.b32.xlu0 %v331, 92
      %v1186 = vpop.permute.xlu0 %1185
      %1187 = vrot.lane.b32.xlu0 %v332, 92
      %v1188 = vpop.permute.xlu0 %1187
      %1189 = vrot.lane.b32.xlu0 %v333, 92
      %v1190 = vpop.permute.xlu0 %1189
      %1191 = vrot.lane.b32.xlu0 %v334, 92
      %v1192 = vpop.permute.xlu0 %1191
      %vm1193 = vcmask 752640
      %v1194 = vsel %vm1193, %v1186, %v1188
      %v1195 = vsel %vm1193, %v1188, %v1190
      %v1196 = vsel %vm1193, %v1190, %v1192
      %v1198 = vsel %vm347, %v1183, 0
      %v1201 = vsel %vm347, %v1184, 0
      %v1204 = vsel %vm354, %v1194, 0
      %v1207 = vsel %vm354, %v1195, 0
      %v1210 = vsel %vm354, %v1196, 0
      %1212 = vmatprep.subr.bf16.mxu0 0
      %1213 = vmatpush1.bf16.msra.mxu0 0
      %1214 = vmatprep.subr.bf16.mxu0 0
      %1215 = vmatpush1.bf16.msra.mxu0 0
      %1216 = vmatprep.subr.bf16.mxu0 0
      %1217 = vmatpush1.bf16.msra.mxu0 0
      %1218 = vmatprep.subr.bf16.mxu0 0
      %1219 = vmatpush1.bf16.msra.mxu0 0
      %1220 = vmatprep.subr.bf16.mxu0 0
      %1221 = vmatpush1.bf16.msra.mxu0 0
      %1222 = vmatprep.subr.bf16.mxu0 0
      %1223 = vmatpush1.bf16.msra.mxu0 0
      %1224 = vmatprep.subr.bf16.mxu0 0
      %1225 = vmatpush1.bf16.msra.mxu0 0
      %1226 = vmatprep.subr.bf16.mxu0 %v1207
      %1227 = vmatpush1.bf16.msra.mxu0 %v1204
      %1228 = vmatprep.subr.bf16.mxu0 0
      %1229 = vmatpush2.bf16.msra.mxu0 0
      %1230 = vmatprep.subr.bf16.mxu0 0
      %1231 = vmatpush2.bf16.msra.mxu0 0
      %1232 = vmatprep.subr.bf16.mxu0 0
      %1233 = vmatpush2.bf16.msra.mxu0 0
      %1234 = vmatprep.subr.bf16.mxu0 0
      %1235 = vmatpush2.bf16.msra.mxu0 0
      %1236 = vmatprep.subr.bf16.mxu0 0
      %1237 = vmatpush2.bf16.msra.mxu0 0
      %1238 = vmatprep.subr.bf16.mxu0 0
      %1239 = vmatpush2.bf16.msra.mxu0 0
      %1240 = vmatprep.subr.bf16.mxu0 0
      %1241 = vmatpush2.bf16.msra.mxu0 0
      %1242 = vmatprep.subr.bf16.mxu0 0
      %1243 = vmatpush2.bf16.msra.mxu0 0
      %1244 = vmatprep.mubr.bf16.mxu0 0
      %1245 = vmatmul.mubr.bf16.gmra.mxu0 %v1198
      %v1246 = vpop.f32.mrf.mxu0
      %v1247 = vadd.f32 0.0, %v1246
      %v1248 = vpop.f32.mrf.mxu0
      %v1249 = vadd.f32 0.0, %v1248
      %v1250 = vpop.f32.mrf.mxu0
      %v1251 = vadd.f32 0.0, %v1250
      %v1252 = vpop.f32.mrf.mxu0
      %v1253 = vadd.f32 0.0, %v1252
      %1254 = vmatprep.mubr.bf16.mxu0 0
      %1255 = vmatmul.mubr.bf16.gmra.mxu0 %v1201
      %v1256 = vpop.f32.mrf.mxu0
      %v1257 = vadd.f32 0.0, %v1256
      %v1258 = vpop.f32.mrf.mxu0
      %v1259 = vadd.f32 0.0, %v1258
      %v1260 = vpop.f32.mrf.mxu0
      %v1261 = vpop.f32.mrf.mxu0
      %1262 = vdwg.mxu0
      %1263 = vmatprep.subr.bf16.mxu0 0
      %1264 = vmatpush1.bf16.msra.mxu0 0
      %1265 = vmatprep.subr.bf16.mxu0 0
      %1266 = vmatpush1.bf16.msra.mxu0 0
      %1267 = vmatprep.subr.bf16.mxu0 0
      %1268 = vmatpush1.bf16.msra.mxu0 0
      %1269 = vmatprep.subr.bf16.mxu0 0
      %1270 = vmatpush1.bf16.msra.mxu0 0
      %1271 = vmatprep.subr.bf16.mxu0 0
      %1272 = vmatpush1.bf16.msra.mxu0 0
      %1273 = vmatprep.subr.bf16.mxu0 0
      %1274 = vmatpush1.bf16.msra.mxu0 0
      %1275 = vmatprep.subr.bf16.mxu0 0
      %1276 = vmatpush1.bf16.msra.mxu0 0
      %1277 = vmatprep.subr.bf16.mxu0 0
      %1278 = vmatpush1.bf16.msra.mxu0 %v1210
      %1279 = vmatprep.subr.bf16.mxu0 0
      %1280 = vmatpush2.bf16.msra.mxu0 0
      %1281 = vmatprep.subr.bf16.mxu0 0
      %1282 = vmatpush2.bf16.msra.mxu0 0
      %1283 = vmatprep.subr.bf16.mxu0 0
      %1284 = vmatpush2.bf16.msra.mxu0 0
      %1285 = vmatprep.subr.bf16.mxu0 0
      %1286 = vmatpush2.bf16.msra.mxu0 0
      %1287 = vmatprep.subr.bf16.mxu0 0
      %1288 = vmatpush2.bf16.msra.mxu0 0
      %1289 = vmatprep.subr.bf16.mxu0 0
      %1290 = vmatpush2.bf16.msra.mxu0 0
      %1291 = vmatprep.subr.bf16.mxu0 0
      %1292 = vmatpush2.bf16.msra.mxu0 0
      %1293 = vmatprep.subr.bf16.mxu0 0
      %1294 = vmatpush2.bf16.msra.mxu0 0
      %1295 = vmatprep.mubr.bf16.mxu0 0
      %1296 = vmatmul.mubr.bf16.gmra.mxu0 %v1198
      %v1297 = vpop.f32.mrf.mxu0
      %v1298 = vadd.f32 0.0, %v1297
      %v1299 = vpop.f32.mrf.mxu0
      %v1300 = vpop.f32.mrf.mxu0
      %v1301 = vadd.f32 0.0, %v1300
      %v1302 = vpop.f32.mrf.mxu0
      %1303 = vmatprep.mubr.bf16.mxu0 0
      %1304 = vmatmul.mubr.bf16.gmra.mxu0 %v1201
      %v1305 = vpop.f32.mrf.mxu0
      %v1306 = vadd.f32 0.0, %v1305
      %v1307 = vpop.f32.mrf.mxu0
      %v1308 = vpop.f32.mrf.mxu0
      %v1309 = vpop.f32.mrf.mxu0
      %1310 = vdwg.mxu0
      %v1311 = vadd.f32 %v1164, %v1247
      %v1312 = vadd.f32 %v1165, %v1249
      %v1313 = vadd.f32 %v1166, %v1298
      %v1314 = vadd.f32 %v1167, %v1251
      %v1315 = vadd.f32 %v1168, %v1253
      %v1316 = vadd.f32 %v1169, %v1301
      %v1317 = vadd.f32 %v1170, %v1257
      %v1318 = vadd.f32 %v1171, %v1259
      %v1319 = vadd.f32 %v1172, %v1306
      %s1320 = scalar_lea.vmem %s2, 84
      %v1321 = vld [vmem:[%s1320] sm:$0xf]
      %v1322 = vld [vmem:[%s1320 + $0x4] sm:$0xf]
      %v1323 = vld [vmem:[%s1320 + $0x8] sm:$0xf]
      %v1327 = vunpack.c.l.b16 %v1321
      %v1328 = vunpack.c.l.b16 %v1322
      %v1329 = vunpack.c.l.b16 %v1323
      %v1330 = vpack.c.b16 %v1328, %v1327
      %v1331 = vpack.c.b16 %v1329, %v1329
      %1332 = vrot.lane.b32.xlu0 %v331, 91
      %v1333 = vpop.permute.xlu0 %1332
      %1334 = vrot.lane.b32.xlu0 %v332, 91
      %v1335 = vpop.permute.xlu0 %1334
      %1336 = vrot.lane.b32.xlu0 %v333, 91
      %v1337 = vpop.permute.xlu0 %1336
      %1338 = vrot.lane.b32.xlu0 %v334, 91
      %v1339 = vpop.permute.xlu0 %1338
      %vm1340 = vcmask 744448
      %v1341 = vsel %vm1340, %v1333, %v1335
      %v1342 = vsel %vm1340, %v1335, %v1337
      %v1343 = vsel %vm1340, %v1337, %v1339
      %v1345 = vsel %vm347, %v1330, 0
      %v1348 = vsel %vm347, %v1331, 0
      %v1351 = vsel %vm354, %v1341, 0
      %v1354 = vsel %vm354, %v1342, 0
      %v1357 = vsel %vm354, %v1343, 0
      %1359 = vmatprep.subr.bf16.mxu0 0
      %1360 = vmatpush1.bf16.msra.mxu0 0
      %1361 = vmatprep.subr.bf16.mxu0 0
      %1362 = vmatpush1.bf16.msra.mxu0 0
      %1363 = vmatprep.subr.bf16.mxu0 0
      %1364 = vmatpush1.bf16.msra.mxu0 0
      %1365 = vmatprep.subr.bf16.mxu0 0
      %1366 = vmatpush1.bf16.msra.mxu0 0
      %1367 = vmatprep.subr.bf16.mxu0 0
      %1368 = vmatpush1.bf16.msra.mxu0 0
      %1369 = vmatprep.subr.bf16.mxu0 0
      %1370 = vmatpush1.bf16.msra.mxu0 0
      %1371 = vmatprep.subr.bf16.mxu0 0
      %1372 = vmatpush1.bf16.msra.mxu0 0
      %1373 = vmatprep.subr.bf16.mxu0 %v1354
      %1374 = vmatpush1.bf16.msra.mxu0 %v1351
      %1375 = vmatprep.subr.bf16.mxu0 0
      %1376 = vmatpush2.bf16.msra.mxu0 0
      %1377 = vmatprep.subr.bf16.mxu0 0
      %1378 = vmatpush2.bf16.msra.mxu0 0
      %1379 = vmatprep.subr.bf16.mxu0 0
      %1380 = vmatpush2.bf16.msra.mxu0 0
      %1381 = vmatprep.subr.bf16.mxu0 0
      %1382 = vmatpush2.bf16.msra.mxu0 0
      %1383 = vmatprep.subr.bf16.mxu0 0
      %1384 = vmatpush2.bf16.msra.mxu0 0
      %1385 = vmatprep.subr.bf16.mxu0 0
      %1386 = vmatpush2.bf16.msra.mxu0 0
      %1387 = vmatprep.subr.bf16.mxu0 0
      %1388 = vmatpush2.bf16.msra.mxu0 0
      %1389 = vmatprep.subr.bf16.mxu0 0
      %1390 = vmatpush2.bf16.msra.mxu0 0
      %1391 = vmatprep.mubr.bf16.mxu0 0
      %1392 = vmatmul.mubr.bf16.gmra.mxu0 %v1345
      %v1393 = vpop.f32.mrf.mxu0
      %v1394 = vadd.f32 0.0, %v1393
      %v1395 = vpop.f32.mrf.mxu0
      %v1396 = vadd.f32 0.0, %v1395
      %v1397 = vpop.f32.mrf.mxu0
      %v1398 = vadd.f32 0.0, %v1397
      %v1399 = vpop.f32.mrf.mxu0
      %v1400 = vadd.f32 0.0, %v1399
      %1401 = vmatprep.mubr.bf16.mxu0 0
      %1402 = vmatmul.mubr.bf16.gmra.mxu0 %v1348
      %v1403 = vpop.f32.mrf.mxu0
      %v1404 = vadd.f32 0.0, %v1403
      %v1405 = vpop.f32.mrf.mxu0
      %v1406 = vadd.f32 0.0, %v1405
      %v1407 = vpop.f32.mrf.mxu0
      %v1408 = vpop.f32.mrf.mxu0
      %1409 = vdwg.mxu0
      %1410 = vmatprep.subr.bf16.mxu0 0
      %1411 = vmatpush1.bf16.msra.mxu0 0
      %1412 = vmatprep.subr.bf16.mxu0 0
      %1413 = vmatpush1.bf16.msra.mxu0 0
      %1414 = vmatprep.subr.bf16.mxu0 0
      %1415 = vmatpush1.bf16.msra.mxu0 0
      %1416 = vmatprep.subr.bf16.mxu0 0
      %1417 = vmatpush1.bf16.msra.mxu0 0
      %1418 = vmatprep.subr.bf16.mxu0 0
      %1419 = vmatpush1.bf16.msra.mxu0 0
      %1420 = vmatprep.subr.bf16.mxu0 0
      %1421 = vmatpush1.bf16.msra.mxu0 0
      %1422 = vmatprep.subr.bf16.mxu0 0
      %1423 = vmatpush1.bf16.msra.mxu0 0
      %1424 = vmatprep.subr.bf16.mxu0 0
      %1425 = vmatpush1.bf16.msra.mxu0 %v1357
      %1426 = vmatprep.subr.bf16.mxu0 0
      %1427 = vmatpush2.bf16.msra.mxu0 0
      %1428 = vmatprep.subr.bf16.mxu0 0
      %1429 = vmatpush2.bf16.msra.mxu0 0
      %1430 = vmatprep.subr.bf16.mxu0 0
      %1431 = vmatpush2.bf16.msra.mxu0 0
      %1432 = vmatprep.subr.bf16.mxu0 0
      %1433 = vmatpush2.bf16.msra.mxu0 0
      %1434 = vmatprep.subr.bf16.mxu0 0
      %1435 = vmatpush2.bf16.msra.mxu0 0
      %1436 = vmatprep.subr.bf16.mxu0 0
      %1437 = vmatpush2.bf16.msra.mxu0 0
      %1438 = vmatprep.subr.bf16.mxu0 0
      %1439 = vmatpush2.bf16.msra.mxu0 0
      %1440 = vmatprep.subr.bf16.mxu0 0
      %1441 = vmatpush2.bf16.msra.mxu0 0
      %1442 = vmatprep.mubr.bf16.mxu0 0
      %1443 = vmatmul.mubr.bf16.gmra.mxu0 %v1345
      %v1444 = vpop.f32.mrf.mxu0
      %v1445 = vadd.f32 0.0, %v1444
      %v1446 = vpop.f32.mrf.mxu0
      %v1447 = vpop.f32.mrf.mxu0
      %v1448 = vadd.f32 0.0, %v1447
      %v1449 = vpop.f32.mrf.mxu0
      %1450 = vmatprep.mubr.bf16.mxu0 0
      %1451 = vmatmul.mubr.bf16.gmra.mxu0 %v1348
      %v1452 = vpop.f32.mrf.mxu0
      %v1453 = vadd.f32 0.0, %v1452
      %v1454 = vpop.f32.mrf.mxu0
      %v1455 = vpop.f32.mrf.mxu0
      %v1456 = vpop.f32.mrf.mxu0
      %1457 = vdwg.mxu0
      %v1458 = vadd.f32 %v1311, %v1394
      %v1459 = vadd.f32 %v1312, %v1396
      %v1460 = vadd.f32 %v1313, %v1445
      %v1461 = vadd.f32 %v1314, %v1398
      %v1462 = vadd.f32 %v1315, %v1400
      %v1463 = vadd.f32 %v1316, %v1448
      %v1464 = vadd.f32 %v1317, %v1404
      %v1465 = vadd.f32 %v1318, %v1406
      %v1466 = vadd.f32 %v1319, %v1453
      %s1467 = scalar_lea.vmem %s2, 96
      %v1468 = vld [vmem:[%s1467] sm:$0xf]
      %v1469 = vld [vmem:[%s1467 + $0x4] sm:$0xf]
      %v1470 = vld [vmem:[%s1467 + $0x8] sm:$0xf]
      %v1474 = vunpack.c.l.b16 %v1468
      %v1475 = vunpack.c.l.b16 %v1469
      %v1476 = vunpack.c.l.b16 %v1470
      %v1477 = vpack.c.b16 %v1475, %v1474
      %v1478 = vpack.c.b16 %v1476, %v1476
      %1479 = vrot.lane.b32.xlu0 %v331, 90
      %v1480 = vpop.permute.xlu0 %1479
      %1481 = vrot.lane.b32.xlu0 %v332, 90
      %v1482 = vpop.permute.xlu0 %1481
      %1483 = vrot.lane.b32.xlu0 %v333, 90
      %v1484 = vpop.permute.xlu0 %1483
      %1485 = vrot.lane.b32.xlu0 %v334, 90
      %v1486 = vpop.permute.xlu0 %1485
      %vm1487 = vcmask 736256
      %v1488 = vsel %vm1487, %v1480, %v1482
      %v1489 = vsel %vm1487, %v1482, %v1484
      %v1490 = vsel %vm1487, %v1484, %v1486
      %v1492 = vsel %vm347, %v1477, 0
      %v1495 = vsel %vm347, %v1478, 0
      %v1498 = vsel %vm354, %v1488, 0
      %v1501 = vsel %vm354, %v1489, 0
      %v1504 = vsel %vm354, %v1490, 0
      %1506 = vmatprep.subr.bf16.mxu0 0
      %1507 = vmatpush1.bf16.msra.mxu0 0
      %1508 = vmatprep.subr.bf16.mxu0 0
      %1509 = vmatpush1.bf16.msra.mxu0 0
      %1510 = vmatprep.subr.bf16.mxu0 0
      %1511 = vmatpush1.bf16.msra.mxu0 0
      %1512 = vmatprep.subr.bf16.mxu0 0
      %1513 = vmatpush1.bf16.msra.mxu0 0
      %1514 = vmatprep.subr.bf16.mxu0 0
      %1515 = vmatpush1.bf16.msra.mxu0 0
      %1516 = vmatprep.subr.bf16.mxu0 0
      %1517 = vmatpush1.bf16.msra.mxu0 0
      %1518 = vmatprep.subr.bf16.mxu0 0
      %1519 = vmatpush1.bf16.msra.mxu0 0
      %1520 = vmatprep.subr.bf16.mxu0 %v1501
      %1521 = vmatpush1.bf16.msra.mxu0 %v1498
      %1522 = vmatprep.subr.bf16.mxu0 0
      %1523 = vmatpush2.bf16.msra.mxu0 0
      %1524 = vmatprep.subr.bf16.mxu0 0
      %1525 = vmatpush2.bf16.msra.mxu0 0
      %1526 = vmatprep.subr.bf16.mxu0 0
      %1527 = vmatpush2.bf16.msra.mxu0 0
      %1528 = vmatprep.subr.bf16.mxu0 0
      %1529 = vmatpush2.bf16.msra.mxu0 0
      %1530 = vmatprep.subr.bf16.mxu0 0
      %1531 = vmatpush2.bf16.msra.mxu0 0
      %1532 = vmatprep.subr.bf16.mxu0 0
      %1533 = vmatpush2.bf16.msra.mxu0 0
      %1534 = vmatprep.subr.bf16.mxu0 0
      %1535 = vmatpush2.bf16.msra.mxu0 0
      %1536 = vmatprep.subr.bf16.mxu0 0
      %1537 = vmatpush2.bf16.msra.mxu0 0
      %1538 = vmatprep.mubr.bf16.mxu0 0
      %1539 = vmatmul.mubr.bf16.gmra.mxu0 %v1492
      %v1540 = vpop.f32.mrf.mxu0
      %v1541 = vadd.f32 0.0, %v1540
      %v1542 = vpop.f32.mrf.mxu0
      %v1543 = vadd.f32 0.0, %v1542
      %v1544 = vpop.f32.mrf.mxu0
      %v1545 = vadd.f32 0.0, %v1544
      %v1546 = vpop.f32.mrf.mxu0
      %v1547 = vadd.f32 0.0, %v1546
      %1548 = vmatprep.mubr.bf16.mxu0 0
      %1549 = vmatmul.mubr.bf16.gmra.mxu0 %v1495
      %v1550 = vpop.f32.mrf.mxu0
      %v1551 = vadd.f32 0.0, %v1550
      %v1552 = vpop.f32.mrf.mxu0
      %v1553 = vadd.f32 0.0, %v1552
      %v1554 = vpop.f32.mrf.mxu0
      %v1555 = vpop.f32.mrf.mxu0
      %1556 = vdwg.mxu0
      %1557 = vmatprep.subr.bf16.mxu0 0
      %1558 = vmatpush1.bf16.msra.mxu0 0
      %1559 = vmatprep.subr.bf16.mxu0 0
      %1560 = vmatpush1.bf16.msra.mxu0 0
      %1561 = vmatprep.subr.bf16.mxu0 0
      %1562 = vmatpush1.bf16.msra.mxu0 0
      %1563 = vmatprep.subr.bf16.mxu0 0
      %1564 = vmatpush1.bf16.msra.mxu0 0
      %1565 = vmatprep.subr.bf16.mxu0 0
      %1566 = vmatpush1.bf16.msra.mxu0 0
      %1567 = vmatprep.subr.bf16.mxu0 0
      %1568 = vmatpush1.bf16.msra.mxu0 0
      %1569 = vmatprep.subr.bf16.mxu0 0
      %1570 = vmatpush1.bf16.msra.mxu0 0
      %1571 = vmatprep.subr.bf16.mxu0 0
      %1572 = vmatpush1.bf16.msra.mxu0 %v1504
      %1573 = vmatprep.subr.bf16.mxu0 0
      %1574 = vmatpush2.bf16.msra.mxu0 0
      %1575 = vmatprep.subr.bf16.mxu0 0
      %1576 = vmatpush2.bf16.msra.mxu0 0
      %1577 = vmatprep.subr.bf16.mxu0 0
      %1578 = vmatpush2.bf16.msra.mxu0 0
      %1579 = vmatprep.subr.bf16.mxu0 0
      %1580 = vmatpush2.bf16.msra.mxu0 0
      %1581 = vmatprep.subr.bf16.mxu0 0
      %1582 = vmatpush2.bf16.msra.mxu0 0
      %1583 = vmatprep.subr.bf16.mxu0 0
      %1584 = vmatpush2.bf16.msra.mxu0 0
      %1585 = vmatprep.subr.bf16.mxu0 0
      %1586 = vmatpush2.bf16.msra.mxu0 0
      %1587 = vmatprep.subr.bf16.mxu0 0
      %1588 = vmatpush2.bf16.msra.mxu0 0
      %1589 = vmatprep.mubr.bf16.mxu0 0
      %1590 = vmatmul.mubr.bf16.gmra.mxu0 %v1492
      %v1591 = vpop.f32.mrf.mxu0
      %v1592 = vadd.f32 0.0, %v1591
      %v1593 = vpop.f32.mrf.mxu0
      %v1594 = vpop.f32.mrf.mxu0
      %v1595 = vadd.f32 0.0, %v1594
      %v1596 = vpop.f32.mrf.mxu0
      %1597 = vmatprep.mubr.bf16.mxu0 0
      %1598 = vmatmul.mubr.bf16.gmra.mxu0 %v1495
      %v1599 = vpop.f32.mrf.mxu0
      %v1600 = vadd.f32 0.0, %v1599
      %v1601 = vpop.f32.mrf.mxu0
      %v1602 = vpop.f32.mrf.mxu0
      %v1603 = vpop.f32.mrf.mxu0
      %1604 = vdwg.mxu0
      %v1605 = vadd.f32 %v1458, %v1541
      %v1606 = vadd.f32 %v1459, %v1543
      %v1607 = vadd.f32 %v1460, %v1592
      %v1608 = vadd.f32 %v1461, %v1545
      %v1609 = vadd.f32 %v1462, %v1547
      %v1610 = vadd.f32 %v1463, %v1595
      %v1611 = vadd.f32 %v1464, %v1551
      %v1612 = vadd.f32 %v1465, %v1553
      %v1613 = vadd.f32 %v1466, %v1600
      %v1614 = vld [vmem:[%s3] sm:$0xff]
      %v1615 = vld [vmem:[%s3 + $0x8] sm:$0xff]
      %v1616 = vld [vmem:[%s3 + $0x10] sm:$0xff]
      %1618 = vset.pattern.permute.xlu0 0
      %1619 = vperm.xlu0 %1618, %v1614
      %v1620 = vpop.permute.xlu0 %1619
      %1623 = vset.pattern.permute.xlu0 0
      %1624 = vperm.xlu0 %1623, %v1615
      %v1625 = vpop.permute.xlu0 %1624
      %1628 = vset.pattern.permute.xlu0 0
      %1629 = vperm.xlu0 %1628, %v1616
      %v1630 = vpop.permute.xlu0 %1629
      %v1632 = vadd.f32 %v1605, %v1620
      %v1633 = vadd.f32 %v1606, %v1620
      %v1634 = vadd.f32 %v1607, %v1620
      %v1635 = vadd.f32 %v1608, %v1625
      %v1636 = vadd.f32 %v1609, %v1625
      %v1637 = vadd.f32 %v1610, %v1625
      %v1638 = vadd.f32 %v1611, %v1630
      %v1639 = vadd.f32 %v1612, %v1630
      %v1640 = vadd.f32 %v1613, %v1630
      %v1642 = vlaneseq
      %v1643 = vshrl.u32 %v1642, 7
      %v1644 = vsub.s32 0, %v1643
      %v1645 = vrot.slane %v307, %v1644
      %v1646 = vlaneseq
      %v1647 = vshrl.u32 %v1646, 7
      %v1648 = vsub.s32 1, %v1647
      %v1649 = vrot.slane %v307, %v1648
      %v1650 = vlaneseq
      %v1651 = vshrl.u32 %v1650, 7
      %v1652 = vsub.s32 2, %v1651
      %v1653 = vrot.slane %v307, %v1652
      %v1657 = vmul.f32 %v1632, %v1645
      %v1658 = vmul.f32 %v1633, %v1649
      %v1659 = vmul.f32 %v1634, %v1653
      %v1660 = vmul.f32 %v1635, %v1645
      %v1661 = vmul.f32 %v1636, %v1649
      %v1662 = vmul.f32 %v1637, %v1653
      %v1663 = vadd.f32 %v1657, %v1658
      %v1664 = vadd.f32 %v1663, %v1659
      %v1665 = vadd.f32 %v1664, %v1660
      %v1666 = vadd.f32 %v1665, %v1661
      %v1667 = vadd.f32 %v1666, %v1662
      %1668 = vadd.xlane.f32.xlu0 %v1667
      %v1669 = vpop.xlane.xlu0 %1668
      %v1670 = vrot.slane %v1669, 4
      %v1671 = vadd.f32 %v1669, %v1670
      %v1672 = vrot.slane %v1671, 2
      %v1673 = vadd.f32 %v1671, %v1672
      %v1674 = vrot.slane %v1673, 1
      %v1675 = vadd.f32 %v1673, %v1674
      %s1676 = vtos %v1675
      %s1677 = smul.f32 %s1676, 0.00024414063
      %v1678 = vmul.f32 %v1657, %v1632
      %v1679 = vmul.f32 %v1658, %v1633
      %v1680 = vmul.f32 %v1659, %v1634
      %v1681 = vmul.f32 %v1660, %v1635
      %v1682 = vmul.f32 %v1661, %v1636
      %v1683 = vmul.f32 %v1662, %v1637
      %v1684 = vadd.f32 %v1678, %v1679
      %v1685 = vadd.f32 %v1684, %v1680
      %v1686 = vadd.f32 %v1685, %v1681
      %v1687 = vadd.f32 %v1686, %v1682
      %v1688 = vadd.f32 %v1687, %v1683
      %1689 = vadd.xlane.f32.xlu0 %v1688
      %v1690 = vpop.xlane.xlu0 %1689
      %v1691 = vrot.slane %v1690, 4
      %v1692 = vadd.f32 %v1690, %v1691
      %v1693 = vrot.slane %v1692, 2
      %v1694 = vadd.f32 %v1692, %v1693
      %v1695 = vrot.slane %v1694, 1
      %v1696 = vadd.f32 %v1694, %v1695
      %s1697 = vtos %v1696
      %s1698 = smul.f32 %s1697, 0.00024414063
      %s1699 = smul.f32 %s1677, %s1677
      %s1700 = ssub.f32 %s1698, %s1699
      %s1701 = smax.f32 %s1700, 0.0
      %v1702 = vstv %s1677
      %v1703 = vsub.f32 %v1632, %v1702
      %v1704 = vsub.f32 %v1633, %v1702
      %v1705 = vsub.f32 %v1634, %v1702
      %v1706 = vsub.f32 %v1635, %v1702
      %v1707 = vsub.f32 %v1636, %v1702
      %v1708 = vsub.f32 %v1637, %v1702
      %s1709 = sadd.f32 %s1701, 1e-05
      %v1710 = vstv %s1709
      %v1711 = vrsqrt.pop %v1710
      %s1712 = vtos %v1711
      %v1713 = vstv %s1712
      %v1714 = vmul.f32 %v1703, %v1713
      %v1715 = vmul.f32 %v1704, %v1713
      %v1716 = vmul.f32 %v1705, %v1713
      %v1717 = vmul.f32 %v1706, %v1713
      %v1718 = vmul.f32 %v1707, %v1713
      %v1719 = vmul.f32 %v1708, %v1713
      %vm1720 = vcmp.ge.f32.partialorder %v1714, 0.0
      %vm1721 = vcmp.ge.f32.partialorder %v1715, 0.0
      %vm1722 = vcmp.ge.f32.partialorder %v1716, 0.0
      %vm1723 = vcmp.ge.f32.partialorder %v1717, 0.0
      %vm1724 = vcmp.ge.f32.partialorder %v1718, 0.0
      %vm1725 = vcmp.ge.f32.partialorder %v1719, 0.0
      %v1726 = vmul.f32 %v1714, 0.01
      %v1727 = vmul.f32 %v1715, 0.01
      %v1728 = vmul.f32 %v1716, 0.01
      %v1729 = vmul.f32 %v1717, 0.01
      %v1730 = vmul.f32 %v1718, 0.01
      %v1731 = vmul.f32 %v1719, 0.01
      %v1732 = vsel %vm1720, %v1714, %v1726
      %v1733 = vsel %vm1721, %v1715, %v1727
      %v1734 = vsel %vm1722, %v1716, %v1728
      %v1735 = vsel %vm1723, %v1717, %v1729
      %v1736 = vsel %vm1724, %v1718, %v1730
      %v1737 = vsel %vm1725, %v1719, %v1731
      %v1738 = vpack.c.bf16 %v1735, %v1732
      %v1739 = vpack.c.bf16 %v1736, %v1733
      %v1740 = vpack.c.bf16 %v1737, %v1734
      %v1741 = vld [vmem:[%s4] sm:$0xf]
      %v1742 = vld [vmem:[%s4 + $0x4] sm:$0xf]
      %v1743 = vld [vmem:[%s5] sm:$0xff]
      %v1744 = vld [vmem:[%s5 + $0x8] sm:$0xff]
      %1746 = vset.pattern.permute.xlu0 0
      %1747 = vperm.xlu0 %1746, %v1743
      %v1748 = vpop.permute.xlu0 %1747
      %1751 = vset.pattern.permute.xlu0 0
      %1752 = vperm.xlu0 %1751, %v1744
      %v1753 = vpop.permute.xlu0 %1752
      %v1757 = vunpack.c.l.b16 %v1741
      %v1758 = vunpack.c.l.b16 %v1742
      %v1759 = vpack.c.b16 %v1758, %v1757
      %vm1760 = vcmask 130048
      %v1762 = vsel %vm1760, %v1759, 0
      %1764 = vmatprep.subr.bf16.mxu0 0
      %1765 = vmatpush1.bf16.msra.mxu0 0
      %1766 = vmatprep.subr.bf16.mxu0 0
      %1767 = vmatpush1.bf16.msra.mxu0 0
      %1768 = vmatprep.subr.bf16.mxu0 0
      %1769 = vmatpush1.bf16.msra.mxu0 0
      %1770 = vmatprep.subr.bf16.mxu0 0
      %1771 = vmatpush1.bf16.msra.mxu0 0
      %1772 = vmatprep.subr.bf16.mxu0 0
      %1773 = vmatpush1.bf16.msra.mxu0 0
      %1774 = vmatprep.subr.bf16.mxu0 0
      %1775 = vmatpush1.bf16.msra.mxu0 0
      %1776 = vmatprep.subr.bf16.mxu0 0
      %1777 = vmatpush1.bf16.msra.mxu0 0
      %1778 = vmatprep.subr.bf16.mxu0 %v1739
      %1779 = vmatpush1.bf16.msra.mxu0 %v1738
      %1780 = vmatprep.subr.bf16.mxu0 0
      %1781 = vmatpush2.bf16.msra.mxu0 0
      %1782 = vmatprep.subr.bf16.mxu0 0
      %1783 = vmatpush2.bf16.msra.mxu0 0
      %1784 = vmatprep.subr.bf16.mxu0 0
      %1785 = vmatpush2.bf16.msra.mxu0 0
      %1786 = vmatprep.subr.bf16.mxu0 0
      %1787 = vmatpush2.bf16.msra.mxu0 0
      %1788 = vmatprep.subr.bf16.mxu0 0
      %1789 = vmatpush2.bf16.msra.mxu0 0
      %1790 = vmatprep.subr.bf16.mxu0 0
      %1791 = vmatpush2.bf16.msra.mxu0 0
      %1792 = vmatprep.subr.bf16.mxu0 0
      %1793 = vmatpush2.bf16.msra.mxu0 0
      %1794 = vmatprep.subr.bf16.mxu0 0
      %1795 = vmatpush2.bf16.msra.mxu0 0
      %1796 = vmatprep.mubr.bf16.mxu0 0
      %1797 = vmatmul.mubr.bf16.gmra.mxu0 %v1762
      %v1798 = vpop.f32.mrf.mxu0
      %v1799 = vadd.f32 %v1748, %v1798
      %v1800 = vpop.f32.mrf.mxu0
      %v1801 = vadd.f32 %v1748, %v1800
      %v1802 = vpop.f32.mrf.mxu0
      %v1803 = vadd.f32 %v1753, %v1802
      %v1804 = vpop.f32.mrf.mxu0
      %v1805 = vadd.f32 %v1753, %v1804
      %1806 = vdwg.mxu0
      %1807 = vmatprep.subr.bf16.mxu0 0
      %1808 = vmatpush1.bf16.msra.mxu0 0
      %1809 = vmatprep.subr.bf16.mxu0 0
      %1810 = vmatpush1.bf16.msra.mxu0 0
      %1811 = vmatprep.subr.bf16.mxu0 0
      %1812 = vmatpush1.bf16.msra.mxu0 0
      %1813 = vmatprep.subr.bf16.mxu0 0
      %1814 = vmatpush1.bf16.msra.mxu0 0
      %1815 = vmatprep.subr.bf16.mxu0 0
      %1816 = vmatpush1.bf16.msra.mxu0 0
      %1817 = vmatprep.subr.bf16.mxu0 0
      %1818 = vmatpush1.bf16.msra.mxu0 0
      %1819 = vmatprep.subr.bf16.mxu0 0
      %1820 = vmatpush1.bf16.msra.mxu0 0
      %1821 = vmatprep.subr.bf16.mxu0 0
      %1822 = vmatpush1.bf16.msra.mxu0 %v1740
      %1823 = vmatprep.subr.bf16.mxu0 0
      %1824 = vmatpush2.bf16.msra.mxu0 0
      %1825 = vmatprep.subr.bf16.mxu0 0
      %1826 = vmatpush2.bf16.msra.mxu0 0
      %1827 = vmatprep.subr.bf16.mxu0 0
      %1828 = vmatpush2.bf16.msra.mxu0 0
      %1829 = vmatprep.subr.bf16.mxu0 0
      %1830 = vmatpush2.bf16.msra.mxu0 0
      %1831 = vmatprep.subr.bf16.mxu0 0
      %1832 = vmatpush2.bf16.msra.mxu0 0
      %1833 = vmatprep.subr.bf16.mxu0 0
      %1834 = vmatpush2.bf16.msra.mxu0 0
      %1835 = vmatprep.subr.bf16.mxu0 0
      %1836 = vmatpush2.bf16.msra.mxu0 0
      %1837 = vmatprep.subr.bf16.mxu0 0
      %1838 = vmatpush2.bf16.msra.mxu0 0
      %1839 = vmatprep.mubr.bf16.mxu0 0
      %1840 = vmatmul.mubr.bf16.gmra.mxu0 %v1762
      %v1841 = vpop.f32.mrf.mxu0
      %v1842 = vadd.f32 %v1748, %v1841
      %v1843 = vpop.f32.mrf.mxu0
      %v1844 = vpop.f32.mrf.mxu0
      %v1845 = vadd.f32 %v1753, %v1844
      %v1846 = vpop.f32.mrf.mxu0
      %1847 = vdwg.mxu0
      %v1848 = vmul.f32 %v1799, %v1645
      %v1849 = vmul.f32 %v1801, %v1649
      %v1850 = vmul.f32 %v1842, %v1653
      %v1851 = vmul.f32 %v1803, %v1645
      %v1852 = vmul.f32 %v1805, %v1649
      %v1853 = vmul.f32 %v1845, %v1653
      %v1854 = vadd.f32 %v1848, %v1849
      %v1855 = vadd.f32 %v1854, %v1850
      %v1856 = vadd.f32 %v1855, %v1851
      %v1857 = vadd.f32 %v1856, %v1852
      %v1858 = vadd.f32 %v1857, %v1853
      %1859 = vadd.xlane.f32.xlu0 %v1858
      %v1860 = vpop.xlane.xlu0 %1859
      %v1861 = vrot.slane %v1860, 4
      %v1862 = vadd.f32 %v1860, %v1861
      %v1863 = vrot.slane %v1862, 2
      %v1864 = vadd.f32 %v1862, %v1863
      %v1865 = vrot.slane %v1864, 1
      %v1866 = vadd.f32 %v1864, %v1865
      %s1867 = vtos %v1866
      %s1868 = smul.f32 %s1867, 0.00024414063
      %v1869 = vmul.f32 %v1848, %v1799
      %v1870 = vmul.f32 %v1849, %v1801
      %v1871 = vmul.f32 %v1850, %v1842
      %v1872 = vmul.f32 %v1851, %v1803
      %v1873 = vmul.f32 %v1852, %v1805
      %v1874 = vmul.f32 %v1853, %v1845
      %v1875 = vadd.f32 %v1869, %v1870
      %v1876 = vadd.f32 %v1875, %v1871
      %v1877 = vadd.f32 %v1876, %v1872
      %v1878 = vadd.f32 %v1877, %v1873
      %v1879 = vadd.f32 %v1878, %v1874
      %1880 = vadd.xlane.f32.xlu0 %v1879
      %v1881 = vpop.xlane.xlu0 %1880
      %v1882 = vrot.slane %v1881, 4
      %v1883 = vadd.f32 %v1881, %v1882
      %v1884 = vrot.slane %v1883, 2
      %v1885 = vadd.f32 %v1883, %v1884
      %v1886 = vrot.slane %v1885, 1
      %v1887 = vadd.f32 %v1885, %v1886
      %s1888 = vtos %v1887
      %s1889 = smul.f32 %s1888, 0.00024414063
      %s1890 = smul.f32 %s1868, %s1868
      %s1891 = ssub.f32 %s1889, %s1890
      %s1892 = smax.f32 %s1891, 0.0
      %v1893 = vstv %s1868
      %v1894 = vsub.f32 %v1799, %v1893
      %v1895 = vsub.f32 %v1801, %v1893
      %v1896 = vsub.f32 %v1842, %v1893
      %v1897 = vsub.f32 %v1803, %v1893
      %v1898 = vsub.f32 %v1805, %v1893
      %v1899 = vsub.f32 %v1845, %v1893
      %s1900 = sadd.f32 %s1892, 1e-05
      %v1901 = vstv %s1900
      %v1902 = vrsqrt.pop %v1901
      %s1903 = vtos %v1902
      %v1904 = vstv %s1903
      %v1905 = vmul.f32 %v1894, %v1904
      %v1906 = vmul.f32 %v1895, %v1904
      %v1907 = vmul.f32 %v1896, %v1904
      %v1908 = vmul.f32 %v1897, %v1904
      %v1909 = vmul.f32 %v1898, %v1904
      %v1910 = vmul.f32 %v1899, %v1904
      %vm1911 = vcmp.ge.f32.partialorder %v1905, 0.0
      %vm1912 = vcmp.ge.f32.partialorder %v1906, 0.0
      %vm1913 = vcmp.ge.f32.partialorder %v1907, 0.0
      %vm1914 = vcmp.ge.f32.partialorder %v1908, 0.0
      %vm1915 = vcmp.ge.f32.partialorder %v1909, 0.0
      %vm1916 = vcmp.ge.f32.partialorder %v1910, 0.0
      %v1917 = vmul.f32 %v1905, 0.01
      %v1918 = vmul.f32 %v1906, 0.01
      %v1919 = vmul.f32 %v1907, 0.01
      %v1920 = vmul.f32 %v1908, 0.01
      %v1921 = vmul.f32 %v1909, 0.01
      %v1922 = vmul.f32 %v1910, 0.01
      %v1923 = vsel %vm1911, %v1905, %v1917
      %v1924 = vsel %vm1912, %v1906, %v1918
      %v1925 = vsel %vm1913, %v1907, %v1919
      %v1926 = vsel %vm1914, %v1908, %v1920
      %v1927 = vsel %vm1915, %v1909, %v1921
      %v1928 = vsel %vm1916, %v1910, %v1922
      %1929 = vst [vmem:[#allocation2] sm:$0xff] 0
      %1930 = vst [vmem:[#allocation2 + $0x8] sm:$0xff] 0
      %1931 = vst [vmem:[#allocation2 + $0x10] sm:$0xf] 0
      %1932 = vst [vmem:[#allocation2 + $0x14] sm:$0xff] 0
      %1933 = vst [vmem:[#allocation2 + $0x1c] sm:$0xff] 0
      %1934 = vst [vmem:[#allocation2 + $0x24] sm:$0xf] 0
      %v1935 = vmul.f32 %v1923, %v1645
      %v1936 = vmul.f32 %v1924, %v1649
      %v1937 = vmul.f32 %v1925, %v1653
      %v1938 = vmul.f32 %v1926, %v1645
      %v1939 = vmul.f32 %v1927, %v1649
      %v1940 = vmul.f32 %v1928, %v1653
      %v1941 = vpack.c.bf16 %v1938, %v1935
      %v1942 = vpack.c.bf16 %v1939, %v1936
      %v1943 = vpack.c.bf16 %v1940, %v1937
      %v1947 = vunpack.c.l.b16 %v1941
      %v1948 = vunpack.c.l.b16 %v1942
      %v1949 = vunpack.c.l.b16 %v1943
      %v1950 = vunpack.c.h.b16 %v1941
      %v1951 = vunpack.c.h.b16 %v1942
      %v1952 = vunpack.c.h.b16 %v1943
      %v1953 = vpack.c.b16 %v1948, %v1947
      %v1954 = vpack.c.b16 %v1949, %v1949
      %v1955 = vpack.c.b16 %v1951, %v1950
      %v1956 = vpack.c.b16 %v1952, %v1952
      %1961 = vst [vmem:[#allocation2 + $0x4] sm:$0xff] %v1953
      %1962 = vst [vmem:[#allocation2 + $0xc] sm:$0xf] %v1954
      %1963 = vst [vmem:[#allocation2 + $0x18] sm:$0xff] %v1955
      %1964 = vst [vmem:[#allocation2 + $0x20] sm:$0xf] %v1956
      %v1965 = vld [vmem:[#allocation2] sm:$0xff]
      %v1966 = vld [vmem:[#allocation2 + $0x8] sm:$0xff]
      %v1967 = vld [vmem:[#allocation2 + $0x10] sm:$0xf]
      %v1968 = vld [vmem:[#allocation2 + $0x14] sm:$0xff]
      %v1969 = vld [vmem:[#allocation2 + $0x1c] sm:$0xff]
      %v1970 = vld [vmem:[#allocation2 + $0x24] sm:$0xf]
      %v1971 = vld [vmem:[%s6] sm:$0xf]
      %s1972 = scalar_lea.vmem %s6, 4
      %v1973 = vld [vmem:[%s1972] sm:$0xf]
      %v1978 = vunpack.c.l.b16 %v1965
      %v1979 = vunpack.c.h.b16 %v1965
      %v1980 = vunpack.c.l.b16 %v1966
      %v1981 = vunpack.c.h.b16 %v1966
      %v1982 = vunpack.c.l.b16 %v1968
      %v1983 = vunpack.c.h.b16 %v1968
      %v1984 = vunpack.c.l.b16 %v1969
      %v1985 = vunpack.c.h.b16 %v1969
      %v1986 = vpack.c.b16 %v1982, %v1978
      %v1987 = vpack.c.b16 %v1983, %v1979
      %v1988 = vpack.c.b16 %v1984, %v1980
      %v1989 = vpack.c.b16 %v1985, %v1981
      %1990 = vrot.lane.b32.xlu0 %v1986, 18
      %v1991 = vpop.permute.xlu0 %1990
      %1992 = vrot.lane.b32.xlu0 %v1987, 18
      %v1993 = vpop.permute.xlu0 %1992
      %1994 = vrot.lane.b32.xlu0 %v1988, 18
      %v1995 = vpop.permute.xlu0 %1994
      %1996 = vrot.lane.b32.xlu0 %v1989, 18
      %v1997 = vpop.permute.xlu0 %1996
      %vm1998 = vcmask 146432
      %v1999 = vsel %vm1998, %v1991, %v1993
      %v2000 = vsel %vm1998, %v1993, %v1995
      %v2001 = vsel %vm1998, %v1995, %v1997
      %v2006 = vsel %vm1760, %v1973, 0
      %2008 = vmatprep.subr.bf16.mxu0 0
      %2009 = vmatpush1.bf16.msra.mxu0 0
      %2010 = vmatprep.subr.bf16.mxu0 0
      %2011 = vmatpush1.bf16.msra.mxu0 0
      %2012 = vmatprep.subr.bf16.mxu0 0
      %2013 = vmatpush1.bf16.msra.mxu0 0
      %2014 = vmatprep.subr.bf16.mxu0 0
      %2015 = vmatpush1.bf16.msra.mxu0 0
      %2016 = vmatprep.subr.bf16.mxu0 0
      %2017 = vmatpush1.bf16.msra.mxu0 0
      %2018 = vmatprep.subr.bf16.mxu0 0
      %2019 = vmatpush1.bf16.msra.mxu0 0
      %2020 = vmatprep.subr.bf16.mxu0 0
      %2021 = vmatpush1.bf16.msra.mxu0 0
      %2022 = vmatprep.subr.bf16.mxu0 %v2000
      %2023 = vmatpush1.bf16.msra.mxu0 %v1999
      %2024 = vmatprep.subr.bf16.mxu0 0
      %2025 = vmatpush2.bf16.msra.mxu0 0
      %2026 = vmatprep.subr.bf16.mxu0 0
      %2027 = vmatpush2.bf16.msra.mxu0 0
      %2028 = vmatprep.subr.bf16.mxu0 0
      %2029 = vmatpush2.bf16.msra.mxu0 0
      %2030 = vmatprep.subr.bf16.mxu0 0
      %2031 = vmatpush2.bf16.msra.mxu0 0
      %2032 = vmatprep.subr.bf16.mxu0 0
      %2033 = vmatpush2.bf16.msra.mxu0 0
      %2034 = vmatprep.subr.bf16.mxu0 0
      %2035 = vmatpush2.bf16.msra.mxu0 0
      %2036 = vmatprep.subr.bf16.mxu0 0
      %2037 = vmatpush2.bf16.msra.mxu0 0
      %2038 = vmatprep.subr.bf16.mxu0 0
      %2039 = vmatpush2.bf16.msra.mxu0 0
      %2040 = vmatprep.mubr.bf16.mxu0 0
      %2041 = vmatmul.mubr.bf16.gmra.mxu0 %v2006
      %v2042 = vpop.f32.mrf.mxu0
      %v2043 = vadd.f32 0.0, %v2042
      %v2044 = vpop.f32.mrf.mxu0
      %v2045 = vadd.f32 0.0, %v2044
      %v2046 = vpop.f32.mrf.mxu0
      %v2047 = vpop.f32.mrf.mxu0
      %2048 = vdwg.mxu0
      %2049 = vmatprep.subr.bf16.mxu0 0
      %2050 = vmatpush1.bf16.msra.mxu0 0
      %2051 = vmatprep.subr.bf16.mxu0 0
      %2052 = vmatpush1.bf16.msra.mxu0 0
      %2053 = vmatprep.subr.bf16.mxu0 0
      %2054 = vmatpush1.bf16.msra.mxu0 0
      %2055 = vmatprep.subr.bf16.mxu0 0
      %2056 = vmatpush1.bf16.msra.mxu0 0
      %2057 = vmatprep.subr.bf16.mxu0 0
      %2058 = vmatpush1.bf16.msra.mxu0 0
      %2059 = vmatprep.subr.bf16.mxu0 0
      %2060 = vmatpush1.bf16.msra.mxu0 0
      %2061 = vmatprep.subr.bf16.mxu0 0
      %2062 = vmatpush1.bf16.msra.mxu0 0
      %2063 = vmatprep.subr.bf16.mxu0 0
      %2064 = vmatpush1.bf16.msra.mxu0 %v2001
      %2065 = vmatprep.subr.bf16.mxu0 0
      %2066 = vmatpush2.bf16.msra.mxu0 0
      %2067 = vmatprep.subr.bf16.mxu0 0
      %2068 = vmatpush2.bf16.msra.mxu0 0
      %2069 = vmatprep.subr.bf16.mxu0 0
      %2070 = vmatpush2.bf16.msra.mxu0 0
      %2071 = vmatprep.subr.bf16.mxu0 0
      %2072 = vmatpush2.bf16.msra.mxu0 0
      %2073 = vmatprep.subr.bf16.mxu0 0
      %2074 = vmatpush2.bf16.msra.mxu0 0
      %2075 = vmatprep.subr.bf16.mxu0 0
      %2076 = vmatpush2.bf16.msra.mxu0 0
      %2077 = vmatprep.subr.bf16.mxu0 0
      %2078 = vmatpush2.bf16.msra.mxu0 0
      %2079 = vmatprep.subr.bf16.mxu0 0
      %2080 = vmatpush2.bf16.msra.mxu0 0
      %2081 = vmatprep.mubr.bf16.mxu0 0
      %2082 = vmatmul.mubr.bf16.gmra.mxu0 %v2006
      %v2083 = vpop.f32.mrf.mxu0
      %v2084 = vadd.f32 0.0, %v2083
      %v2085 = vpop.f32.mrf.mxu0
      %v2086 = vpop.f32.mrf.mxu0
      %v2087 = vpop.f32.mrf.mxu0
      %2088 = vdwg.mxu0
      %2089 = vrot.lane.b32.xlu0 %v1986, 19
      %v2090 = vpop.permute.xlu0 %2089
      %2091 = vrot.lane.b32.xlu0 %v1987, 19
      %v2092 = vpop.permute.xlu0 %2091
      %2093 = vrot.lane.b32.xlu0 %v1988, 19
      %v2094 = vpop.permute.xlu0 %2093
      %2095 = vrot.lane.b32.xlu0 %v1989, 19
      %v2096 = vpop.permute.xlu0 %2095
      %vm2097 = vcmask 154624
      %v2098 = vsel %vm2097, %v2090, %v2092
      %v2099 = vsel %vm2097, %v2092, %v2094
      %v2100 = vsel %vm2097, %v2094, %v2096
      %v2105 = vsel %vm1760, %v1971, 0
      %2107 = vmatprep.subr.bf16.mxu0 0
      %2108 = vmatpush1.bf16.msra.mxu0 0
      %2109 = vmatprep.subr.bf16.mxu0 0
      %2110 = vmatpush1.bf16.msra.mxu0 0
      %2111 = vmatprep.subr.bf16.mxu0 0
      %2112 = vmatpush1.bf16.msra.mxu0 0
      %2113 = vmatprep.subr.bf16.mxu0 0
      %2114 = vmatpush1.bf16.msra.mxu0 0
      %2115 = vmatprep.subr.bf16.mxu0 0
      %2116 = vmatpush1.bf16.msra.mxu0 0
      %2117 = vmatprep.subr.bf16.mxu0 0
      %2118 = vmatpush1.bf16.msra.mxu0 0
      %2119 = vmatprep.subr.bf16.mxu0 0
      %2120 = vmatpush1.bf16.msra.mxu0 0
      %2121 = vmatprep.subr.bf16.mxu0 %v2099
      %2122 = vmatpush1.bf16.msra.mxu0 %v2098
      %2123 = vmatprep.subr.bf16.mxu0 0
      %2124 = vmatpush2.bf16.msra.mxu0 0
      %2125 = vmatprep.subr.bf16.mxu0 0
      %2126 = vmatpush2.bf16.msra.mxu0 0
      %2127 = vmatprep.subr.bf16.mxu0 0
      %2128 = vmatpush2.bf16.msra.mxu0 0
      %2129 = vmatprep.subr.bf16.mxu0 0
      %2130 = vmatpush2.bf16.msra.mxu0 0
      %2131 = vmatprep.subr.bf16.mxu0 0
      %2132 = vmatpush2.bf16.msra.mxu0 0
      %2133 = vmatprep.subr.bf16.mxu0 0
      %2134 = vmatpush2.bf16.msra.mxu0 0
      %2135 = vmatprep.subr.bf16.mxu0 0
      %2136 = vmatpush2.bf16.msra.mxu0 0
      %2137 = vmatprep.subr.bf16.mxu0 0
      %2138 = vmatpush2.bf16.msra.mxu0 0
      %2139 = vmatprep.mubr.bf16.mxu0 0
      %2140 = vmatmul.mubr.bf16.gmra.mxu0 %v2105
      %v2141 = vpop.f32.mrf.mxu0
      %v2142 = vadd.f32 %v2043, %v2141
      %v2143 = vpop.f32.mrf.mxu0
      %v2144 = vadd.f32 %v2045, %v2143
      %v2145 = vpop.f32.mrf.mxu0
      %v2146 = vpop.f32.mrf.mxu0
      %2147 = vdwg.mxu0
      %2148 = vmatprep.subr.bf16.mxu0 0
      %2149 = vmatpush1.bf16.msra.mxu0 0
      %2150 = vmatprep.subr.bf16.mxu0 0
      %2151 = vmatpush1.bf16.msra.mxu0 0
      %2152 = vmatprep.subr.bf16.mxu0 0
      %2153 = vmatpush1.bf16.msra.mxu0 0
      %2154 = vmatprep.subr.bf16.mxu0 0
      %2155 = vmatpush1.bf16.msra.mxu0 0
      %2156 = vmatprep.subr.bf16.mxu0 0
      %2157 = vmatpush1.bf16.msra.mxu0 0
      %2158 = vmatprep.subr.bf16.mxu0 0
      %2159 = vmatpush1.bf16.msra.mxu0 0
      %2160 = vmatprep.subr.bf16.mxu0 0
      %2161 = vmatpush1.bf16.msra.mxu0 0
      %2162 = vmatprep.subr.bf16.mxu0 0
      %2163 = vmatpush1.bf16.msra.mxu0 %v2100
      %2164 = vmatprep.subr.bf16.mxu0 0
      %2165 = vmatpush2.bf16.msra.mxu0 0
      %2166 = vmatprep.subr.bf16.mxu0 0
      %2167 = vmatpush2.bf16.msra.mxu0 0
      %2168 = vmatprep.subr.bf16.mxu0 0
      %2169 = vmatpush2.bf16.msra.mxu0 0
      %2170 = vmatprep.subr.bf16.mxu0 0
      %2171 = vmatpush2.bf16.msra.mxu0 0
      %2172 = vmatprep.subr.bf16.mxu0 0
      %2173 = vmatpush2.bf16.msra.mxu0 0
      %2174 = vmatprep.subr.bf16.mxu0 0
      %2175 = vmatpush2.bf16.msra.mxu0 0
      %2176 = vmatprep.subr.bf16.mxu0 0
      %2177 = vmatpush2.bf16.msra.mxu0 0
      %2178 = vmatprep.subr.bf16.mxu0 0
      %2179 = vmatpush2.bf16.msra.mxu0 0
      %2180 = vmatprep.mubr.bf16.mxu0 0
      %2181 = vmatmul.mubr.bf16.gmra.mxu0 %v2105
      %v2182 = vpop.f32.mrf.mxu0
      %v2183 = vadd.f32 %v2084, %v2182
      %v2184 = vpop.f32.mrf.mxu0
      %v2185 = vpop.f32.mrf.mxu0
      %v2186 = vpop.f32.mrf.mxu0
      %2187 = vdwg.mxu0
      %s2188 = scalar_lea.vmem %s6, 8
      %v2189 = vld [vmem:[%s2188] sm:$0xf]
      %2190 = vrot.lane.b32.xlu0 %v1986, 17
      %v2191 = vpop.permute.xlu0 %2190
      %2192 = vrot.lane.b32.xlu0 %v1987, 17
      %v2193 = vpop.permute.xlu0 %2192
      %2194 = vrot.lane.b32.xlu0 %v1988, 17
      %v2195 = vpop.permute.xlu0 %2194
      %2196 = vrot.lane.b32.xlu0 %v1989, 17
      %v2197 = vpop.permute.xlu0 %2196
      %vm2198 = vcmask 138240
      %v2199 = vsel %vm2198, %v2191, %v2193
      %v2200 = vsel %vm2198, %v2193, %v2195
      %v2201 = vsel %vm2198, %v2195, %v2197
      %v2206 = vsel %vm1760, %v2189, 0
      %2208 = vmatprep.subr.bf16.mxu0 0
      %2209 = vmatpush1.bf16.msra.mxu0 0
      %2210 = vmatprep.subr.bf16.mxu0 0
      %2211 = vmatpush1.bf16.msra.mxu0 0
      %2212 = vmatprep.subr.bf16.mxu0 0
      %2213 = vmatpush1.bf16.msra.mxu0 0
      %2214 = vmatprep.subr.bf16.mxu0 0
      %2215 = vmatpush1.bf16.msra.mxu0 0
      %2216 = vmatprep.subr.bf16.mxu0 0
      %2217 = vmatpush1.bf16.msra.mxu0 0
      %2218 = vmatprep.subr.bf16.mxu0 0
      %2219 = vmatpush1.bf16.msra.mxu0 0
      %2220 = vmatprep.subr.bf16.mxu0 0
      %2221 = vmatpush1.bf16.msra.mxu0 0
      %2222 = vmatprep.subr.bf16.mxu0 %v2200
      %2223 = vmatpush1.bf16.msra.mxu0 %v2199
      %2224 = vmatprep.subr.bf16.mxu0 0
      %2225 = vmatpush2.bf16.msra.mxu0 0
      %2226 = vmatprep.subr.bf16.mxu0 0
      %2227 = vmatpush2.bf16.msra.mxu0 0
      %2228 = vmatprep.subr.bf16.mxu0 0
      %2229 = vmatpush2.bf16.msra.mxu0 0
      %2230 = vmatprep.subr.bf16.mxu0 0
      %2231 = vmatpush2.bf16.msra.mxu0 0
      %2232 = vmatprep.subr.bf16.mxu0 0
      %2233 = vmatpush2.bf16.msra.mxu0 0
      %2234 = vmatprep.subr.bf16.mxu0 0
      %2235 = vmatpush2.bf16.msra.mxu0 0
      %2236 = vmatprep.subr.bf16.mxu0 0
      %2237 = vmatpush2.bf16.msra.mxu0 0
      %2238 = vmatprep.subr.bf16.mxu0 0
      %2239 = vmatpush2.bf16.msra.mxu0 0
      %2240 = vmatprep.mubr.bf16.mxu0 0
      %2241 = vmatmul.mubr.bf16.gmra.mxu0 %v2206
      %v2242 = vpop.f32.mrf.mxu0
      %v2243 = vadd.f32 0.0, %v2242
      %v2244 = vpop.f32.mrf.mxu0
      %v2245 = vadd.f32 0.0, %v2244
      %v2246 = vpop.f32.mrf.mxu0
      %v2247 = vpop.f32.mrf.mxu0
      %2248 = vdwg.mxu0
      %2249 = vmatprep.subr.bf16.mxu0 0
      %2250 = vmatpush1.bf16.msra.mxu0 0
      %2251 = vmatprep.subr.bf16.mxu0 0
      %2252 = vmatpush1.bf16.msra.mxu0 0
      %2253 = vmatprep.subr.bf16.mxu0 0
      %2254 = vmatpush1.bf16.msra.mxu0 0
      %2255 = vmatprep.subr.bf16.mxu0 0
      %2256 = vmatpush1.bf16.msra.mxu0 0
      %2257 = vmatprep.subr.bf16.mxu0 0
      %2258 = vmatpush1.bf16.msra.mxu0 0
      %2259 = vmatprep.subr.bf16.mxu0 0
      %2260 = vmatpush1.bf16.msra.mxu0 0
      %2261 = vmatprep.subr.bf16.mxu0 0
      %2262 = vmatpush1.bf16.msra.mxu0 0
      %2263 = vmatprep.subr.bf16.mxu0 0
      %2264 = vmatpush1.bf16.msra.mxu0 %v2201
      %2265 = vmatprep.subr.bf16.mxu0 0
      %2266 = vmatpush2.bf16.msra.mxu0 0
      %2267 = vmatprep.subr.bf16.mxu0 0
      %2268 = vmatpush2.bf16.msra.mxu0 0
      %2269 = vmatprep.subr.bf16.mxu0 0
      %2270 = vmatpush2.bf16.msra.mxu0 0
      %2271 = vmatprep.subr.bf16.mxu0 0
      %2272 = vmatpush2.bf16.msra.mxu0 0
      %2273 = vmatprep.subr.bf16.mxu0 0
      %2274 = vmatpush2.bf16.msra.mxu0 0
      %2275 = vmatprep.subr.bf16.mxu0 0
      %2276 = vmatpush2.bf16.msra.mxu0 0
      %2277 = vmatprep.subr.bf16.mxu0 0
      %2278 = vmatpush2.bf16.msra.mxu0 0
      %2279 = vmatprep.subr.bf16.mxu0 0
      %2280 = vmatpush2.bf16.msra.mxu0 0
      %2281 = vmatprep.mubr.bf16.mxu0 0
      %2282 = vmatmul.mubr.bf16.gmra.mxu0 %v2206
      %v2283 = vpop.f32.mrf.mxu0
      %v2284 = vadd.f32 0.0, %v2283
      %v2285 = vpop.f32.mrf.mxu0
      %v2286 = vpop.f32.mrf.mxu0
      %v2287 = vpop.f32.mrf.mxu0
      %2288 = vdwg.mxu0
      %v2289 = vadd.f32 %v2142, %v2243
      %v2290 = vadd.f32 %v2144, %v2245
      %v2291 = vadd.f32 %v2183, %v2284
      %s2292 = scalar_lea.vmem %s6, 12
      %v2293 = vld [vmem:[%s2292] sm:$0xf]
      %2294 = vrot.lane.b32.xlu0 %v1986, 1
      %v2295 = vpop.permute.xlu0 %2294
      %2296 = vrot.lane.b32.xlu0 %v1987, 1
      %v2297 = vpop.permute.xlu0 %2296
      %2298 = vrot.lane.b32.xlu0 %v1988, 1
      %v2299 = vpop.permute.xlu0 %2298
      %2300 = vrot.lane.b32.xlu0 %v1989, 1
      %v2301 = vpop.permute.xlu0 %2300
      %vm2302 = vcmask 7168
      %v2303 = vsel %vm2302, %v2295, %v2297
      %v2304 = vsel %vm2302, %v2297, %v2299
      %v2305 = vsel %vm2302, %v2299, %v2301
      %v2310 = vsel %vm1760, %v2293, 0
      %2312 = vmatprep.subr.bf16.mxu0 0
      %2313 = vmatpush1.bf16.msra.mxu0 0
      %2314 = vmatprep.subr.bf16.mxu0 0
      %2315 = vmatpush1.bf16.msra.mxu0 0
      %2316 = vmatprep.subr.bf16.mxu0 0
      %2317 = vmatpush1.bf16.msra.mxu0 0
      %2318 = vmatprep.subr.bf16.mxu0 0
      %2319 = vmatpush1.bf16.msra.mxu0 0
      %2320 = vmatprep.subr.bf16.mxu0 0
      %2321 = vmatpush1.bf16.msra.mxu0 0
      %2322 = vmatprep.subr.bf16.mxu0 0
      %2323 = vmatpush1.bf16.msra.mxu0 0
      %2324 = vmatprep.subr.bf16.mxu0 0
      %2325 = vmatpush1.bf16.msra.mxu0 0
      %2326 = vmatprep.subr.bf16.mxu0 %v2304
      %2327 = vmatpush1.bf16.msra.mxu0 %v2303
      %2328 = vmatprep.subr.bf16.mxu0 0
      %2329 = vmatpush2.bf16.msra.mxu0 0
      %2330 = vmatprep.subr.bf16.mxu0 0
      %2331 = vmatpush2.bf16.msra.mxu0 0
      %2332 = vmatprep.subr.bf16.mxu0 0
      %2333 = vmatpush2.bf16.msra.mxu0 0
      %2334 = vmatprep.subr.bf16.mxu0 0
      %2335 = vmatpush2.bf16.msra.mxu0 0
      %2336 = vmatprep.subr.bf16.mxu0 0
      %2337 = vmatpush2.bf16.msra.mxu0 0
      %2338 = vmatprep.subr.bf16.mxu0 0
      %2339 = vmatpush2.bf16.msra.mxu0 0
      %2340 = vmatprep.subr.bf16.mxu0 0
      %2341 = vmatpush2.bf16.msra.mxu0 0
      %2342 = vmatprep.subr.bf16.mxu0 0
      %2343 = vmatpush2.bf16.msra.mxu0 0
      %2344 = vmatprep.mubr.bf16.mxu0 0
      %2345 = vmatmul.mubr.bf16.gmra.mxu0 %v2310
      %v2346 = vpop.f32.mrf.mxu0
      %v2347 = vadd.f32 0.0, %v2346
      %v2348 = vpop.f32.mrf.mxu0
      %v2349 = vadd.f32 0.0, %v2348
      %v2350 = vpop.f32.mrf.mxu0
      %v2351 = vpop.f32.mrf.mxu0
      %2352 = vdwg.mxu0
      %2353 = vmatprep.subr.bf16.mxu0 0
      %2354 = vmatpush1.bf16.msra.mxu0 0
      %2355 = vmatprep.subr.bf16.mxu0 0
      %2356 = vmatpush1.bf16.msra.mxu0 0
      %2357 = vmatprep.subr.bf16.mxu0 0
      %2358 = vmatpush1.bf16.msra.mxu0 0
      %2359 = vmatprep.subr.bf16.mxu0 0
      %2360 = vmatpush1.bf16.msra.mxu0 0
      %2361 = vmatprep.subr.bf16.mxu0 0
      %2362 = vmatpush1.bf16.msra.mxu0 0
      %2363 = vmatprep.subr.bf16.mxu0 0
      %2364 = vmatpush1.bf16.msra.mxu0 0
      %2365 = vmatprep.subr.bf16.mxu0 0
      %2366 = vmatpush1.bf16.msra.mxu0 0
      %2367 = vmatprep.subr.bf16.mxu0 0
      %2368 = vmatpush1.bf16.msra.mxu0 %v2305
      %2369 = vmatprep.subr.bf16.mxu0 0
      %2370 = vmatpush2.bf16.msra.mxu0 0
      %2371 = vmatprep.subr.bf16.mxu0 0
      %2372 = vmatpush2.bf16.msra.mxu0 0
      %2373 = vmatprep.subr.bf16.mxu0 0
      %2374 = vmatpush2.bf16.msra.mxu0 0
      %2375 = vmatprep.subr.bf16.mxu0 0
      %2376 = vmatpush2.bf16.msra.mxu0 0
      %2377 = vmatprep.subr.bf16.mxu0 0
      %2378 = vmatpush2.bf16.msra.mxu0 0
      %2379 = vmatprep.subr.bf16.mxu0 0
      %2380 = vmatpush2.bf16.msra.mxu0 0
      %2381 = vmatprep.subr.bf16.mxu0 0
      %2382 = vmatpush2.bf16.msra.mxu0 0
      %2383 = vmatprep.subr.bf16.mxu0 0
      %2384 = vmatpush2.bf16.msra.mxu0 0
      %2385 = vmatprep.mubr.bf16.mxu0 0
      %2386 = vmatmul.mubr.bf16.gmra.mxu0 %v2310
      %v2387 = vpop.f32.mrf.mxu0
      %v2388 = vadd.f32 0.0, %v2387
      %v2389 = vpop.f32.mrf.mxu0
      %v2390 = vpop.f32.mrf.mxu0
      %v2391 = vpop.f32.mrf.mxu0
      %2392 = vdwg.mxu0
      %v2393 = vadd.f32 %v2289, %v2347
      %v2394 = vadd.f32 %v2290, %v2349
      %v2395 = vadd.f32 %v2291, %v2388
      %s2396 = scalar_lea.vmem %s6, 16
      %v2397 = vld [vmem:[%s2396] sm:$0xf]
      %v2402 = vsel %vm1760, %v2397, 0
      %2404 = vmatprep.subr.bf16.mxu0 0
      %2405 = vmatpush1.bf16.msra.mxu0 0
      %2406 = vmatprep.subr.bf16.mxu0 0
      %2407 = vmatpush1.bf16.msra.mxu0 0
      %2408 = vmatprep.subr.bf16.mxu0 0
      %2409 = vmatpush1.bf16.msra.mxu0 0
      %2410 = vmatprep.subr.bf16.mxu0 0
      %2411 = vmatpush1.bf16.msra.mxu0 0
      %2412 = vmatprep.subr.bf16.mxu0 0
      %2413 = vmatpush1.bf16.msra.mxu0 0
      %2414 = vmatprep.subr.bf16.mxu0 0
      %2415 = vmatpush1.bf16.msra.mxu0 0
      %2416 = vmatprep.subr.bf16.mxu0 0
      %2417 = vmatpush1.bf16.msra.mxu0 0
      %2418 = vmatprep.subr.bf16.mxu0 %v1988
      %2419 = vmatpush1.bf16.msra.mxu0 %v1987
      %2420 = vmatprep.subr.bf16.mxu0 0
      %2421 = vmatpush2.bf16.msra.mxu0 0
      %2422 = vmatprep.subr.bf16.mxu0 0
      %2423 = vmatpush2.bf16.msra.mxu0 0
      %2424 = vmatprep.subr.bf16.mxu0 0
      %2425 = vmatpush2.bf16.msra.mxu0 0
      %2426 = vmatprep.subr.bf16.mxu0 0
      %2427 = vmatpush2.bf16.msra.mxu0 0
      %2428 = vmatprep.subr.bf16.mxu0 0
      %2429 = vmatpush2.bf16.msra.mxu0 0
      %2430 = vmatprep.subr.bf16.mxu0 0
      %2431 = vmatpush2.bf16.msra.mxu0 0
      %2432 = vmatprep.subr.bf16.mxu0 0
      %2433 = vmatpush2.bf16.msra.mxu0 0
      %2434 = vmatprep.subr.bf16.mxu0 0
      %2435 = vmatpush2.bf16.msra.mxu0 0
      %2436 = vmatprep.mubr.bf16.mxu0 0
      %2437 = vmatmul.mubr.bf16.gmra.mxu0 %v2402
      %v2438 = vpop.f32.mrf.mxu0
      %v2439 = vadd.f32 0.0, %v2438
      %v2440 = vpop.f32.mrf.mxu0
      %v2441 = vadd.f32 0.0, %v2440
      %v2442 = vpop.f32.mrf.mxu0
      %v2443 = vpop.f32.mrf.mxu0
      %2444 = vdwg.mxu0
      %2445 = vmatprep.subr.bf16.mxu0 0
      %2446 = vmatpush1.bf16.msra.mxu0 0
      %2447 = vmatprep.subr.bf16.mxu0 0
      %2448 = vmatpush1.bf16.msra.mxu0 0
      %2449 = vmatprep.subr.bf16.mxu0 0
      %2450 = vmatpush1.bf16.msra.mxu0 0
      %2451 = vmatprep.subr.bf16.mxu0 0
      %2452 = vmatpush1.bf16.msra.mxu0 0
      %2453 = vmatprep.subr.bf16.mxu0 0
      %2454 = vmatpush1.bf16.msra.mxu0 0
      %2455 = vmatprep.subr.bf16.mxu0 0
      %2456 = vmatpush1.bf16.msra.mxu0 0
      %2457 = vmatprep.subr.bf16.mxu0 0
      %2458 = vmatpush1.bf16.msra.mxu0 0
      %2459 = vmatprep.subr.bf16.mxu0 0
      %2460 = vmatpush1.bf16.msra.mxu0 %v1989
      %2461 = vmatprep.subr.bf16.mxu0 0
      %2462 = vmatpush2.bf16.msra.mxu0 0
      %2463 = vmatprep.subr.bf16.mxu0 0
      %2464 = vmatpush2.bf16.msra.mxu0 0
      %2465 = vmatprep.subr.bf16.mxu0 0
      %2466 = vmatpush2.bf16.msra.mxu0 0
      %2467 = vmatprep.subr.bf16.mxu0 0
      %2468 = vmatpush2.bf16.msra.mxu0 0
      %2469 = vmatprep.subr.bf16.mxu0 0
      %2470 = vmatpush2.bf16.msra.mxu0 0
      %2471 = vmatprep.subr.bf16.mxu0 0
      %2472 = vmatpush2.bf16.msra.mxu0 0
      %2473 = vmatprep.subr.bf16.mxu0 0
      %2474 = vmatpush2.bf16.msra.mxu0 0
      %2475 = vmatprep.subr.bf16.mxu0 0
      %2476 = vmatpush2.bf16.msra.mxu0 0
      %2477 = vmatprep.mubr.bf16.mxu0 0
      %2478 = vmatmul.mubr.bf16.gmra.mxu0 %v2402
      %v2479 = vpop.f32.mrf.mxu0
      %v2480 = vadd.f32 0.0, %v2479
      %v2481 = vpop.f32.mrf.mxu0
      %v2482 = vpop.f32.mrf.mxu0
      %v2483 = vpop.f32.mrf.mxu0
      %2484 = vdwg.mxu0
      %v2485 = vadd.f32 %v2393, %v2439
      %v2486 = vadd.f32 %v2394, %v2441
      %v2487 = vadd.f32 %v2395, %v2480
      %s2488 = scalar_lea.vmem %s6, 20
      %v2489 = vld [vmem:[%s2488] sm:$0xf]
      %v2492 = vunpack.c.l.b16 %v1967
      %v2493 = vunpack.c.l.b16 %v1970
      %v2494 = vpack.c.b16 %v2493, %v2492
      %2495 = vrot.lane.b32.xlu0 %v1987, 127
      %v2496 = vpop.permute.xlu0 %2495
      %2497 = vrot.lane.b32.xlu0 %v1988, 127
      %v2498 = vpop.permute.xlu0 %2497
      %2499 = vrot.lane.b32.xlu0 %v1989, 127
      %v2500 = vpop.permute.xlu0 %2499
      %2501 = vrot.lane.b32.xlu0 %v2494, 127
      %v2502 = vpop.permute.xlu0 %2501
      %v2503 = vsel %vm343, %v2496, %v2498
      %v2504 = vsel %vm343, %v2498, %v2500
      %v2505 = vsel %vm343, %v2500, %v2502
      %v2510 = vsel %vm1760, %v2489, 0
      %2512 = vmatprep.subr.bf16.mxu0 0
      %2513 = vmatpush1.bf16.msra.mxu0 0
      %2514 = vmatprep.subr.bf16.mxu0 0
      %2515 = vmatpush1.bf16.msra.mxu0 0
      %2516 = vmatprep.subr.bf16.mxu0 0
      %2517 = vmatpush1.bf16.msra.mxu0 0
      %2518 = vmatprep.subr.bf16.mxu0 0
      %2519 = vmatpush1.bf16.msra.mxu0 0
      %2520 = vmatprep.subr.bf16.mxu0 0
      %2521 = vmatpush1.bf16.msra.mxu0 0
      %2522 = vmatprep.subr.bf16.mxu0 0
      %2523 = vmatpush1.bf16.msra.mxu0 0
      %2524 = vmatprep.subr.bf16.mxu0 0
      %2525 = vmatpush1.bf16.msra.mxu0 0
      %2526 = vmatprep.subr.bf16.mxu0 %v2504
      %2527 = vmatpush1.bf16.msra.mxu0 %v2503
      %2528 = vmatprep.subr.bf16.mxu0 0
      %2529 = vmatpush2.bf16.msra.mxu0 0
      %2530 = vmatprep.subr.bf16.mxu0 0
      %2531 = vmatpush2.bf16.msra.mxu0 0
      %2532 = vmatprep.subr.bf16.mxu0 0
      %2533 = vmatpush2.bf16.msra.mxu0 0
      %2534 = vmatprep.subr.bf16.mxu0 0
      %2535 = vmatpush2.bf16.msra.mxu0 0
      %2536 = vmatprep.subr.bf16.mxu0 0
      %2537 = vmatpush2.bf16.msra.mxu0 0
      %2538 = vmatprep.subr.bf16.mxu0 0
      %2539 = vmatpush2.bf16.msra.mxu0 0
      %2540 = vmatprep.subr.bf16.mxu0 0
      %2541 = vmatpush2.bf16.msra.mxu0 0
      %2542 = vmatprep.subr.bf16.mxu0 0
      %2543 = vmatpush2.bf16.msra.mxu0 0
      %2544 = vmatprep.mubr.bf16.mxu0 0
      %2545 = vmatmul.mubr.bf16.gmra.mxu0 %v2510
      %v2546 = vpop.f32.mrf.mxu0
      %v2547 = vadd.f32 0.0, %v2546
      %v2548 = vpop.f32.mrf.mxu0
      %v2549 = vadd.f32 0.0, %v2548
      %v2550 = vpop.f32.mrf.mxu0
      %v2551 = vpop.f32.mrf.mxu0
      %2552 = vdwg.mxu0
      %2553 = vmatprep.subr.bf16.mxu0 0
      %2554 = vmatpush1.bf16.msra.mxu0 0
      %2555 = vmatprep.subr.bf16.mxu0 0
      %2556 = vmatpush1.bf16.msra.mxu0 0
      %2557 = vmatprep.subr.bf16.mxu0 0
      %2558 = vmatpush1.bf16.msra.mxu0 0
      %2559 = vmatprep.subr.bf16.mxu0 0
      %2560 = vmatpush1.bf16.msra.mxu0 0
      %2561 = vmatprep.subr.bf16.mxu0 0
      %2562 = vmatpush1.bf16.msra.mxu0 0
      %2563 = vmatprep.subr.bf16.mxu0 0
      %2564 = vmatpush1.bf16.msra.mxu0 0
      %2565 = vmatprep.subr.bf16.mxu0 0
      %2566 = vmatpush1.bf16.msra.mxu0 0
      %2567 = vmatprep.subr.bf16.mxu0 0
      %2568 = vmatpush1.bf16.msra.mxu0 %v2505
      %2569 = vmatprep.subr.bf16.mxu0 0
      %2570 = vmatpush2.bf16.msra.mxu0 0
      %2571 = vmatprep.subr.bf16.mxu0 0
      %2572 = vmatpush2.bf16.msra.mxu0 0
      %2573 = vmatprep.subr.bf16.mxu0 0
      %2574 = vmatpush2.bf16.msra.mxu0 0
      %2575 = vmatprep.subr.bf16.mxu0 0
      %2576 = vmatpush2.bf16.msra.mxu0 0
      %2577 = vmatprep.subr.bf16.mxu0 0
      %2578 = vmatpush2.bf16.msra.mxu0 0
      %2579 = vmatprep.subr.bf16.mxu0 0
      %2580 = vmatpush2.bf16.msra.mxu0 0
      %2581 = vmatprep.subr.bf16.mxu0 0
      %2582 = vmatpush2.bf16.msra.mxu0 0
      %2583 = vmatprep.subr.bf16.mxu0 0
      %2584 = vmatpush2.bf16.msra.mxu0 0
      %2585 = vmatprep.mubr.bf16.mxu0 0
      %2586 = vmatmul.mubr.bf16.gmra.mxu0 %v2510
      %v2587 = vpop.f32.mrf.mxu0
      %v2588 = vadd.f32 0.0, %v2587
      %v2589 = vpop.f32.mrf.mxu0
      %v2590 = vpop.f32.mrf.mxu0
      %v2591 = vpop.f32.mrf.mxu0
      %2592 = vdwg.mxu0
      %v2593 = vadd.f32 %v2485, %v2547
      %v2594 = vadd.f32 %v2486, %v2549
      %v2595 = vadd.f32 %v2487, %v2588
      %s2596 = scalar_lea.vmem %s6, 24
      %v2597 = vld [vmem:[%s2596] sm:$0xf]
      %2598 = vrot.lane.b32.xlu0 %v1987, 111
      %v2599 = vpop.permute.xlu0 %2598
      %2600 = vrot.lane.b32.xlu0 %v1988, 111
      %v2601 = vpop.permute.xlu0 %2600
      %2602 = vrot.lane.b32.xlu0 %v1989, 111
      %v2603 = vpop.permute.xlu0 %2602
      %2604 = vrot.lane.b32.xlu0 %v2494, 111
      %v2605 = vpop.permute.xlu0 %2604
      %vm2606 = vcmask 908288
      %v2607 = vsel %vm2606, %v2599, %v2601
      %v2608 = vsel %vm2606, %v2601, %v2603
      %v2609 = vsel %vm2606, %v2603, %v2605
      %v2614 = vsel %vm1760, %v2597, 0
      %2616 = vmatprep.subr.bf16.mxu0 0
      %2617 = vmatpush1.bf16.msra.mxu0 0
      %2618 = vmatprep.subr.bf16.mxu0 0
      %2619 = vmatpush1.bf16.msra.mxu0 0
      %2620 = vmatprep.subr.bf16.mxu0 0
      %2621 = vmatpush1.bf16.msra.mxu0 0
      %2622 = vmatprep.subr.bf16.mxu0 0
      %2623 = vmatpush1.bf16.msra.mxu0 0
      %2624 = vmatprep.subr.bf16.mxu0 0
      %2625 = vmatpush1.bf16.msra.mxu0 0
      %2626 = vmatprep.subr.bf16.mxu0 0
      %2627 = vmatpush1.bf16.msra.mxu0 0
      %2628 = vmatprep.subr.bf16.mxu0 0
      %2629 = vmatpush1.bf16.msra.mxu0 0
      %2630 = vmatprep.subr.bf16.mxu0 %v2608
      %2631 = vmatpush1.bf16.msra.mxu0 %v2607
      %2632 = vmatprep.subr.bf16.mxu0 0
      %2633 = vmatpush2.bf16.msra.mxu0 0
      %2634 = vmatprep.subr.bf16.mxu0 0
      %2635 = vmatpush2.bf16.msra.mxu0 0
      %2636 = vmatprep.subr.bf16.mxu0 0
      %2637 = vmatpush2.bf16.msra.mxu0 0
      %2638 = vmatprep.subr.bf16.mxu0 0
      %2639 = vmatpush2.bf16.msra.mxu0 0
      %2640 = vmatprep.subr.bf16.mxu0 0
      %2641 = vmatpush2.bf16.msra.mxu0 0
      %2642 = vmatprep.subr.bf16.mxu0 0
      %2643 = vmatpush2.bf16.msra.mxu0 0
      %2644 = vmatprep.subr.bf16.mxu0 0
      %2645 = vmatpush2.bf16.msra.mxu0 0
      %2646 = vmatprep.subr.bf16.mxu0 0
      %2647 = vmatpush2.bf16.msra.mxu0 0
      %2648 = vmatprep.mubr.bf16.mxu0 0
      %2649 = vmatmul.mubr.bf16.gmra.mxu0 %v2614
      %v2650 = vpop.f32.mrf.mxu0
      %v2651 = vadd.f32 0.0, %v2650
      %v2652 = vpop.f32.mrf.mxu0
      %v2653 = vadd.f32 0.0, %v2652
      %v2654 = vpop.f32.mrf.mxu0
      %v2655 = vpop.f32.mrf.mxu0
      %2656 = vdwg.mxu0
      %2657 = vmatprep.subr.bf16.mxu0 0
      %2658 = vmatpush1.bf16.msra.mxu0 0
      %2659 = vmatprep.subr.bf16.mxu0 0
      %2660 = vmatpush1.bf16.msra.mxu0 0
      %2661 = vmatprep.subr.bf16.mxu0 0
      %2662 = vmatpush1.bf16.msra.mxu0 0
      %2663 = vmatprep.subr.bf16.mxu0 0
      %2664 = vmatpush1.bf16.msra.mxu0 0
      %2665 = vmatprep.subr.bf16.mxu0 0
      %2666 = vmatpush1.bf16.msra.mxu0 0
      %2667 = vmatprep.subr.bf16.mxu0 0
      %2668 = vmatpush1.bf16.msra.mxu0 0
      %2669 = vmatprep.subr.bf16.mxu0 0
      %2670 = vmatpush1.bf16.msra.mxu0 0
      %2671 = vmatprep.subr.bf16.mxu0 0
      %2672 = vmatpush1.bf16.msra.mxu0 %v2609
      %2673 = vmatprep.subr.bf16.mxu0 0
      %2674 = vmatpush2.bf16.msra.mxu0 0
      %2675 = vmatprep.subr.bf16.mxu0 0
      %2676 = vmatpush2.bf16.msra.mxu0 0
      %2677 = vmatprep.subr.bf16.mxu0 0
      %2678 = vmatpush2.bf16.msra.mxu0 0
      %2679 = vmatprep.subr.bf16.mxu0 0
      %2680 = vmatpush2.bf16.msra.mxu0 0
      %2681 = vmatprep.subr.bf16.mxu0 0
      %2682 = vmatpush2.bf16.msra.mxu0 0
      %2683 = vmatprep.subr.bf16.mxu0 0
      %2684 = vmatpush2.bf16.msra.mxu0 0
      %2685 = vmatprep.subr.bf16.mxu0 0
      %2686 = vmatpush2.bf16.msra.mxu0 0
      %2687 = vmatprep.subr.bf16.mxu0 0
      %2688 = vmatpush2.bf16.msra.mxu0 0
      %2689 = vmatprep.mubr.bf16.mxu0 0
      %2690 = vmatmul.mubr.bf16.gmra.mxu0 %v2614
      %v2691 = vpop.f32.mrf.mxu0
      %v2692 = vadd.f32 0.0, %v2691
      %v2693 = vpop.f32.mrf.mxu0
      %v2694 = vpop.f32.mrf.mxu0
      %v2695 = vpop.f32.mrf.mxu0
      %2696 = vdwg.mxu0
      %v2697 = vadd.f32 %v2593, %v2651
      %v2698 = vadd.f32 %v2594, %v2653
      %v2699 = vadd.f32 %v2595, %v2692
      %s2700 = scalar_lea.vmem %s6, 28
      %v2701 = vld [vmem:[%s2700] sm:$0xf]
      %2702 = vrot.lane.b32.xlu0 %v1987, 110
      %v2703 = vpop.permute.xlu0 %2702
      %2704 = vrot.lane.b32.xlu0 %v1988, 110
      %v2705 = vpop.permute.xlu0 %2704
      %2706 = vrot.lane.b32.xlu0 %v1989, 110
      %v2707 = vpop.permute.xlu0 %2706
      %2708 = vrot.lane.b32.xlu0 %v2494, 110
      %v2709 = vpop.permute.xlu0 %2708
      %v2710 = vsel %vm752, %v2703, %v2705
      %v2711 = vsel %vm752, %v2705, %v2707
      %v2712 = vsel %vm752, %v2707, %v2709
      %v2717 = vsel %vm1760, %v2701, 0
      %2719 = vmatprep.subr.bf16.mxu0 0
      %2720 = vmatpush1.bf16.msra.mxu0 0
      %2721 = vmatprep.subr.bf16.mxu0 0
      %2722 = vmatpush1.bf16.msra.mxu0 0
      %2723 = vmatprep.subr.bf16.mxu0 0
      %2724 = vmatpush1.bf16.msra.mxu0 0
      %2725 = vmatprep.subr.bf16.mxu0 0
      %2726 = vmatpush1.bf16.msra.mxu0 0
      %2727 = vmatprep.subr.bf16.mxu0 0
      %2728 = vmatpush1.bf16.msra.mxu0 0
      %2729 = vmatprep.subr.bf16.mxu0 0
      %2730 = vmatpush1.bf16.msra.mxu0 0
      %2731 = vmatprep.subr.bf16.mxu0 0
      %2732 = vmatpush1.bf16.msra.mxu0 0
      %2733 = vmatprep.subr.bf16.mxu0 %v2711
      %2734 = vmatpush1.bf16.msra.mxu0 %v2710
      %2735 = vmatprep.subr.bf16.mxu0 0
      %2736 = vmatpush2.bf16.msra.mxu0 0
      %2737 = vmatprep.subr.bf16.mxu0 0
      %2738 = vmatpush2.bf16.msra.mxu0 0
      %2739 = vmatprep.subr.bf16.mxu0 0
      %2740 = vmatpush2.bf16.msra.mxu0 0
      %2741 = vmatprep.subr.bf16.mxu0 0
      %2742 = vmatpush2.bf16.msra.mxu0 0
      %2743 = vmatprep.subr.bf16.mxu0 0
      %2744 = vmatpush2.bf16.msra.mxu0 0
      %2745 = vmatprep.subr.bf16.mxu0 0
      %2746 = vmatpush2.bf16.msra.mxu0 0
      %2747 = vmatprep.subr.bf16.mxu0 0
      %2748 = vmatpush2.bf16.msra.mxu0 0
      %2749 = vmatprep.subr.bf16.mxu0 0
      %2750 = vmatpush2.bf16.msra.mxu0 0
      %2751 = vmatprep.mubr.bf16.mxu0 0
      %2752 = vmatmul.mubr.bf16.gmra.mxu0 %v2717
      %v2753 = vpop.f32.mrf.mxu0
      %v2754 = vadd.f32 0.0, %v2753
      %v2755 = vpop.f32.mrf.mxu0
      %v2756 = vadd.f32 0.0, %v2755
      %v2757 = vpop.f32.mrf.mxu0
      %v2758 = vpop.f32.mrf.mxu0
      %2759 = vdwg.mxu0
      %2760 = vmatprep.subr.bf16.mxu0 0
      %2761 = vmatpush1.bf16.msra.mxu0 0
      %2762 = vmatprep.subr.bf16.mxu0 0
      %2763 = vmatpush1.bf16.msra.mxu0 0
      %2764 = vmatprep.subr.bf16.mxu0 0
      %2765 = vmatpush1.bf16.msra.mxu0 0
      %2766 = vmatprep.subr.bf16.mxu0 0
      %2767 = vmatpush1.bf16.msra.mxu0 0
      %2768 = vmatprep.subr.bf16.mxu0 0
      %2769 = vmatpush1.bf16.msra.mxu0 0
      %2770 = vmatprep.subr.bf16.mxu0 0
      %2771 = vmatpush1.bf16.msra.mxu0 0
      %2772 = vmatprep.subr.bf16.mxu0 0
      %2773 = vmatpush1.bf16.msra.mxu0 0
      %2774 = vmatprep.subr.bf16.mxu0 0
      %2775 = vmatpush1.bf16.msra.mxu0 %v2712
      %2776 = vmatprep.subr.bf16.mxu0 0
      %2777 = vmatpush2.bf16.msra.mxu0 0
      %2778 = vmatprep.subr.bf16.mxu0 0
      %2779 = vmatpush2.bf16.msra.mxu0 0
      %2780 = vmatprep.subr.bf16.mxu0 0
      %2781 = vmatpush2.bf16.msra.mxu0 0
      %2782 = vmatprep.subr.bf16.mxu0 0
      %2783 = vmatpush2.bf16.msra.mxu0 0
      %2784 = vmatprep.subr.bf16.mxu0 0
      %2785 = vmatpush2.bf16.msra.mxu0 0
      %2786 = vmatprep.subr.bf16.mxu0 0
      %2787 = vmatpush2.bf16.msra.mxu0 0
      %2788 = vmatprep.subr.bf16.mxu0 0
      %2789 = vmatpush2.bf16.msra.mxu0 0
      %2790 = vmatprep.subr.bf16.mxu0 0
      %2791 = vmatpush2.bf16.msra.mxu0 0
      %2792 = vmatprep.mubr.bf16.mxu0 0
      %2793 = vmatmul.mubr.bf16.gmra.mxu0 %v2717
      %v2794 = vpop.f32.mrf.mxu0
      %v2795 = vadd.f32 0.0, %v2794
      %v2796 = vpop.f32.mrf.mxu0
      %v2797 = vpop.f32.mrf.mxu0
      %v2798 = vpop.f32.mrf.mxu0
      %2799 = vdwg.mxu0
      %v2800 = vadd.f32 %v2697, %v2754
      %v2801 = vadd.f32 %v2698, %v2756
      %v2802 = vadd.f32 %v2699, %v2795
      %s2803 = scalar_lea.vmem %s6, 32
      %v2804 = vld [vmem:[%s2803] sm:$0xf]
      %2805 = vrot.lane.b32.xlu0 %v1987, 109
      %v2806 = vpop.permute.xlu0 %2805
      %2807 = vrot.lane.b32.xlu0 %v1988, 109
      %v2808 = vpop.permute.xlu0 %2807
      %2809 = vrot.lane.b32.xlu0 %v1989, 109
      %v2810 = vpop.permute.xlu0 %2809
      %2811 = vrot.lane.b32.xlu0 %v2494, 109
      %v2812 = vpop.permute.xlu0 %2811
      %v2813 = vsel %vm899, %v2806, %v2808
      %v2814 = vsel %vm899, %v2808, %v2810
      %v2815 = vsel %vm899, %v2810, %v2812
      %v2820 = vsel %vm1760, %v2804, 0
      %2822 = vmatprep.subr.bf16.mxu0 0
      %2823 = vmatpush1.bf16.msra.mxu0 0
      %2824 = vmatprep.subr.bf16.mxu0 0
      %2825 = vmatpush1.bf16.msra.mxu0 0
      %2826 = vmatprep.subr.bf16.mxu0 0
      %2827 = vmatpush1.bf16.msra.mxu0 0
      %2828 = vmatprep.subr.bf16.mxu0 0
      %2829 = vmatpush1.bf16.msra.mxu0 0
      %2830 = vmatprep.subr.bf16.mxu0 0
      %2831 = vmatpush1.bf16.msra.mxu0 0
      %2832 = vmatprep.subr.bf16.mxu0 0
      %2833 = vmatpush1.bf16.msra.mxu0 0
      %2834 = vmatprep.subr.bf16.mxu0 0
      %2835 = vmatpush1.bf16.msra.mxu0 0
      %2836 = vmatprep.subr.bf16.mxu0 %v2814
      %2837 = vmatpush1.bf16.msra.mxu0 %v2813
      %2838 = vmatprep.subr.bf16.mxu0 0
      %2839 = vmatpush2.bf16.msra.mxu0 0
      %2840 = vmatprep.subr.bf16.mxu0 0
      %2841 = vmatpush2.bf16.msra.mxu0 0
      %2842 = vmatprep.subr.bf16.mxu0 0
      %2843 = vmatpush2.bf16.msra.mxu0 0
      %2844 = vmatprep.subr.bf16.mxu0 0
      %2845 = vmatpush2.bf16.msra.mxu0 0
      %2846 = vmatprep.subr.bf16.mxu0 0
      %2847 = vmatpush2.bf16.msra.mxu0 0
      %2848 = vmatprep.subr.bf16.mxu0 0
      %2849 = vmatpush2.bf16.msra.mxu0 0
      %2850 = vmatprep.subr.bf16.mxu0 0
      %2851 = vmatpush2.bf16.msra.mxu0 0
      %2852 = vmatprep.subr.bf16.mxu0 0
      %2853 = vmatpush2.bf16.msra.mxu0 0
      %2854 = vmatprep.mubr.bf16.mxu0 0
      %2855 = vmatmul.mubr.bf16.gmra.mxu0 %v2820
      %v2856 = vpop.f32.mrf.mxu0
      %v2857 = vadd.f32 0.0, %v2856
      %v2858 = vpop.f32.mrf.mxu0
      %v2859 = vadd.f32 0.0, %v2858
      %v2860 = vpop.f32.mrf.mxu0
      %v2861 = vpop.f32.mrf.mxu0
      %2862 = vdwg.mxu0
      %2863 = vmatprep.subr.bf16.mxu0 0
      %2864 = vmatpush1.bf16.msra.mxu0 0
      %2865 = vmatprep.subr.bf16.mxu0 0
      %2866 = vmatpush1.bf16.msra.mxu0 0
      %2867 = vmatprep.subr.bf16.mxu0 0
      %2868 = vmatpush1.bf16.msra.mxu0 0
      %2869 = vmatprep.subr.bf16.mxu0 0
      %2870 = vmatpush1.bf16.msra.mxu0 0
      %2871 = vmatprep.subr.bf16.mxu0 0
      %2872 = vmatpush1.bf16.msra.mxu0 0
      %2873 = vmatprep.subr.bf16.mxu0 0
      %2874 = vmatpush1.bf16.msra.mxu0 0
      %2875 = vmatprep.subr.bf16.mxu0 0
      %2876 = vmatpush1.bf16.msra.mxu0 0
      %2877 = vmatprep.subr.bf16.mxu0 0
      %2878 = vmatpush1.bf16.msra.mxu0 %v2815
      %2879 = vmatprep.subr.bf16.mxu0 0
      %2880 = vmatpush2.bf16.msra.mxu0 0
      %2881 = vmatprep.subr.bf16.mxu0 0
      %2882 = vmatpush2.bf16.msra.mxu0 0
      %2883 = vmatprep.subr.bf16.mxu0 0
      %2884 = vmatpush2.bf16.msra.mxu0 0
      %2885 = vmatprep.subr.bf16.mxu0 0
      %2886 = vmatpush2.bf16.msra.mxu0 0
      %2887 = vmatprep.subr.bf16.mxu0 0
      %2888 = vmatpush2.bf16.msra.mxu0 0
      %2889 = vmatprep.subr.bf16.mxu0 0
      %2890 = vmatpush2.bf16.msra.mxu0 0
      %2891 = vmatprep.subr.bf16.mxu0 0
      %2892 = vmatpush2.bf16.msra.mxu0 0
      %2893 = vmatprep.subr.bf16.mxu0 0
      %2894 = vmatpush2.bf16.msra.mxu0 0
      %2895 = vmatprep.mubr.bf16.mxu0 0
      %2896 = vmatmul.mubr.bf16.gmra.mxu0 %v2820
      %v2897 = vpop.f32.mrf.mxu0
      %v2898 = vadd.f32 0.0, %v2897
      %v2899 = vpop.f32.mrf.mxu0
      %v2900 = vpop.f32.mrf.mxu0
      %v2901 = vpop.f32.mrf.mxu0
      %2902 = vdwg.mxu0
      %v2903 = vadd.f32 %v2800, %v2857
      %v2904 = vadd.f32 %v2801, %v2859
      %v2905 = vadd.f32 %v2802, %v2898
      %v2906 = vld [vmem:[%s7] sm:$0xff]
      %2908 = vset.pattern.permute.xlu0 0
      %2909 = vperm.xlu0 %2908, %v2906
      %v2910 = vpop.permute.xlu0 %2909
      %v2912 = vadd.f32 %v2903, %v2910
      %v2913 = vadd.f32 %v2904, %v2910
      %v2914 = vadd.f32 %v2905, %v2910
      %v2915 = vadd.f32 %v2912, %v1638
      %v2916 = vadd.f32 %v2913, %v1639
      %v2917 = vadd.f32 %v2914, %v1640
      %2918 = vst [vmem:[%s305] sm:$0xff] %v2915
      %2919 = vst [vmem:[%s305 + $0x8] sm:$0xff] %v2916
      %2920 = vst [vmem:[%s305 + $0x10] sm:$0xff] %v2917
      %p2921 = scmp.lt.s32.totalorder %s19, 1
      %s2922 = scalar_select %p2921, %s19, 1
      %s2923 = smul.addr %s2922, 3
      %s2924 = smul.addr %s2923, 8
      %s2925 = scalar_lea.vmem %s8, %s2924
      // Predicated region
      $region53: #{cnn_block_forward.1} parent=51 // pred_check
        %p2926 = pneg %p210
      $region54: #{cnn_block_forward.1} parent=51 // pred_check_branch
        %2928 = sbr.rel (%p2926) target = $region56
      $region55: #{cnn_block_forward.1} parent=51 // pred_region
        _
      $region56: #{cnn_block_forward.1} parent=51 // pred_fallthru
        _
    $region52: #{cnn_block_forward.1} parent=5 // pred_fallthru
      _
    %p2929 = scmp.le.s32.totalorder 2, %s14
    // Predicated region
    $region57: #{cnn_block_forward.1} parent=5 // pred_check
      %p2930 = pneg %p2929
    $region58: #{cnn_block_forward.1} parent=5 // pred_check_branch
      %2932 = sbr.rel (%p2930) target = $region60
    $region59: #{cnn_block_forward.1} parent=5 // pred_region
      %s2933 = ssub.s32 %s14, 2
      // Predicated region
      $region61: #{cnn_block_forward.1} parent=59 // pred_check
        %p2934 = pneg %p216
      $region62: #{cnn_block_forward.1} parent=59 // pred_check_branch
        %2936 = sbr.rel (%p2934) target = $region64
      $region63: #{cnn_block_forward.1} parent=59 // pred_region
        %p2937 = scmp.lt.s32.totalorder %s20, 1
        %s2938 = scalar_select %p2937, %s20, 1
        %s2939 = smul.addr %s2938, 3
        %s2940 = smul.addr %s2939, 8
        %s2941 = scalar_lea.vmem %s8, %s2940
      $region64: #{cnn_block_forward.1} parent=59 // pred_fallthru
        _
    $region60: #{cnn_block_forward.1} parent=5 // pred_fallthru
      _
  $region6: #{cnn_block_forward.1} parent=0 // loop_footer
    %s18 = sadd.s32 1, %s14
  $region7: #{cnn_block_forward.1} parent=0 // loop_footer_branch
    %13 = sbr.rel target = $region3
  $region8: #{cnn_block_forward.1} parent=0 // loop_exit
    _

</llo_original>
